<compile_context>
chip_gen: v7x
topology: tpu7x:2x2x1
jax: 0.10.0
libtpu: 0.0.40
codegen_flags: <defaults>
</compile_context>

<pallas_src>
import jax
import jax.numpy as jnp
from jax.experimental import pallas as pl
from jax.experimental.pallas import tpu as pltpu

# ---------------- config (small, deterministic) ----------------
B = 2               # batch
C_IN = 3            # image channels
IMG = 16            # image H = W
C_VIS = 128         # vision feature dim == image_embedding_dim (fc.in_features)
HIDDEN = 128        # llama hidden_size
N_HEADS = 4
HEAD_DIM = HIDDEN // N_HEADS
INTER = 256         # llama intermediate_size
VOCAB = 256
T_TEXT = 8          # text sequence length
SEQ = T_TEXT + 1    # +1 image token
N_LAYERS = 2
RMS_EPS = 1e-6
NEG_INF = -1e9


# =====================================================================================
# Vision kernel: conv3x3 (im2col matmul) + bias + ReLU + global-avg-pool + projection.
# =====================================================================================
def _vision_kernel(patch_ref, cw_ref, cb_ref, pool_ref, pw_ref, pb_ref, o_ref):
    # conv as matmul on the MXU (bf16 operands, f32 accumulation) + bias + ReLU
    y = jnp.dot(patch_ref[...].astype(jnp.bfloat16), cw_ref[...],
                preferred_element_type=jnp.float32) + cb_ref[...]
    y = jnp.maximum(y, 0.0)                                        # (bsz*hw, C_VIS)

    # global average pool per image as a tiny pooling matmul (pool matrix from host)
    pooled = jnp.dot(pool_ref[...], y, preferred_element_type=jnp.float32)  # (bsz, C_VIS)

    # image_projection (nn.Linear) fused in
    o_ref[...] = jnp.dot(pooled.astype(jnp.bfloat16), pw_ref[...],
                         preferred_element_type=jnp.float32) + pb_ref[...]


def vision_image_embed(params, image_nchw):
    """vision_model(image) (conv+ReLU+GAP, fc=Identity) followed by image_projection."""
    x = jnp.transpose(image_nchw, (0, 2, 3, 1)).astype(jnp.float32)     # NCHW -> NHWC
    bsz, h, w, cin = x.shape
    hw = h * w
    xp = jnp.pad(x, ((0, 0), (1, 1), (1, 1), (0, 0)))
    # im2col stays in XLA glue (one-time data movement); everything downstream is fused.
    cols = [xp[:, i:i + h, j:j + w, :] for i in range(3) for j in range(3)]
    patches = jnp.concatenate(cols, axis=-1).reshape(bsz * hw, 9 * cin)

    # host-built average-pool matrix: pooled[b] = mean over that image's hw rows
    ri = jnp.arange(bsz)[:, None]
    ci = jnp.arange(bsz * hw)[None, :]
    pool = jnp.where(ci // hw == ri, 1.0 / hw, 0.0).astype(jnp.float32)  # (bsz, bsz*hw)

    return pl.pallas_call(
        _vision_kernel,
        out_shape=jax.ShapeDtypeStruct((bsz, HIDDEN), jnp.float32),
        grid=(1,),
        in_specs=[pl.BlockSpec((bsz * hw, 9 * cin), lambda i: (0, 0)),
                  pl.BlockSpec((9 * cin, C_VIS), lambda i: (0, 0)),
                  pl.BlockSpec((1, C_VIS), lambda i: (0, 0)),
                  pl.BlockSpec((bsz, bsz * hw), lambda i: (0, 0)),
                  pl.BlockSpec((C_VIS, HIDDEN), lambda i: (0, 0)),
                  pl.BlockSpec((1, HIDDEN), lambda i: (0, 0))],
        out_specs=pl.BlockSpec((bsz, HIDDEN), lambda i: (0, 0)),
    )(patches, params["conv_w"], params["conv_b"], pool,
      params["proj_w"], params["proj_b"])


# =====================================================================================
# Fused decoder-stack kernel: grid = (batch, layers), residual stream in VMEM scratch.
# =====================================================================================
def _rms(x, w, eps=RMS_EPS):
    var = jnp.mean(x * x, axis=-1, keepdims=True)
    return x * jax.lax.rsqrt(var + eps) * w


def _decoder_stack_kernel(embeds_ref, bias_ref, cos_ref, sin_ref, perm_ref,
                          ln1_ref, ln2_ref, wqkv_ref, wo_ref, wgu_ref, wdn_ref,
                          normf_ref, lmhead_ref, logits_ref, x_scr):
    l = pl.program_id(1)
    n_layers = pl.num_programs(1)

    @pl.when(l == 0)
    def _():
        x_scr[...] = embeds_ref[0]

    x = x_scr[...]                                         # (S, H) f32 residual stream

    # ---------------- attention block ----------------
    h = _rms(x, ln1_ref[0])
    qkv = jnp.dot(h.astype(jnp.bfloat16), wqkv_ref[0],
                  preferred_element_type=jnp.float32)      # (S, 3H)
    q = qkv[:, :HIDDEN]
    k = qkv[:, HIDDEN:2 * HIDDEN]
    v = qkv[:, 2 * HIDDEN:]

    # RoPE for all heads at once: rotate_half via one (H,H) permutation matmul (host
    # precomputed), then cos/sin FMA.
    cos = cos_ref[...]
    sin = sin_ref[...]
    perm = perm_ref[...]

    def rope(t):
        rot = jnp.dot(t.astype(jnp.bfloat16), perm, preferred_element_type=jnp.float32)
        return t * cos + rot * sin

    q = rope(q)
    k = rope(k)

    bias = bias_ref[0]                                     # (S, S) causal+padding bias
    scale = 1.0 / (HEAD_DIM ** 0.5)
    wo = wo_ref[0]                                         # (H, H) bf16
    attn_out = jnp.zeros(x.shape, jnp.float32)
    for hh in range(N_HEADS):
        sl = slice(hh * HEAD_DIM, (hh + 1) * HEAD_DIM)
        qh, kh, vh = q[:, sl], k[:, sl], v[:, sl]
        s = jax.lax.dot_general(qh.astype(jnp.bfloat16), kh.astype(jnp.bfloat16),
                                (((1,), (1,)), ((), ())),
                                preferred_element_type=jnp.float32) * scale + bias
        s = s - jnp.max(s, axis=-1, keepdims=True)
        p = jnp.exp(s)
        p = p * pl.reciprocal(jnp.sum(p, axis=-1, keepdims=True), approx=True)
        oh = jnp.dot(p.astype(jnp.bfloat16), vh.astype(jnp.bfloat16),
                     preferred_element_type=jnp.float32)   # (S, Dh)
        # fold the O-projection in per head:  concat_h(oh) @ Wo == sum_h oh @ Wo[rows_h]
        attn_out = attn_out + jnp.dot(oh.astype(jnp.bfloat16), wo[sl, :],
                                      preferred_element_type=jnp.float32)
    x = x + attn_out

    # ---------------- SwiGLU MLP block ----------------
    h2 = _rms(x, ln2_ref[0])
    gu = jnp.dot(h2.astype(jnp.bfloat16), wgu_ref[0],
                 preferred_element_type=jnp.float32)       # (S, 2*INTER)
    g = gu[:, :INTER]
    u = gu[:, INTER:]
    act = g * pl.reciprocal(1.0 + jnp.exp(-g), approx=True) * u      # silu(g) * up
    x = x + jnp.dot(act.astype(jnp.bfloat16), wdn_ref[0],
                    preferred_element_type=jnp.float32)

    x_scr[...] = x

    # final RMSNorm + lm_head fused into the last layer step (lane-dense output, V=256)
    @pl.when(l == n_layers - 1)
    def _():
        hf = _rms(x, normf_ref[...])
        logits_ref[0] = jnp.dot(hf.astype(jnp.bfloat16), lmhead_ref[...],
                                preferred_element_type=jnp.float32)


def rope_tables(seq, dh, base=10000.0):
    inv_freq = 1.0 / (base ** (jnp.arange(0, dh, 2, dtype=jnp.float32) / dh))
    t = jnp.arange(seq, dtype=jnp.float32)
    freqs = jnp.outer(t, inv_freq)                         # (S, Dh/2)
    emb = jnp.concatenate([freqs, freqs], axis=-1)         # (S, Dh)  (HF rotate_half layout)
    return jnp.cos(emb), jnp.sin(emb)


def rope_perm_matrix(hidden, head_dim):
    """Block-diagonal matrix P with rotate_half(x) == x @ P per head (host precomputed)."""
    half = head_dim // 2
    ri = jnp.arange(hidden)[:, None]
    ci = jnp.arange(hidden)[None, :]
    same = (ri // head_dim) == (ci // head_dim)
    p = (jnp.where(same & (ri == ci + half), -1.0, 0.0)
         + jnp.where(same & (ri + half == ci), 1.0, 0.0))
    return p.astype(jnp.bfloat16)


def decoder_stack(params, inputs_embeds, key_mask):
    bsz, seq, hid = inputs_embeds.shape
    cos, sin = rope_tables(seq, HEAD_DIM)
    cos_f = jnp.tile(cos, (1, N_HEADS))                    # (S, H): same table per head block
    sin_f = jnp.tile(sin, (1, N_HEADS))
    perm = rope_perm_matrix(hid, HEAD_DIM)                 # (H, H) bf16

    # additive causal + key-padding bias, built once on host: (B, S, S)
    ri = jnp.arange(seq)[:, None]
    ci = jnp.arange(seq)[None, :]
    causal = (ri >= ci)[None, :, :]                                      # (1,S,S)
    kvalid = (key_mask > 0.0)[:, None, :]                                # (B,1,S)
    bias = jnp.where(causal & kvalid, 0.0, NEG_INF).astype(jnp.float32)  # (B,S,S)

    def weight_spec(shape):                                # layer-stacked weights
        return pl.BlockSpec((1,) + shape, lambda b, l: (l, 0, 0))

    def shared_spec(shape):                                # shared across all grid steps
        return pl.BlockSpec(shape, lambda b, l: tuple(0 for _ in shape))

    return pl.pallas_call(
        _decoder_stack_kernel,
        out_shape=jax.ShapeDtypeStruct((bsz, seq, VOCAB), jnp.float32),
        grid=(bsz, N_LAYERS),
        in_specs=[
            pl.BlockSpec((1, seq, hid), lambda b, l: (b, 0, 0)),      # inputs_embeds
            pl.BlockSpec((1, seq, seq), lambda b, l: (b, 0, 0)),      # causal+pad bias
            shared_spec((seq, hid)),                                  # cos (full width)
            shared_spec((seq, hid)),                                  # sin (full width)
            shared_spec((hid, hid)),                                  # rotate_half perm
            weight_spec((1, hid)),                                    # ln1  (L,1,H)
            weight_spec((1, hid)),                                    # ln2  (L,1,H)
            weight_spec((hid, 3 * hid)),                              # W_qkv (L,H,3H)
            weight_spec((hid, hid)),                                  # W_o   (L,H,H)
            weight_spec((hid, 2 * INTER)),                            # W_gate|W_up (L,H,2I)
            weight_spec((INTER, hid)),                                # W_down (L,I,H)
            shared_spec((1, hid)),                                    # final norm weight
            shared_spec((hid, VOCAB)),                                # lm_head
        ],
        out_specs=pl.BlockSpec((1, seq, VOCAB), lambda b, l: (b, 0, 0)),
        scratch_shapes=[pltpu.VMEM((seq, hid), jnp.float32)],
        compiler_params=pltpu.CompilerParams(
            dimension_semantics=("parallel", "arbitrary")),
    )(inputs_embeds, bias, cos_f, sin_f, perm,
      params["ln1_s"], params["ln2_s"], params["wqkv_s"], params["wo_s"],
      params["wgu_s"], params["wdn_s"], params["norm_w"], params["lm_head"])


# =====================================================================================
# MultiModalModel.forward
# =====================================================================================
def multimodal_forward(params, image, input_ids, attention_mask, labels=None):
    image_embeddings = vision_image_embed(params, image)[:, None, :]          # (B,1,H)
    text_embeddings = jnp.take(params["embed"], input_ids, axis=0)            # (B,T,H)
    inputs_embeds = jnp.concatenate([image_embeddings, text_embeddings], axis=1)
    key_mask = jnp.concatenate(
        [jnp.ones((attention_mask.shape[0], 1), jnp.float32),
         attention_mask.astype(jnp.float32)], axis=1)                         # (B,S)
    logits = decoder_stack(params, inputs_embeds, key_mask)                   # (B,S,V)
    if labels is None:
        return logits
    # HF-style shifted cross-entropy (ignore_index = -100), in XLA glue.
    shift_logits, shift_labels = logits[:, :-1, :], labels[:, 1:]
    logp = jax.nn.log_softmax(shift_logits, axis=-1)
    valid = shift_labels != -100
    tgt = jnp.where(valid, shift_labels, 0)
    nll = -jnp.take_along_axis(logp, tgt[..., None], axis=-1)[..., 0]
    loss = jnp.sum(nll * valid) / jnp.maximum(jnp.sum(valid), 1)
    return loss, logits


# ---------------- deterministic parameter init ----------------
def init_params(key):
    def nrm(k, shape, dtype=jnp.bfloat16, scale=0.02):
        return (scale * jax.random.normal(k, shape, jnp.float32)).astype(dtype)

    keys = iter(jax.random.split(key, 12))
    return dict(
        # vision stem (conv in im2col layout) + image projection; MXU operands in bf16
        conv_w=nrm(next(keys), (9 * C_IN, C_VIS)),
        conv_b=jnp.zeros((1, C_VIS), jnp.float32),
        proj_w=nrm(next(keys), (C_VIS, HIDDEN)),
        proj_b=jnp.zeros((1, HIDDEN), jnp.float32),
        # language model (layer-stacked, QKV and gate|up concatenated)
        embed=nrm(next(keys), (VOCAB, HIDDEN), dtype=jnp.float32),
        ln1_s=jnp.ones((N_LAYERS, 1, HIDDEN), jnp.float32),
        ln2_s=jnp.ones((N_LAYERS, 1, HIDDEN), jnp.float32),
        wqkv_s=nrm(next(keys), (N_LAYERS, HIDDEN, 3 * HIDDEN)),
        wo_s=nrm(next(keys), (N_LAYERS, HIDDEN, HIDDEN)),
        wgu_s=nrm(next(keys), (N_LAYERS, HIDDEN, 2 * INTER)),
        wdn_s=nrm(next(keys), (N_LAYERS, INTER, HIDDEN)),
        norm_w=jnp.ones((1, HIDDEN), jnp.float32),
        lm_head=nrm(next(keys), (HIDDEN, VOCAB)),
    )


if __name__ == "__main__":
    key = jax.random.PRNGKey(0)
    k_params, k_img, k_ids = jax.random.split(key, 3)
    params = init_params(k_params)

    image = jax.random.normal(k_img, (B, C_IN, IMG, IMG), jnp.float32)   # NCHW (PyTorch)
    input_ids = jax.random.randint(k_ids, (B, T_TEXT), 0, VOCAB, jnp.int32)
    attention_mask = jnp.ones((B, T_TEXT), jnp.int32)

    fwd = jax.jit(multimodal_forward)
    logits = fwd(params, image, input_ids, attention_mask)
    jax.block_until_ready(logits)
    assert logits.shape == (B, T_TEXT + 1, VOCAB)
    assert bool(jnp.all(jnp.isfinite(logits)))
    print("KERNEL_OK")
</pallas_src>

<mosaic_0001>
module attributes {stable_mosaic.version = 11 : i64} {
  func.func @_vision_kernel(%arg0: i32, %arg1: memref<512x27xf32, #tpu.memory_space<vmem>>, %arg2: memref<27x128xbf16, #tpu.memory_space<vmem>>, %arg3: memref<1x128xf32, #tpu.memory_space<vmem>>, %arg4: memref<2x512xf32, #tpu.memory_space<vmem>>, %arg5: memref<128x128xbf16, #tpu.memory_space<vmem>>, %arg6: memref<1x128xf32, #tpu.memory_space<vmem>>, %arg7: memref<2x128xf32, #tpu.memory_space<vmem>>) attributes {dimension_semantics = [#tpu.dimension_semantics<arbitrary>], iteration_bounds = array<i64: 1>, scalar_prefetch = 0 : i64, scratch_operands = 0 : i64, tpu.core_type = #tpu.core_type<tc>, window_params = [{pipeline_mode = #tpu.pipeline_mode<synchronous>, transform_indices = @transform_0, window_bounds = array<i64: 512, 27>}, {pipeline_mode = #tpu.pipeline_mode<synchronous>, transform_indices = @transform_1, window_bounds = array<i64: 27, 128>}, {pipeline_mode = #tpu.pipeline_mode<synchronous>, transform_indices = @transform_2, window_bounds = array<i64: 1, 128>}, {pipeline_mode = #tpu.pipeline_mode<synchronous>, transform_indices = @transform_3, window_bounds = array<i64: 2, 512>}, {pipeline_mode = #tpu.pipeline_mode<synchronous>, transform_indices = @transform_4, window_bounds = array<i64: 128, 128>}, {pipeline_mode = #tpu.pipeline_mode<synchronous>, transform_indices = @transform_5, window_bounds = array<i64: 1, 128>}, {pipeline_mode = #tpu.pipeline_mode<synchronous>, transform_indices = @transform_6, window_bounds = array<i64: 2, 128>}]} {
    %c0 = arith.constant 0 : index
    %c0_0 = arith.constant 0 : index
    %0 = vector.load %arg1[%c0, %c0_0] : memref<512x27xf32, #tpu.memory_space<vmem>>, vector<512x27xf32>
    %1 = arith.truncf %0 : vector<512x27xf32> to vector<512x27xbf16>
    %c0_1 = arith.constant 0 : index
    %c0_2 = arith.constant 0 : index
    %2 = vector.load %arg2[%c0_1, %c0_2] : memref<27x128xbf16, #tpu.memory_space<vmem>>, vector<27x128xbf16>
    %cst = arith.constant dense<0.000000e+00> : vector<512x128xf32>
    %3 = tpu.matmul %1, %2, %cst {dimension_numbers = #tpu.dot_dimension_numbers<[1], [0], [0], [1], [0, 0, 1, 1], [], []>} : vector<512x27xbf16>, vector<27x128xbf16>, vector<512x128xf32> -> vector<512x128xf32>
    %c0_3 = arith.constant 0 : index
    %c0_4 = arith.constant 0 : index
    %4 = vector.load %arg3[%c0_3, %c0_4] : memref<1x128xf32, #tpu.memory_space<vmem>>, vector<1x128xf32>
    %5 = vector.broadcast %4 : vector<1x128xf32> to vector<512x128xf32>
    %6 = arith.addf %3, %5 : vector<512x128xf32>
    %cst_5 = arith.constant 0.000000e+00 : f32
    %7 = vector.broadcast %cst_5 : f32 to vector<512x128xf32>
    %8 = arith.maximumf %6, %7 : vector<512x128xf32>
    %c0_6 = arith.constant 0 : index
    %c0_7 = arith.constant 0 : index
    %9 = vector.load %arg4[%c0_6, %c0_7] : memref<2x512xf32, #tpu.memory_space<vmem>>, vector<2x512xf32>
    %cst_8 = arith.constant dense<0.000000e+00> : vector<2x128xf32>
    %10 = tpu.matmul %9, %8, %cst_8 {dimension_numbers = #tpu.dot_dimension_numbers<[1], [0], [0], [1], [0, 0, 1, 1], [], []>} : vector<2x512xf32>, vector<512x128xf32>, vector<2x128xf32> -> vector<2x128xf32>
    %11 = arith.truncf %10 : vector<2x128xf32> to vector<2x128xbf16>
    %c0_9 = arith.constant 0 : index
    %c0_10 = arith.constant 0 : index
    %12 = vector.load %arg5[%c0_9, %c0_10] : memref<128x128xbf16, #tpu.memory_space<vmem>>, vector<128x128xbf16>
    %cst_11 = arith.constant dense<0.000000e+00> : vector<2x128xf32>
    %13 = tpu.matmul %11, %12, %cst_11 {dimension_numbers = #tpu.dot_dimension_numbers<[1], [0], [0], [1], [0, 0, 1, 1], [], []>} : vector<2x128xbf16>, vector<128x128xbf16>, vector<2x128xf32> -> vector<2x128xf32>
    %c0_12 = arith.constant 0 : index
    %c0_13 = arith.constant 0 : index
    %14 = vector.load %arg6[%c0_12, %c0_13] : memref<1x128xf32, #tpu.memory_space<vmem>>, vector<1x128xf32>
    %15 = vector.broadcast %14 : vector<1x128xf32> to vector<2x128xf32>
    %16 = arith.addf %13, %15 : vector<2x128xf32>
    %c0_14 = arith.constant 0 : index
    %c0_15 = arith.constant 0 : index
    %17 = vector.load %arg7[%c0_14, %c0_15] : memref<2x128xf32, #tpu.memory_space<vmem>>, vector<2x128xf32>
    tpu.vector_store %arg7[%c0_14, %c0_15], %16 {strides = array<i32>} : memref<2x128xf32, #tpu.memory_space<vmem>>, vector<2x128xf32>,
    return
  }
  func.func @transform_0(%arg0: i32) -> (i32, i32) {
    %c0_i32 = arith.constant 0 : i32
    %c0_i32_0 = arith.constant 0 : i32
    %c0_i32_1 = arith.constant 0 : i32
    return %c0_i32, %c0_i32_0 : i32, i32
  }
  func.func @transform_1(%arg0: i32) -> (i32, i32) {
    %c0_i32 = arith.constant 0 : i32
    %c0_i32_0 = arith.constant 0 : i32
    %c0_i32_1 = arith.constant 0 : i32
    return %c0_i32, %c0_i32_0 : i32, i32
  }
  func.func @transform_2(%arg0: i32) -> (i32, i32) {
    %c0_i32 = arith.constant 0 : i32
    %c0_i32_0 = arith.constant 0 : i32
    %c0_i32_1 = arith.constant 0 : i32
    return %c0_i32, %c0_i32_0 : i32, i32
  }
  func.func @transform_3(%arg0: i32) -> (i32, i32) {
    %c0_i32 = arith.constant 0 : i32
    %c0_i32_0 = arith.constant 0 : i32
    %c0_i32_1 = arith.constant 0 : i32
    return %c0_i32, %c0_i32_0 : i32, i32
  }
  func.func @transform_4(%arg0: i32) -> (i32, i32) {
    %c0_i32 = arith.constant 0 : i32
    %c0_i32_0 = arith.constant 0 : i32
    %c0_i32_1 = arith.constant 0 : i32
    return %c0_i32, %c0_i32_0 : i32, i32
  }
  func.func @transform_5(%arg0: i32) -> (i32, i32) {
    %c0_i32 = arith.constant 0 : i32
    %c0_i32_0 = arith.constant 0 : i32
    %c0_i32_1 = arith.constant 0 : i32
    return %c0_i32, %c0_i32_0 : i32, i32
  }
  func.func @transform_6(%arg0: i32) -> (i32, i32) {
    %c0_i32 = arith.constant 0 : i32
    %c0_i32_0 = arith.constant 0 : i32
    %c0_i32_1 = arith.constant 0 : i32
    return %c0_i32, %c0_i32_0 : i32, i32
  }
}

module attributes {stable_mosaic.version = 11 : i64} {
  func.func @_decoder_stack_kernel(%arg0: i32, %arg1: i32, %arg2: memref<1x9x128xf32, #tpu.memory_space<vmem>>, %arg3: memref<1x9x9xf32, #tpu.memory_space<vmem>>, %arg4: memref<9x128xf32, #tpu.memory_space<vmem>>, %arg5: memref<9x128xf32, #tpu.memory_space<vmem>>, %arg6: memref<128x128xbf16, #tpu.memory_space<vmem>>, %arg7: memref<1x1x128xf32, #tpu.memory_space<vmem>>, %arg8: memref<1x1x128xf32, #tpu.memory_space<vmem>>, %arg9: memref<1x128x384xbf16, #tpu.memory_space<vmem>>, %arg10: memref<1x128x128xbf16, #tpu.memory_space<vmem>>, %arg11: memref<1x128x512xbf16, #tpu.memory_space<vmem>>, %arg12: memref<1x256x128xbf16, #tpu.memory_space<vmem>>, %arg13: memref<1x128xf32, #tpu.memory_space<vmem>>, %arg14: memref<128x256xbf16, #tpu.memory_space<vmem>>, %arg15: memref<1x9x256xf32, #tpu.memory_space<vmem>>, %arg16: memref<9x128xf32, #tpu.memory_space<vmem>>) attributes {dimension_semantics = [#tpu.dimension_semantics<parallel>, #tpu.dimension_semantics<arbitrary>], iteration_bounds = array<i64: 2, 2>, scalar_prefetch = 0 : i64, scratch_operands = 1 : i64, tpu.core_type = #tpu.core_type<tc>, window_params = [{transform_indices = @transform_0, window_bounds = array<i64: 1, 9, 128>}, {transform_indices = @transform_1, window_bounds = array<i64: 1, 9, 9>}, {pipeline_mode = #tpu.pipeline_mode<synchronous>, transform_indices = @transform_2, window_bounds = array<i64: 9, 128>}, {pipeline_mode = #tpu.pipeline_mode<synchronous>, transform_indices = @transform_3, window_bounds = array<i64: 9, 128>}, {pipeline_mode = #tpu.pipeline_mode<synchronous>, transform_indices = @transform_4, window_bounds = array<i64: 128, 128>}, {transform_indices = @transform_5, window_bounds = array<i64: 1, 1, 128>}, {transform_indices = @transform_6, window_bounds = array<i64: 1, 1, 128>}, {transform_indices = @transform_7, window_bounds = array<i64: 1, 128, 384>}, {transform_indices = @transform_8, window_bounds = array<i64: 1, 128, 128>}, {transform_indices = @transform_9, window_bounds = array<i64: 1, 128, 512>}, {transform_indices = @transform_10, window_bounds = array<i64: 1, 256, 128>}, {pipeline_mode = #tpu.pipeline_mode<synchronous>, transform_indices = @transform_11, window_bounds = array<i64: 1, 128>}, {pipeline_mode = #tpu.pipeline_mode<synchronous>, transform_indices = @transform_12, window_bounds = array<i64: 128, 256>}, {transform_indices = @transform_13, window_bounds = array<i64: 1, 9, 256>}]} {
    %c0_i32 = arith.constant 0 : i32
    %0 = arith.cmpi eq, %arg1, %c0_i32 : i32
    %1 = arith.extui %0 : i1 to i32
    %c0_i32_0 = arith.constant 0 : i32
    %2 = arith.cmpi ne, %1, %c0_i32_0 : i32
    scf.if %2 {
      %c0_69 = arith.constant 0 : index
      %c0_70 = arith.constant 0 : index
      %c0_71 = arith.constant 0 : index
      %185 = vector.load %arg2[%c0_69, %c0_70, %c0_71] : memref<1x9x128xf32, #tpu.memory_space<vmem>>, vector<1x9x128xf32>
      %186 = vector.shape_cast %185 : vector<1x9x128xf32> to vector<9x128xf32>
      %c0_72 = arith.constant 0 : index
      %c0_73 = arith.constant 0 : index
      %187 = vector.load %arg16[%c0_72, %c0_73] : memref<9x128xf32, #tpu.memory_space<vmem>>, vector<9x128xf32>
      tpu.vector_store %arg16[%c0_72, %c0_73], %186 {strides = array<i32>} : memref<9x128xf32, #tpu.memory_space<vmem>>, vector<9x128xf32>,
    } else {
    }
    %c0 = arith.constant 0 : index
    %c0_1 = arith.constant 0 : index
    %3 = vector.load %arg16[%c0, %c0_1] : memref<9x128xf32, #tpu.memory_space<vmem>>, vector<9x128xf32>
    %c0_2 = arith.constant 0 : index
    %c0_3 = arith.constant 0 : index
    %c0_4 = arith.constant 0 : index
    %4 = vector.load %arg7[%c0_2, %c0_3, %c0_4] : memref<1x1x128xf32, #tpu.memory_space<vmem>>, vector<1x1x128xf32>
    %5 = vector.shape_cast %4 : vector<1x1x128xf32> to vector<1x128xf32>
    %6 = arith.mulf %3, %3 : vector<9x128xf32>
    %cst = arith.constant dense<0.000000e+00> : vector<9xf32>
    %7 = vector.multi_reduction <add>, %6, %cst [1] : vector<9x128xf32> to vector<9xf32>
    %8 = vector.shape_cast %7 : vector<9xf32> to vector<9x1xf32>
    %cst_5 = arith.constant 1.280000e+02 : f32
    %9 = vector.broadcast %cst_5 : f32 to vector<9x1xf32>
    %10 = arith.divf %8, %9 : vector<9x1xf32>
    %cst_6 = arith.constant 9.99999997E-7 : f32
    %11 = vector.broadcast %cst_6 : f32 to vector<9x1xf32>
    %12 = arith.addf %10, %11 : vector<9x1xf32>
    %13 = math.rsqrt %12 : vector<9x1xf32>
    %14 = vector.broadcast %13 : vector<9x1xf32> to vector<9x128xf32>
    %15 = arith.mulf %3, %14 : vector<9x128xf32>
    %16 = vector.broadcast %5 : vector<1x128xf32> to vector<9x128xf32>
    %17 = arith.mulf %15, %16 : vector<9x128xf32>
    %18 = arith.truncf %17 : vector<9x128xf32> to vector<9x128xbf16>
    %c0_7 = arith.constant 0 : index
    %c0_8 = arith.constant 0 : index
    %c0_9 = arith.constant 0 : index
    %19 = vector.load %arg9[%c0_7, %c0_8, %c0_9] : memref<1x128x384xbf16, #tpu.memory_space<vmem>>, vector<1x128x384xbf16>
    %20 = vector.shape_cast %19 : vector<1x128x384xbf16> to vector<128x384xbf16>
    %cst_10 = arith.constant dense<0.000000e+00> : vector<9x384xf32>
    %21 = tpu.matmul %18, %20, %cst_10 {dimension_numbers = #tpu.dot_dimension_numbers<[1], [0], [0], [1], [0, 0, 1, 1], [], []>} : vector<9x128xbf16>, vector<128x384xbf16>, vector<9x384xf32> -> vector<9x384xf32>
    %22 = vector.extract_strided_slice %21 {offsets = [0, 0], sizes = [9, 128], strides = [1, 1]} : vector<9x384xf32> to vector<9x128xf32>
    %23 = vector.extract_strided_slice %21 {offsets = [0, 128], sizes = [9, 128], strides = [1, 1]} : vector<9x384xf32> to vector<9x128xf32>
    %24 = vector.extract_strided_slice %21 {offsets = [0, 256], sizes = [9, 128], strides = [1, 1]} : vector<9x384xf32> to vector<9x128xf32>
    %c0_11 = arith.constant 0 : index
    %c0_12 = arith.constant 0 : index
    %25 = vector.load %arg4[%c0_11, %c0_12] : memref<9x128xf32, #tpu.memory_space<vmem>>, vector<9x128xf32>
    %c0_13 = arith.constant 0 : index
    %c0_14 = arith.constant 0 : index
    %26 = vector.load %arg5[%c0_13, %c0_14] : memref<9x128xf32, #tpu.memory_space<vmem>>, vector<9x128xf32>
    %c0_15 = arith.constant 0 : index
    %c0_16 = arith.constant 0 : index
    %27 = vector.load %arg6[%c0_15, %c0_16] : memref<128x128xbf16, #tpu.memory_space<vmem>>, vector<128x128xbf16>
    %28 = arith.truncf %22 : vector<9x128xf32> to vector<9x128xbf16>
    %cst_17 = arith.constant dense<0.000000e+00> : vector<9x128xf32>
    %29 = tpu.matmul %28, %27, %cst_17 {dimension_numbers = #tpu.dot_dimension_numbers<[1], [0], [0], [1], [0, 0, 1, 1], [], []>} : vector<9x128xbf16>, vector<128x128xbf16>, vector<9x128xf32> -> vector<9x128xf32>
    %30 = arith.mulf %22, %25 : vector<9x128xf32>
    %31 = arith.mulf %29, %26 : vector<9x128xf32>
    %32 = arith.addf %30, %31 : vector<9x128xf32>
    %33 = arith.truncf %23 : vector<9x128xf32> to vector<9x128xbf16>
    %cst_18 = arith.constant dense<0.000000e+00> : vector<9x128xf32>
    %34 = tpu.matmul %33, %27, %cst_18 {dimension_numbers = #tpu.dot_dimension_numbers<[1], [0], [0], [1], [0, 0, 1, 1], [], []>} : vector<9x128xbf16>, vector<128x128xbf16>, vector<9x128xf32> -> vector<9x128xf32>
    %35 = arith.mulf %23, %25 : vector<9x128xf32>
    %36 = arith.mulf %34, %26 : vector<9x128xf32>
    %37 = arith.addf %35, %36 : vector<9x128xf32>
    %c0_19 = arith.constant 0 : index
    %c0_20 = arith.constant 0 : index
    %c0_21 = arith.constant 0 : index
    %38 = vector.load %arg3[%c0_19, %c0_20, %c0_21] : memref<1x9x9xf32, #tpu.memory_space<vmem>>, vector<1x9x9xf32>
    %39 = vector.shape_cast %38 : vector<1x9x9xf32> to vector<9x9xf32>
    %c0_22 = arith.constant 0 : index
    %c0_23 = arith.constant 0 : index
    %c0_24 = arith.constant 0 : index
    %40 = vector.load %arg10[%c0_22, %c0_23, %c0_24] : memref<1x128x128xbf16, #tpu.memory_space<vmem>>, vector<1x128x128xbf16>
    %41 = vector.shape_cast %40 : vector<1x128x128xbf16> to vector<128x128xbf16>
    %cst_25 = arith.constant 0.000000e+00 : f32
    %42 = vector.broadcast %cst_25 : f32 to vector<9x128xf32>
    %43 = vector.extract_strided_slice %32 {offsets = [0, 0], sizes = [9, 32], strides = [1, 1]} : vector<9x128xf32> to vector<9x32xf32>
    %44 = vector.extract_strided_slice %37 {offsets = [0, 0], sizes = [9, 32], strides = [1, 1]} : vector<9x128xf32> to vector<9x32xf32>
    %45 = vector.extract_strided_slice %24 {offsets = [0, 0], sizes = [9, 32], strides = [1, 1]} : vector<9x128xf32> to vector<9x32xf32>
    %46 = arith.truncf %43 : vector<9x32xf32> to vector<9x32xbf16>
    %47 = arith.truncf %44 : vector<9x32xf32> to vector<9x32xbf16>
    %cst_26 = arith.constant dense<0.000000e+00> : vector<9x9xf32>
    %48 = tpu.matmul %46, %47, %cst_26 {dimension_numbers = #tpu.dot_dimension_numbers<[1], [1], [0], [0], [0, 0, 1, 0], [], []>} : vector<9x32xbf16>, vector<9x32xbf16>, vector<9x9xf32> -> vector<9x9xf32>
    %cst_27 = arith.constant 0.176776692 : f32
    %49 = vector.broadcast %cst_27 : f32 to vector<9x9xf32>
    %50 = arith.mulf %48, %49 : vector<9x9xf32>
    %51 = arith.addf %50, %39 : vector<9x9xf32>
    %cst_28 = arith.constant dense<0xFF800000> : vector<9xf32>
    %52 = vector.multi_reduction <maximumf>, %51, %cst_28 [1] : vector<9x9xf32> to vector<9xf32>
    %53 = vector.shape_cast %52 : vector<9xf32> to vector<9x1xf32>
    %54 = vector.broadcast %53 : vector<9x1xf32> to vector<9x9xf32>
    %55 = arith.subf %51, %54 : vector<9x9xf32>
    %56 = math.exp %55 : vector<9x9xf32>
    %cst_29 = arith.constant dense<0.000000e+00> : vector<9xf32>
    %57 = vector.multi_reduction <add>, %56, %cst_29 [1] : vector<9x9xf32> to vector<9xf32>
    %58 = vector.shape_cast %57 : vector<9xf32> to vector<9x1xf32>
    %59 = tpu.reciprocal %58 {approx = true} : vector<9x1xf32> -> vector<9x1xf32>
    %60 = vector.broadcast %59 : vector<9x1xf32> to vector<9x9xf32>
    %61 = arith.mulf %56, %60 : vector<9x9xf32>
    %62 = arith.truncf %61 : vector<9x9xf32> to vector<9x9xbf16>
    %63 = arith.truncf %45 : vector<9x32xf32> to vector<9x32xbf16>
    %cst_30 = arith.constant dense<0.000000e+00> : vector<9x32xf32>
    %64 = tpu.matmul %62, %63, %cst_30 {dimension_numbers = #tpu.dot_dimension_numbers<[1], [0], [0], [1], [0, 0, 1, 1], [], []>} : vector<9x9xbf16>, vector<9x32xbf16>, vector<9x32xf32> -> vector<9x32xf32>
    %65 = arith.truncf %64 : vector<9x32xf32> to vector<9x32xbf16>
    %66 = vector.extract_strided_slice %41 {offsets = [0, 0], sizes = [32, 128], strides = [1, 1]} : vector<128x128xbf16> to vector<32x128xbf16>
    %cst_31 = arith.constant dense<0.000000e+00> : vector<9x128xf32>
    %67 = tpu.matmul %65, %66, %cst_31 {dimension_numbers = #tpu.dot_dimension_numbers<[1], [0], [0], [1], [0, 0, 1, 1], [], []>} : vector<9x32xbf16>, vector<32x128xbf16>, vector<9x128xf32> -> vector<9x128xf32>
    %68 = arith.addf %42, %67 : vector<9x128xf32>
    %69 = vector.extract_strided_slice %32 {offsets = [0, 32], sizes = [9, 32], strides = [1, 1]} : vector<9x128xf32> to vector<9x32xf32>
    %70 = vector.extract_strided_slice %37 {offsets = [0, 32], sizes = [9, 32], strides = [1, 1]} : vector<9x128xf32> to vector<9x32xf32>
    %71 = vector.extract_strided_slice %24 {offsets = [0, 32], sizes = [9, 32], strides = [1, 1]} : vector<9x128xf32> to vector<9x32xf32>
    %72 = arith.truncf %69 : vector<9x32xf32> to vector<9x32xbf16>
    %73 = arith.truncf %70 : vector<9x32xf32> to vector<9x32xbf16>
    %cst_32 = arith.constant dense<0.000000e+00> : vector<9x9xf32>
    %74 = tpu.matmul %72, %73, %cst_32 {dimension_numbers = #tpu.dot_dimension_numbers<[1], [1], [0], [0], [0, 0, 1, 0], [], []>} : vector<9x32xbf16>, vector<9x32xbf16>, vector<9x9xf32> -> vector<9x9xf32>
    %cst_33 = arith.constant 0.176776692 : f32
    %75 = vector.broadcast %cst_33 : f32 to vector<9x9xf32>
    %76 = arith.mulf %74, %75 : vector<9x9xf32>
    %77 = arith.addf %76, %39 : vector<9x9xf32>
    %cst_34 = arith.constant dense<0xFF800000> : vector<9xf32>
    %78 = vector.multi_reduction <maximumf>, %77, %cst_34 [1] : vector<9x9xf32> to vector<9xf32>
    %79 = vector.shape_cast %78 : vector<9xf32> to vector<9x1xf32>
    %80 = vector.broadcast %79 : vector<9x1xf32> to vector<9x9xf32>
    %81 = arith.subf %77, %80 : vector<9x9xf32>
    %82 = math.exp %81 : vector<9x9xf32>
    %cst_35 = arith.constant dense<0.000000e+00> : vector<9xf32>
    %83 = vector.multi_reduction <add>, %82, %cst_35 [1] : vector<9x9xf32> to vector<9xf32>
    %84 = vector.shape_cast %83 : vector<9xf32> to vector<9x1xf32>
    %85 = tpu.reciprocal %84 {approx = true} : vector<9x1xf32> -> vector<9x1xf32>
    %86 = vector.broadcast %85 : vector<9x1xf32> to vector<9x9xf32>
    %87 = arith.mulf %82, %86 : vector<9x9xf32>
    %88 = arith.truncf %87 : vector<9x9xf32> to vector<9x9xbf16>
    %89 = arith.truncf %71 : vector<9x32xf32> to vector<9x32xbf16>
    %cst_36 = arith.constant dense<0.000000e+00> : vector<9x32xf32>
    %90 = tpu.matmul %88, %89, %cst_36 {dimension_numbers = #tpu.dot_dimension_numbers<[1], [0], [0], [1], [0, 0, 1, 1], [], []>} : vector<9x9xbf16>, vector<9x32xbf16>, vector<9x32xf32> -> vector<9x32xf32>
    %91 = arith.truncf %90 : vector<9x32xf32> to vector<9x32xbf16>
    %92 = vector.extract_strided_slice %41 {offsets = [32, 0], sizes = [32, 128], strides = [1, 1]} : vector<128x128xbf16> to vector<32x128xbf16>
    %cst_37 = arith.constant dense<0.000000e+00> : vector<9x128xf32>
    %93 = tpu.matmul %91, %92, %cst_37 {dimension_numbers = #tpu.dot_dimension_numbers<[1], [0], [0], [1], [0, 0, 1, 1], [], []>} : vector<9x32xbf16>, vector<32x128xbf16>, vector<9x128xf32> -> vector<9x128xf32>
    %94 = arith.addf %68, %93 : vector<9x128xf32>
    %95 = vector.extract_strided_slice %32 {offsets = [0, 64], sizes = [9, 32], strides = [1, 1]} : vector<9x128xf32> to vector<9x32xf32>
    %96 = vector.extract_strided_slice %37 {offsets = [0, 64], sizes = [9, 32], strides = [1, 1]} : vector<9x128xf32> to vector<9x32xf32>
    %97 = vector.extract_strided_slice %24 {offsets = [0, 64], sizes = [9, 32], strides = [1, 1]} : vector<9x128xf32> to vector<9x32xf32>
    %98 = arith.truncf %95 : vector<9x32xf32> to vector<9x32xbf16>
    %99 = arith.truncf %96 : vector<9x32xf32> to vector<9x32xbf16>
    %cst_38 = arith.constant dense<0.000000e+00> : vector<9x9xf32>
    %100 = tpu.matmul %98, %99, %cst_38 {dimension_numbers = #tpu.dot_dimension_numbers<[1], [1], [0], [0], [0, 0, 1, 0], [], []>} : vector<9x32xbf16>, vector<9x32xbf16>, vector<9x9xf32> -> vector<9x9xf32>
    %cst_39 = arith.constant 0.176776692 : f32
    %101 = vector.broadcast %cst_39 : f32 to vector<9x9xf32>
    %102 = arith.mulf %100, %101 : vector<9x9xf32>
    %103 = arith.addf %102, %39 : vector<9x9xf32>
    %cst_40 = arith.constant dense<0xFF800000> : vector<9xf32>
    %104 = vector.multi_reduction <maximumf>, %103, %cst_40 [1] : vector<9x9xf32> to vector<9xf32>
    %105 = vector.shape_cast %104 : vector<9xf32> to vector<9x1xf32>
    %106 = vector.broadcast %105 : vector<9x1xf32> to vector<9x9xf32>
    %107 = arith.subf %103, %106 : vector<9x9xf32>
    %108 = math.exp %107 : vector<9x9xf32>
    %cst_41 = arith.constant dense<0.000000e+00> : vector<9xf32>
    %109 = vector.multi_reduction <add>, %108, %cst_41 [1] : vector<9x9xf32> to vector<9xf32>
    %110 = vector.shape_cast %109 : vector<9xf32> to vector<9x1xf32>
    %111 = tpu.reciprocal %110 {approx = true} : vector<9x1xf32> -> vector<9x1xf32>
    %112 = vector.broadcast %111 : vector<9x1xf32> to vector<9x9xf32>
    %113 = arith.mulf %108, %112 : vector<9x9xf32>
    %114 = arith.truncf %113 : vector<9x9xf32> to vector<9x9xbf16>
    %115 = arith.truncf %97 : vector<9x32xf32> to vector<9x32xbf16>
    %cst_42 = arith.constant dense<0.000000e+00> : vector<9x32xf32>
    %116 = tpu.matmul %114, %115, %cst_42 {dimension_numbers = #tpu.dot_dimension_numbers<[1], [0], [0], [1], [0, 0, 1, 1], [], []>} : vector<9x9xbf16>, vector<9x32xbf16>, vector<9x32xf32> -> vector<9x32xf32>
    %117 = arith.truncf %116 : vector<9x32xf32> to vector<9x32xbf16>
    %118 = vector.extract_strided_slice %41 {offsets = [64, 0], sizes = [32, 128], strides = [1, 1]} : vector<128x128xbf16> to vector<32x128xbf16>
    %cst_43 = arith.constant dense<0.000000e+00> : vector<9x128xf32>
    %119 = tpu.matmul %117, %118, %cst_43 {dimension_numbers = #tpu.dot_dimension_numbers<[1], [0], [0], [1], [0, 0, 1, 1], [], []>} : vector<9x32xbf16>, vector<32x128xbf16>, vector<9x128xf32> -> vector<9x128xf32>
    %120 = arith.addf %94, %119 : vector<9x128xf32>
    %121 = vector.extract_strided_slice %32 {offsets = [0, 96], sizes = [9, 32], strides = [1, 1]} : vector<9x128xf32> to vector<9x32xf32>
    %122 = vector.extract_strided_slice %37 {offsets = [0, 96], sizes = [9, 32], strides = [1, 1]} : vector<9x128xf32> to vector<9x32xf32>
    %123 = vector.extract_strided_slice %24 {offsets = [0, 96], sizes = [9, 32], strides = [1, 1]} : vector<9x128xf32> to vector<9x32xf32>
    %124 = arith.truncf %121 : vector<9x32xf32> to vector<9x32xbf16>
    %125 = arith.truncf %122 : vector<9x32xf32> to vector<9x32xbf16>
    %cst_44 = arith.constant dense<0.000000e+00> : vector<9x9xf32>
    %126 = tpu.matmul %124, %125, %cst_44 {dimension_numbers = #tpu.dot_dimension_numbers<[1], [1], [0], [0], [0, 0, 1, 0], [], []>} : vector<9x32xbf16>, vector<9x32xbf16>, vector<9x9xf32> -> vector<9x9xf32>
    %cst_45 = arith.constant 0.176776692 : f32
    %127 = vector.broadcast %cst_45 : f32 to vector<9x9xf32>
    %128 = arith.mulf %126, %127 : vector<9x9xf32>
    %129 = arith.addf %128, %39 : vector<9x9xf32>
    %cst_46 = arith.constant dense<0xFF800000> : vector<9xf32>
    %130 = vector.multi_reduction <maximumf>, %129, %cst_46 [1] : vector<9x9xf32> to vector<9xf32>
    %131 = vector.shape_cast %130 : vector<9xf32> to vector<9x1xf32>
    %132 = vector.broadcast %131 : vector<9x1xf32> to vector<9x9xf32>
    %133 = arith.subf %129, %132 : vector<9x9xf32>
    %134 = math.exp %133 : vector<9x9xf32>
    %cst_47 = arith.constant dense<0.000000e+00> : vector<9xf32>
    %135 = vector.multi_reduction <add>, %134, %cst_47 [1] : vector<9x9xf32> to vector<9xf32>
    %136 = vector.shape_cast %135 : vector<9xf32> to vector<9x1xf32>
    %137 = tpu.reciprocal %136 {approx = true} : vector<9x1xf32> -> vector<9x1xf32>
    %138 = vector.broadcast %137 : vector<9x1xf32> to vector<9x9xf32>
    %139 = arith.mulf %134, %138 : vector<9x9xf32>
    %140 = arith.truncf %139 : vector<9x9xf32> to vector<9x9xbf16>
    %141 = arith.truncf %123 : vector<9x32xf32> to vector<9x32xbf16>
    %cst_48 = arith.constant dense<0.000000e+00> : vector<9x32xf32>
    %142 = tpu.matmul %140, %141, %cst_48 {dimension_numbers = #tpu.dot_dimension_numbers<[1], [0], [0], [1], [0, 0, 1, 1], [], []>} : vector<9x9xbf16>, vector<9x32xbf16>, vector<9x32xf32> -> vector<9x32xf32>
    %143 = arith.truncf %142 : vector<9x32xf32> to vector<9x32xbf16>
    %144 = vector.extract_strided_slice %41 {offsets = [96, 0], sizes = [32, 128], strides = [1, 1]} : vector<128x128xbf16> to vector<32x128xbf16>
    %cst_49 = arith.constant dense<0.000000e+00> : vector<9x128xf32>
    %145 = tpu.matmul %143, %144, %cst_49 {dimension_numbers = #tpu.dot_dimension_numbers<[1], [0], [0], [1], [0, 0, 1, 1], [], []>} : vector<9x32xbf16>, vector<32x128xbf16>, vector<9x128xf32> -> vector<9x128xf32>
    %146 = arith.addf %120, %145 : vector<9x128xf32>
    %147 = arith.addf %3, %146 : vector<9x128xf32>
    %c0_50 = arith.constant 0 : index
    %c0_51 = arith.constant 0 : index
    %c0_52 = arith.constant 0 : index
    %148 = vector.load %arg8[%c0_50, %c0_51, %c0_52] : memref<1x1x128xf32, #tpu.memory_space<vmem>>, vector<1x1x128xf32>
    %149 = vector.shape_cast %148 : vector<1x1x128xf32> to vector<1x128xf32>
    %150 = arith.mulf %147, %147 : vector<9x128xf32>
    %cst_53 = arith.constant dense<0.000000e+00> : vector<9xf32>
    %151 = vector.multi_reduction <add>, %150, %cst_53 [1] : vector<9x128xf32> to vector<9xf32>
    %152 = vector.shape_cast %151 : vector<9xf32> to vector<9x1xf32>
    %cst_54 = arith.constant 1.280000e+02 : f32
    %153 = vector.broadcast %cst_54 : f32 to vector<9x1xf32>
    %154 = arith.divf %152, %153 : vector<9x1xf32>
    %cst_55 = arith.constant 9.99999997E-7 : f32
    %155 = vector.broadcast %cst_55 : f32 to vector<9x1xf32>
    %156 = arith.addf %154, %155 : vector<9x1xf32>
    %157 = math.rsqrt %156 : vector<9x1xf32>
    %158 = vector.broadcast %157 : vector<9x1xf32> to vector<9x128xf32>
    %159 = arith.mulf %147, %158 : vector<9x128xf32>
    %160 = vector.broadcast %149 : vector<1x128xf32> to vector<9x128xf32>
    %161 = arith.mulf %159, %160 : vector<9x128xf32>
    %162 = arith.truncf %161 : vector<9x128xf32> to vector<9x128xbf16>
    %c0_56 = arith.constant 0 : index
    %c0_57 = arith.constant 0 : index
    %c0_58 = arith.constant 0 : index
    %163 = vector.load %arg11[%c0_56, %c0_57, %c0_58] : memref<1x128x512xbf16, #tpu.memory_space<vmem>>, vector<1x128x512xbf16>
    %164 = vector.shape_cast %163 : vector<1x128x512xbf16> to vector<128x512xbf16>
    %cst_59 = arith.constant dense<0.000000e+00> : vector<9x512xf32>
    %165 = tpu.matmul %162, %164, %cst_59 {dimension_numbers = #tpu.dot_dimension_numbers<[1], [0], [0], [1], [0, 0, 1, 1], [], []>} : vector<9x128xbf16>, vector<128x512xbf16>, vector<9x512xf32> -> vector<9x512xf32>
    %166 = vector.extract_strided_slice %165 {offsets = [0, 0], sizes = [9, 256], strides = [1, 1]} : vector<9x512xf32> to vector<9x256xf32>
    %167 = vector.extract_strided_slice %165 {offsets = [0, 256], sizes = [9, 256], strides = [1, 1]} : vector<9x512xf32> to vector<9x256xf32>
    %cst_60 = arith.constant 0.000000e+00 : f32
    %168 = vector.broadcast %cst_60 : f32 to vector<9x256xf32>
    %169 = arith.subf %168, %166 : vector<9x256xf32>
    %170 = math.exp %169 : vector<9x256xf32>
    %cst_61 = arith.constant 1.000000e+00 : f32
    %171 = vector.broadcast %cst_61 : f32 to vector<9x256xf32>
    %172 = arith.addf %171, %170 : vector<9x256xf32>
    %173 = tpu.reciprocal %172 {approx = true} : vector<9x256xf32> -> vector<9x256xf32>
    %174 = arith.mulf %166, %173 : vector<9x256xf32>
    %175 = arith.mulf %174, %167 : vector<9x256xf32>
    %176 = arith.truncf %175 : vector<9x256xf32> to vector<9x256xbf16>
    %c0_62 = arith.constant 0 : index
    %c0_63 = arith.constant 0 : index
    %c0_64 = arith.constant 0 : index
    %177 = vector.load %arg12[%c0_62, %c0_63, %c0_64] : memref<1x256x128xbf16, #tpu.memory_space<vmem>>, vector<1x256x128xbf16>
    %178 = vector.shape_cast %177 : vector<1x256x128xbf16> to vector<256x128xbf16>
    %cst_65 = arith.constant dense<0.000000e+00> : vector<9x128xf32>
    %179 = tpu.matmul %176, %178, %cst_65 {dimension_numbers = #tpu.dot_dimension_numbers<[1], [0], [0], [1], [0, 0, 1, 1], [], []>} : vector<9x256xbf16>, vector<256x128xbf16>, vector<9x128xf32> -> vector<9x128xf32>
    %180 = arith.addf %147, %179 : vector<9x128xf32>
    %c0_66 = arith.constant 0 : index
    %c0_67 = arith.constant 0 : index
    %181 = vector.load %arg16[%c0_66, %c0_67] : memref<9x128xf32, #tpu.memory_space<vmem>>, vector<9x128xf32>
    tpu.vector_store %arg16[%c0_66, %c0_67], %180 {strides = array<i32>} : memref<9x128xf32, #tpu.memory_space<vmem>>, vector<9x128xf32>,
    %c1_i32 = arith.constant 1 : i32
    %182 = arith.cmpi eq, %arg1, %c1_i32 : i32
    %183 = arith.extui %182 : i1 to i32
    %c0_i32_68 = arith.constant 0 : i32
    %184 = arith.cmpi ne, %183, %c0_i32_68 : i32
    scf.if %184 {
      %c0_69 = arith.constant 0 : index
      %c0_70 = arith.constant 0 : index
      %185 = vector.load %arg13[%c0_69, %c0_70] : memref<1x128xf32, #tpu.memory_space<vmem>>, vector<1x128xf32>
      %186 = arith.mulf %180, %180 : vector<9x128xf32>
      %cst_71 = arith.constant dense<0.000000e+00> : vector<9xf32>
      %187 = vector.multi_reduction <add>, %186, %cst_71 [1] : vector<9x128xf32> to vector<9xf32>
      %188 = vector.shape_cast %187 : vector<9xf32> to vector<9x1xf32>
      %cst_72 = arith.constant 1.280000e+02 : f32
      %189 = vector.broadcast %cst_72 : f32 to vector<9x1xf32>
      %190 = arith.divf %188, %189 : vector<9x1xf32>
      %cst_73 = arith.constant 9.99999997E-7 : f32
      %191 = vector.broadcast %cst_73 : f32 to vector<9x1xf32>
      %192 = arith.addf %190, %191 : vector<9x1xf32>
      %193 = math.rsqrt %192 : vector<9x1xf32>
      %194 = vector.broadcast %193 : vector<9x1xf32> to vector<9x128xf32>
      %195 = arith.mulf %180, %194 : vector<9x128xf32>
      %196 = vector.broadcast %185 : vector<1x128xf32> to vector<9x128xf32>
      %197 = arith.mulf %195, %196 : vector<9x128xf32>
      %198 = arith.truncf %197 : vector<9x128xf32> to vector<9x128xbf16>
      %c0_74 = arith.constant 0 : index
      %c0_75 = arith.constant 0 : index
      %199 = vector.load %arg14[%c0_74, %c0_75] : memref<128x256xbf16, #tpu.memory_space<vmem>>, vector<128x256xbf16>
      %cst_76 = arith.constant dense<0.000000e+00> : vector<9x256xf32>
      %200 = tpu.matmul %198, %199, %cst_76 {dimension_numbers = #tpu.dot_dimension_numbers<[1], [0], [0], [1], [0, 0, 1, 1], [], []>} : vector<9x128xbf16>, vector<128x256xbf16>, vector<9x256xf32> -> vector<9x256xf32>
      %c0_77 = arith.constant 0 : index
      %c0_78 = arith.constant 0 : index
      %c0_79 = arith.constant 0 : index
      %201 = vector.load %arg15[%c0_77, %c0_78, %c0_79] : memref<1x9x256xf32, #tpu.memory_space<vmem>>, vector<1x9x256xf32>
      %202 = vector.shape_cast %201 : vector<1x9x256xf32> to vector<9x256xf32>
      %203 = vector.shape_cast %200 : vector<9x256xf32> to vector<1x9x256xf32>
      tpu.vector_store %arg15[%c0_77, %c0_78, %c0_79], %203 {strides = array<i32>} : memref<1x9x256xf32, #tpu.memory_space<vmem>>, vector<1x9x256xf32>,
    } else {
    }
    return
  }
  func.func @transform_0(%arg0: i32, %arg1: i32) -> (i32, i32, i32) {
    %c0_i32 = arith.constant 0 : i32
    %c0_i32_0 = arith.constant 0 : i32
    %c0_i32_1 = arith.constant 0 : i32
    return %arg0, %c0_i32, %c0_i32_0 : i32, i32, i32
  }
  func.func @transform_1(%arg0: i32, %arg1: i32) -> (i32, i32, i32) {
    %c0_i32 = arith.constant 0 : i32
    %c0_i32_0 = arith.constant 0 : i32
    %c0_i32_1 = arith.constant 0 : i32
    return %arg0, %c0_i32, %c0_i32_0 : i32, i32, i32
  }
  func.func @transform_2(%arg0: i32, %arg1: i32) -> (i32, i32) {
    %c0_i32 = arith.constant 0 : i32
    %c0_i32_0 = arith.constant 0 : i32
    %c0_i32_1 = arith.constant 0 : i32
    return %c0_i32, %c0_i32_0 : i32, i32
  }
  func.func @transform_3(%arg0: i32, %arg1: i32) -> (i32, i32) {
    %c0_i32 = arith.constant 0 : i32
    %c0_i32_0 = arith.constant 0 : i32
    %c0_i32_1 = arith.constant 0 : i32
    return %c0_i32, %c0_i32_0 : i32, i32
  }
  func.func @transform_4(%arg0: i32, %arg1: i32) -> (i32, i32) {
    %c0_i32 = arith.constant 0 : i32
    %c0_i32_0 = arith.constant 0 : i32
    %c0_i32_1 = arith.constant 0 : i32
    return %c0_i32, %c0_i32_0 : i32, i32
  }
  func.func @transform_5(%arg0: i32, %arg1: i32) -> (i32, i32, i32) {
    %c0_i32 = arith.constant 0 : i32
    %c0_i32_0 = arith.constant 0 : i32
    %c0_i32_1 = arith.constant 0 : i32
    return %arg1, %c0_i32, %c0_i32_0 : i32, i32, i32
  }
  func.func @transform_6(%arg0: i32, %arg1: i32) -> (i32, i32, i32) {
    %c0_i32 = arith.constant 0 : i32
    %c0_i32_0 = arith.constant 0 : i32
    %c0_i32_1 = arith.constant 0 : i32
    return %arg1, %c0_i32, %c0_i32_0 : i32, i32, i32
  }
  func.func @transform_7(%arg0: i32, %arg1: i32) -> (i32, i32, i32) {
    %c0_i32 = arith.constant 0 : i32
    %c0_i32_0 = arith.constant 0 : i32
    %c0_i32_1 = arith.constant 0 : i32
    return %arg1, %c0_i32, %c0_i32_0 : i32, i32, i32
  }
  func.func @transform_8(%arg0: i32, %arg1: i32) -> (i32, i32, i32) {
    %c0_i32 = arith.constant 0 : i32
    %c0_i32_0 = arith.constant 0 : i32
    %c0_i32_1 = arith.constant 0 : i32
    return %arg1, %c0_i32, %c0_i32_0 : i32, i32, i32
  }
  func.func @transform_9(%arg0: i32, %arg1: i32) -> (i32, i32, i32) {
    %c0_i32 = arith.constant 0 : i32
    %c0_i32_0 = arith.constant 0 : i32
    %c0_i32_1 = arith.constant 0 : i32
    return %arg1, %c0_i32, %c0_i32_0 : i32, i32, i32
  }
  func.func @transform_10(%arg0: i32, %arg1: i32) -> (i32, i32, i32) {
    %c0_i32 = arith.constant 0 : i32
    %c0_i32_0 = arith.constant 0 : i32
    %c0_i32_1 = arith.constant 0 : i32
    return %arg1, %c0_i32, %c0_i32_0 : i32, i32, i32
  }
  func.func @transform_11(%arg0: i32, %arg1: i32) -> (i32, i32) {
    %c0_i32 = arith.constant 0 : i32
    %c0_i32_0 = arith.constant 0 : i32
    %c0_i32_1 = arith.constant 0 : i32
    return %c0_i32, %c0_i32_0 : i32, i32
  }
  func.func @transform_12(%arg0: i32, %arg1: i32) -> (i32, i32) {
    %c0_i32 = arith.constant 0 : i32
    %c0_i32_0 = arith.constant 0 : i32
    %c0_i32_1 = arith.constant 0 : i32
    return %c0_i32, %c0_i32_0 : i32, i32
  }
  func.func @transform_13(%arg0: i32, %arg1: i32) -> (i32, i32, i32) {
    %c0_i32 = arith.constant 0 : i32
    %c0_i32_0 = arith.constant 0 : i32
    %c0_i32_1 = arith.constant 0 : i32
    return %arg0, %c0_i32, %c0_i32_0 : i32, i32, i32
  }
}

</mosaic_0001>

<llo_original>
// kernel: tile.14
$region0: #{tile.14}
  %s0 = inlined_call_operand.vmem [shape: f32[9,4,32], index: 0, kind: input, shape index: {}]
  %s1 = inlined_call_operand.vmem [shape: f32[9,128], index: 1, kind: output, shape index: {}]
  $region1: #{tile.14} parent=0
    #allocation0 [shape = 'u8[36864]{0}', space=vmem, size = 0x9000, scoped, tag = 'scoped mem for input reshape']
    %s3 = sshllo.u32 0, 4
    %s4 = smul.addr 4, 8
    %s5 = scalar_lea.vmem %s0, %s4
    %v6 = vld [vmem:[%s5] sm:%s3]
    %s7 = scalar_lea.vmem [#allocation0], 64
    %8 = vst [vmem:[%s7] sm:%s3] %v6
    %s9 = smul.addr 4, 7
    %s10 = scalar_lea.vmem %s0, %s9
    %v11 = vld [vmem:[%s10] sm:%s3]
    %s12 = scalar_lea.vmem [#allocation0], 56
    %13 = vst [vmem:[%s12] sm:%s3] %v11
    %s14 = smul.addr 4, 6
    %s15 = scalar_lea.vmem %s0, %s14
    %v16 = vld [vmem:[%s15] sm:%s3]
    %s17 = scalar_lea.vmem [#allocation0], 48
    %18 = vst [vmem:[%s17] sm:%s3] %v16
    %s19 = smul.addr 4, 5
    %s20 = scalar_lea.vmem %s0, %s19
    %v21 = vld [vmem:[%s20] sm:%s3]
    %s22 = scalar_lea.vmem [#allocation0], 40
    %23 = vst [vmem:[%s22] sm:%s3] %v21
    %s24 = smul.addr 4, 4
    %s25 = scalar_lea.vmem %s0, %s24
    %v26 = vld [vmem:[%s25] sm:%s3]
    %s27 = scalar_lea.vmem [#allocation0], 32
    %28 = vst [vmem:[%s27] sm:%s3] %v26
    %s29 = smul.addr 4, 3
    %s30 = scalar_lea.vmem %s0, %s29
    %v31 = vld [vmem:[%s30] sm:%s3]
    %s32 = scalar_lea.vmem [#allocation0], 24
    %33 = vst [vmem:[%s32] sm:%s3] %v31
    %s34 = smul.addr 4, 2
    %s35 = scalar_lea.vmem %s0, %s34
    %v36 = vld [vmem:[%s35] sm:%s3]
    %s37 = scalar_lea.vmem [#allocation0], 16
    %38 = vst [vmem:[%s37] sm:%s3] %v36
    %s39 = scalar_lea.vmem %s0, 4
    %v40 = vld [vmem:[%s39] sm:%s3]
    %s41 = scalar_lea.vmem [#allocation0], 8
    %42 = vst [vmem:[%s41] sm:%s3] %v40
    %v43 = vld [vmem:[%s0] sm:%s3]
    %44 = vst [vmem:[#allocation0] sm:%s3] %v43
    %v45 = vld [vmem:[#allocation0] ss:$8 sm:$0xf]
    %v46 = vld [vmem:[#allocation0] ss:$8 sm:$0xf0]
    %vm47 = vcmask 1047556
    %v48 = vsel %vm47, %v46, %v45
    %vm49 = vcmask 261120
    %50 = vst.msk [vmem:[%s1] sm:$0xff] %vm49, %v48
    %s51 = scalar_lea.vmem [#allocation0], 64
    %v52 = vld [vmem:[%s51] sm:$0x1]
    %vm53 = vcmask 261120
    %s54 = scalar_lea.vmem %s1, 8
    %55 = vst.msk [vmem:[%s54] sm:$0x1] %vm53, %v52
    %s56 = scalar_lea.vmem [#allocation0], 3
    %v57 = vld [vmem:[%s56] ss:$8 sm:$0xf]
    %s58 = scalar_lea.vmem [#allocation0], 3
    %v59 = vld [vmem:[%s58] ss:$8 sm:$0xf0]
    %vm60 = vcmask 1047556
    %v61 = vsel %vm60, %v59, %v57
    %62 = vrot.lane.b32.xlu0 %v61, 96
    %v63 = vpop.permute.xlu0 %62
    %vm64 = vcmask 1048320
    %65 = vst.msk [vmem:[%s1] sm:$0xff] %vm64, %v63
    %s66 = scalar_lea.vmem [#allocation0], 67
    %v67 = vld [vmem:[%s66] sm:$0x1]
    %68 = vrot.lane.b32.xlu0 %v67, 96
    %v69 = vpop.permute.xlu0 %68
    %vm70 = vcmask 1048320
    %s71 = scalar_lea.vmem %s1, 8
    %72 = vst.msk [vmem:[%s71] sm:$0x1] %vm70, %v69
    %s73 = scalar_lea.vmem [#allocation0], 2
    %v74 = vld [vmem:[%s73] ss:$8 sm:$0xf]
    %s75 = scalar_lea.vmem [#allocation0], 2
    %v76 = vld [vmem:[%s75] ss:$8 sm:$0xf0]
    %vm77 = vcmask 1047556
    %v78 = vsel %vm77, %v76, %v74
    %79 = vrot.lane.b32.xlu0 %v78, 64
    %v80 = vpop.permute.xlu0 %79
    %vm81 = vcmask 785920
    %82 = vst.msk [vmem:[%s1] sm:$0xff] %vm81, %v80
    %s83 = scalar_lea.vmem [#allocation0], 66
    %v84 = vld [vmem:[%s83] sm:$0x1]
    %85 = vrot.lane.b32.xlu0 %v84, 64
    %v86 = vpop.permute.xlu0 %85
    %vm87 = vcmask 785920
    %s88 = scalar_lea.vmem %s1, 8
    %89 = vst.msk [vmem:[%s88] sm:$0x1] %vm87, %v86
    %s90 = scalar_lea.vmem [#allocation0], 1
    %v91 = vld [vmem:[%s90] ss:$8 sm:$0xf]
    %s92 = scalar_lea.vmem [#allocation0], 1
    %v93 = vld [vmem:[%s92] ss:$8 sm:$0xf0]
    %vm94 = vcmask 1047556
    %v95 = vsel %vm94, %v93, %v91
    %96 = vrot.lane.b32.xlu0 %v95, 32
    %v97 = vpop.permute.xlu0 %96
    %vm98 = vcmask 523520
    %99 = vst.msk [vmem:[%s1] sm:$0xff] %vm98, %v97
    %s100 = scalar_lea.vmem [#allocation0], 65
    %v101 = vld [vmem:[%s100] sm:$0x1]
    %102 = vrot.lane.b32.xlu0 %v101, 32
    %v103 = vpop.permute.xlu0 %102
    %vm104 = vcmask 523520
    %s105 = scalar_lea.vmem %s1, 8
    %106 = vst.msk [vmem:[%s105] sm:$0x1] %vm104, %v103

// kernel: multimodal_forward.2
$region0: #{multimodal_forward.2}
  #allocation0 [shape = 'u32[]', space=smem, size = 0x4, offset = 0x4, fixed_abs, tag = 'smem constant byte address 0x4 - core index']
  #allocation1 [shape = 'u32[144,128]{1,0:T(1,128)}', space=vmem, size = 0x12000, scoped, tag = 'internal scratch']
  %s0 = inlined_call_operand.vmem [shape: f32[512,27], index: 0, kind: input, shape index: {}]
  %s1 = inlined_call_operand.vmem [shape: bf16[27,128], index: 1, kind: input, shape index: {}]
  %s2 = inlined_call_operand.vmem [shape: f32[1,128], index: 2, kind: input, shape index: {}]
  %s3 = inlined_call_operand.vmem [shape: f32[2,512], index: 3, kind: input, shape index: {}]
  %s4 = inlined_call_operand.vmem [shape: bf16[128,128], index: 4, kind: input, shape index: {}]
  %s5 = inlined_call_operand.vmem [shape: f32[1,128], index: 5, kind: input, shape index: {}]
  %s6 = inlined_call_operand.vmem [shape: f32[2,128], index: 6, kind: output, shape index: {}]
  %s7 = sld [smem:[#allocation0]]
  $region34: #{multimodal_forward.2} parent=0
    _
  %s9 = ssub.s32 1, %s7
  %s10 = scalar_select 0, %s9, %s7
  // Predicated region
  $region2: #{multimodal_forward.2} parent=0 // pred_check
    _
  $region3: #{multimodal_forward.2} parent=0 // pred_check_branch
    %12 = sbr.rel (0) target = $region5
  $region4: #{multimodal_forward.2} parent=0 // pred_region
    _
  $region5: #{multimodal_forward.2} parent=0 // pred_fallthru
    _
  // Predicated region
  $region6: #{multimodal_forward.2} parent=0 // pred_check
    _
  $region7: #{multimodal_forward.2} parent=0 // pred_check_branch
    %14 = sbr.rel (0) target = $region9
  $region8: #{multimodal_forward.2} parent=0 // pred_region
    _
  $region9: #{multimodal_forward.2} parent=0 // pred_fallthru
    _
  // Predicated region
  $region10: #{multimodal_forward.2} parent=0 // pred_check
    _
  $region11: #{multimodal_forward.2} parent=0 // pred_check_branch
    %16 = sbr.rel (0) target = $region13
  $region12: #{multimodal_forward.2} parent=0 // pred_region
    _
  $region13: #{multimodal_forward.2} parent=0 // pred_fallthru
    _
  // Predicated region
  $region14: #{multimodal_forward.2} parent=0 // pred_check
    _
  $region15: #{multimodal_forward.2} parent=0 // pred_check_branch
    %18 = sbr.rel (0) target = $region17
  $region16: #{multimodal_forward.2} parent=0 // pred_region
    _
  $region17: #{multimodal_forward.2} parent=0 // pred_fallthru
    _
  // Predicated region
  $region18: #{multimodal_forward.2} parent=0 // pred_check
    _
  $region19: #{multimodal_forward.2} parent=0 // pred_check_branch
    %20 = sbr.rel (0) target = $region21
  $region20: #{multimodal_forward.2} parent=0 // pred_region
    _
  $region21: #{multimodal_forward.2} parent=0 // pred_fallthru
    _
  // Predicated region
  $region22: #{multimodal_forward.2} parent=0 // pred_check
    _
  $region23: #{multimodal_forward.2} parent=0 // pred_check_branch
    %22 = sbr.rel (0) target = $region25
  $region24: #{multimodal_forward.2} parent=0 // pred_region
    _
  $region25: #{multimodal_forward.2} parent=0 // pred_fallthru
    _
  %v24 = vld [vmem:[%s0] sm:$0xff]
  %v25 = vld [vmem:[%s0 + $0x8] sm:$0xff]
  %v26 = vld [vmem:[%s0 + $0x10] sm:$0xff]
  %v27 = vld [vmem:[%s0 + $0x18] sm:$0xff]
  %v28 = vld [vmem:[%s0 + $0x20] sm:$0xff]
  %v29 = vld [vmem:[%s0 + $0x28] sm:$0xff]
  %v30 = vld [vmem:[%s0 + $0x30] sm:$0xff]
  %v31 = vld [vmem:[%s0 + $0x38] sm:$0xff]
  %v32 = vld [vmem:[%s0 + $0x40] sm:$0xff]
  %v33 = vld [vmem:[%s0 + $0x48] sm:$0xff]
  %v34 = vld [vmem:[%s0 + $0x50] sm:$0xff]
  %v35 = vld [vmem:[%s0 + $0x58] sm:$0xff]
  %v36 = vld [vmem:[%s0 + $0x60] sm:$0xff]
  %v37 = vld [vmem:[%s0 + $0x68] sm:$0xff]
  %v38 = vld [vmem:[%s0 + $0x70] sm:$0xff]
  %v39 = vld [vmem:[%s0 + $0x78] sm:$0xff]
  %v40 = vld [vmem:[%s0 + $0x80] sm:$0xff]
  %v41 = vld [vmem:[%s0 + $0x88] sm:$0xff]
  %v42 = vld [vmem:[%s0 + $0x90] sm:$0xff]
  %v43 = vld [vmem:[%s0 + $0x98] sm:$0xff]
  %v44 = vld [vmem:[%s0 + $0xa0] sm:$0xff]
  %v45 = vld [vmem:[%s0 + $0xa8] sm:$0xff]
  %v46 = vld [vmem:[%s0 + $0xb0] sm:$0xff]
  %v47 = vld [vmem:[%s0 + $0xb8] sm:$0xff]
  %v48 = vld [vmem:[%s0 + $0xc0] sm:$0xff]
  %v49 = vld [vmem:[%s0 + $0xc8] sm:$0xff]
  %v50 = vld [vmem:[%s0 + $0xd0] sm:$0xff]
  %v51 = vld [vmem:[%s0 + $0xd8] sm:$0xff]
  %v52 = vld [vmem:[%s0 + $0xe0] sm:$0xff]
  %v53 = vld [vmem:[%s0 + $0xe8] sm:$0xff]
  %v54 = vld [vmem:[%s0 + $0xf0] sm:$0xff]
  %v55 = vld [vmem:[%s0 + $0xf8] sm:$0xff]
  %v56 = vld [vmem:[%s0 + $0x100] sm:$0xff]
  %v57 = vld [vmem:[%s0 + $0x108] sm:$0xff]
  %v58 = vld [vmem:[%s0 + $0x110] sm:$0xff]
  %v59 = vld [vmem:[%s0 + $0x118] sm:$0xff]
  %v60 = vld [vmem:[%s0 + $0x120] sm:$0xff]
  %v61 = vld [vmem:[%s0 + $0x128] sm:$0xff]
  %v62 = vld [vmem:[%s0 + $0x130] sm:$0xff]
  %v63 = vld [vmem:[%s0 + $0x138] sm:$0xff]
  %v64 = vld [vmem:[%s0 + $0x140] sm:$0xff]
  %v65 = vld [vmem:[%s0 + $0x148] sm:$0xff]
  %v66 = vld [vmem:[%s0 + $0x150] sm:$0xff]
  %v67 = vld [vmem:[%s0 + $0x158] sm:$0xff]
  %v68 = vld [vmem:[%s0 + $0x160] sm:$0xff]
  %v69 = vld [vmem:[%s0 + $0x168] sm:$0xff]
  %v70 = vld [vmem:[%s0 + $0x170] sm:$0xff]
  %v71 = vld [vmem:[%s0 + $0x178] sm:$0xff]
  %v72 = vld [vmem:[%s0 + $0x180] sm:$0xff]
  %v73 = vld [vmem:[%s0 + $0x188] sm:$0xff]
  %v74 = vld [vmem:[%s0 + $0x190] sm:$0xff]
  %v75 = vld [vmem:[%s0 + $0x198] sm:$0xff]
  %v76 = vld [vmem:[%s0 + $0x1a0] sm:$0xff]
  %v77 = vld [vmem:[%s0 + $0x1a8] sm:$0xff]
  %v78 = vld [vmem:[%s0 + $0x1b0] sm:$0xff]
  %v79 = vld [vmem:[%s0 + $0x1b8] sm:$0xff]
  %v80 = vld [vmem:[%s0 + $0x1c0] sm:$0xff]
  %v81 = vld [vmem:[%s0 + $0x1c8] sm:$0xff]
  %v82 = vld [vmem:[%s0 + $0x1d0] sm:$0xff]
  %v83 = vld [vmem:[%s0 + $0x1d8] sm:$0xff]
  %v84 = vld [vmem:[%s0 + $0x1e0] sm:$0xff]
  %v85 = vld [vmem:[%s0 + $0x1e8] sm:$0xff]
  %v86 = vld [vmem:[%s0 + $0x1f0] sm:$0xff]
  %v87 = vld [vmem:[%s0 + $0x1f8] sm:$0xff]
  %v88 = vpack.c.bf16 %v25, %v24
  %v89 = vpack.c.bf16 %v27, %v26
  %v90 = vpack.c.bf16 %v29, %v28
  %v91 = vpack.c.bf16 %v31, %v30
  %v92 = vpack.c.bf16 %v33, %v32
  %v93 = vpack.c.bf16 %v35, %v34
  %v94 = vpack.c.bf16 %v37, %v36
  %v95 = vpack.c.bf16 %v39, %v38
  %v96 = vpack.c.bf16 %v41, %v40
  %v97 = vpack.c.bf16 %v43, %v42
  %v98 = vpack.c.bf16 %v45, %v44
  %v99 = vpack.c.bf16 %v47, %v46
  %v100 = vpack.c.bf16 %v49, %v48
  %v101 = vpack.c.bf16 %v51, %v50
  %v102 = vpack.c.bf16 %v53, %v52
  %v103 = vpack.c.bf16 %v55, %v54
  %v104 = vpack.c.bf16 %v57, %v56
  %v105 = vpack.c.bf16 %v59, %v58
  %v106 = vpack.c.bf16 %v61, %v60
  %v107 = vpack.c.bf16 %v63, %v62
  %v108 = vpack.c.bf16 %v65, %v64
  %v109 = vpack.c.bf16 %v67, %v66
  %v110 = vpack.c.bf16 %v69, %v68
  %v111 = vpack.c.bf16 %v71, %v70
  %v112 = vpack.c.bf16 %v73, %v72
  %v113 = vpack.c.bf16 %v75, %v74
  %v114 = vpack.c.bf16 %v77, %v76
  %v115 = vpack.c.bf16 %v79, %v78
  %v116 = vpack.c.bf16 %v81, %v80
  %v117 = vpack.c.bf16 %v83, %v82
  %v118 = vpack.c.bf16 %v85, %v84
  %v119 = vpack.c.bf16 %v87, %v86
  %v120 = vld [vmem:[%s1] sm:$0xf]
  %v121 = vld [vmem:[%s1 + $0x4] sm:$0xf]
  %v122 = vld [vmem:[%s1 + $0x8] sm:$0xf]
  %v123 = vld [vmem:[%s1 + $0xc] sm:$0x3]
  %v124 = vld [vmem:[%s2] sm:$0x1]
  %v126 = vlaneseq
  %v127 = vshrl.u32 %v126, 7
  %v128 = vsub.s32 0, %v127
  %v129 = vrot.slane %v124, %v128
  %v135 = vunpack.c.l.b16 %v120
  %v136 = vunpack.c.l.b16 %v121
  %v137 = vunpack.c.l.b16 %v122
  %v138 = vunpack.c.l.b16 %v123
  %v139 = vpack.c.b16 %v136, %v135
  %v140 = vpack.c.b16 %v138, %v137
  %vm142 = vcmask 220160
  %v144 = vsel %vm142, %v88, 0
  %v147 = vsel %vm142, %v89, 0
  %v150 = vsel %vm142, %v90, 0
  %v153 = vsel %vm142, %v91, 0
  %v156 = vsel %vm142, %v92, 0
  %v159 = vsel %vm142, %v93, 0
  %v162 = vsel %vm142, %v94, 0
  %v165 = vsel %vm142, %v95, 0
  %v168 = vsel %vm142, %v96, 0
  %v171 = vsel %vm142, %v97, 0
  %v174 = vsel %vm142, %v98, 0
  %v177 = vsel %vm142, %v99, 0
  %v180 = vsel %vm142, %v100, 0
  %v183 = vsel %vm142, %v101, 0
  %v186 = vsel %vm142, %v102, 0
  %v189 = vsel %vm142, %v103, 0
  %v192 = vsel %vm142, %v104, 0
  %v195 = vsel %vm142, %v105, 0
  %v198 = vsel %vm142, %v106, 0
  %v201 = vsel %vm142, %v107, 0
  %v204 = vsel %vm142, %v108, 0
  %v207 = vsel %vm142, %v109, 0
  %v210 = vsel %vm142, %v110, 0
  %v213 = vsel %vm142, %v111, 0
  %v216 = vsel %vm142, %v112, 0
  %v219 = vsel %vm142, %v113, 0
  %v222 = vsel %vm142, %v114, 0
  %v225 = vsel %vm142, %v115, 0
  %v228 = vsel %vm142, %v116, 0
  %v231 = vsel %vm142, %v117, 0
  %v234 = vsel %vm142, %v118, 0
  %v237 = vsel %vm142, %v119, 0
  %vm239 = vcmask 1044480
  %vm240 = vcmask 1045504
  %v241 = vsel %vm239, 4294967295, 65535
  %v242 = vsel %vm240, %v241, 0
  %v244 = vand.u32 %v140, %v242
  %246 = vmatprep.subr.bf16.mxu0 0
  %247 = vmatpush1.bf16.msra.mxu0 %v139
  %248 = vmatprep.subr.bf16.mxu0 0
  %249 = vmatpush1.bf16.msra.mxu0 %v244
  %250 = vmatprep.subr.bf16.mxu0 0
  %251 = vmatpush1.bf16.msra.mxu0 0
  %252 = vmatprep.subr.bf16.mxu0 0
  %253 = vmatpush1.bf16.msra.mxu0 0
  %254 = vmatprep.subr.bf16.mxu0 0
  %255 = vmatpush1.bf16.msra.mxu0 0
  %256 = vmatprep.subr.bf16.mxu0 0
  %257 = vmatpush1.bf16.msra.mxu0 0
  %258 = vmatprep.subr.bf16.mxu0 0
  %259 = vmatpush1.bf16.msra.mxu0 0
  %260 = vmatprep.subr.bf16.mxu0 0
  %261 = vmatpush1.bf16.msra.mxu0 0
  %262 = vmatprep.subr.bf16.mxu0 0
  %263 = vmatpush1.bf16.msra.mxu0 0
  %264 = vmatprep.subr.bf16.mxu0 0
  %265 = vmatpush1.bf16.msra.mxu0 0
  %266 = vmatprep.subr.bf16.mxu0 0
  %267 = vmatpush1.bf16.msra.mxu0 0
  %268 = vmatprep.subr.bf16.mxu0 0
  %269 = vmatpush1.bf16.msra.mxu0 0
  %270 = vmatprep.subr.bf16.mxu0 0
  %271 = vmatpush1.bf16.msra.mxu0 0
  %272 = vmatprep.subr.bf16.mxu0 0
  %273 = vmatpush1.bf16.msra.mxu0 0
  %274 = vmatprep.subr.bf16.mxu0 0
  %275 = vmatpush1.bf16.msra.mxu0 0
  %276 = vmatprep.subr.bf16.mxu0 0
  %277 = vmatpush1.bf16.msra.mxu0 0
  %278 = vmatprep.mubr.bf16.mxu0 0
  %279 = vmatmul.mubr.bf16.gmra.mrb[0].mxu0 %v144
  %v280 = vpop.f32.mrb[0].mxu0
  %v281 = vadd.f32 %v129, %v280
  %v282 = vpop.f32.mrb[0].mxu0
  %v283 = vpop.f32.mrb[0].mxu0
  %v284 = vadd.f32 %v129, %v283
  %v285 = vpop.f32.mrb[0].mxu0
  %286 = vmatprep.mubr.bf16.mxu0 0
  %287 = vmatmul.mubr.bf16.gmra.mrb[0].mxu0 %v147
  %v288 = vpop.f32.mrb[0].mxu0
  %v289 = vadd.f32 %v129, %v288
  %v290 = vpop.f32.mrb[0].mxu0
  %v291 = vpop.f32.mrb[0].mxu0
  %v292 = vadd.f32 %v129, %v291
  %v293 = vpop.f32.mrb[0].mxu0
  %294 = vmatprep.mubr.bf16.mxu0 0
  %295 = vmatmul.mubr.bf16.gmra.mrb[0].mxu0 %v150
  %v296 = vpop.f32.mrb[0].mxu0
  %v297 = vadd.f32 %v129, %v296
  %v298 = vpop.f32.mrb[0].mxu0
  %v299 = vpop.f32.mrb[0].mxu0
  %v300 = vadd.f32 %v129, %v299
  %v301 = vpop.f32.mrb[0].mxu0
  %302 = vmatprep.mubr.bf16.mxu0 0
  %303 = vmatmul.mubr.bf16.gmra.mrb[0].mxu0 %v153
  %v304 = vpop.f32.mrb[0].mxu0
  %v305 = vadd.f32 %v129, %v304
  %v306 = vpop.f32.mrb[0].mxu0
  %v307 = vpop.f32.mrb[0].mxu0
  %v308 = vadd.f32 %v129, %v307
  %v309 = vpop.f32.mrb[0].mxu0
  %310 = vmatprep.mubr.bf16.mxu0 0
  %311 = vmatmul.mubr.bf16.gmra.mrb[0].mxu0 %v156
  %v312 = vpop.f32.mrb[0].mxu0
  %v313 = vadd.f32 %v129, %v312
  %v314 = vpop.f32.mrb[0].mxu0
  %v315 = vpop.f32.mrb[0].mxu0
  %v316 = vadd.f32 %v129, %v315
  %v317 = vpop.f32.mrb[0].mxu0
  %318 = vmatprep.mubr.bf16.mxu0 0
  %319 = vmatmul.mubr.bf16.gmra.mrb[0].mxu0 %v159
  %v320 = vpop.f32.mrb[0].mxu0
  %v321 = vadd.f32 %v129, %v320
  %v322 = vpop.f32.mrb[0].mxu0
  %v323 = vpop.f32.mrb[0].mxu0
  %v324 = vadd.f32 %v129, %v323
  %v325 = vpop.f32.mrb[0].mxu0
  %326 = vmatprep.mubr.bf16.mxu0 0
  %327 = vmatmul.mubr.bf16.gmra.mrb[0].mxu0 %v162
  %v328 = vpop.f32.mrb[0].mxu0
  %v329 = vadd.f32 %v129, %v328
  %v330 = vpop.f32.mrb[0].mxu0
  %v331 = vpop.f32.mrb[0].mxu0
  %v332 = vadd.f32 %v129, %v331
  %v333 = vpop.f32.mrb[0].mxu0
  %334 = vmatprep.mubr.bf16.mxu0 0
  %335 = vmatmul.mubr.bf16.gmra.mrb[0].mxu0 %v165
  %v336 = vpop.f32.mrb[0].mxu0
  %v337 = vadd.f32 %v129, %v336
  %v338 = vpop.f32.mrb[0].mxu0
  %v339 = vpop.f32.mrb[0].mxu0
  %v340 = vadd.f32 %v129, %v339
  %v341 = vpop.f32.mrb[0].mxu0
  %342 = vmatprep.mubr.bf16.mxu0 0
  %343 = vmatmul.mubr.bf16.gmra.mrb[0].mxu0 %v168
  %v344 = vpop.f32.mrb[0].mxu0
  %v345 = vadd.f32 %v129, %v344
  %v346 = vpop.f32.mrb[0].mxu0
  %v347 = vpop.f32.mrb[0].mxu0
  %v348 = vadd.f32 %v129, %v347
  %v349 = vpop.f32.mrb[0].mxu0
  %350 = vmatprep.mubr.bf16.mxu0 0
  %351 = vmatmul.mubr.bf16.gmra.mrb[0].mxu0 %v171
  %v352 = vpop.f32.mrb[0].mxu0
  %v353 = vadd.f32 %v129, %v352
  %v354 = vpop.f32.mrb[0].mxu0
  %v355 = vpop.f32.mrb[0].mxu0
  %v356 = vadd.f32 %v129, %v355
  %v357 = vpop.f32.mrb[0].mxu0
  %358 = vmatprep.mubr.bf16.mxu0 0
  %359 = vmatmul.mubr.bf16.gmra.mrb[0].mxu0 %v174
  %v360 = vpop.f32.mrb[0].mxu0
  %v361 = vadd.f32 %v129, %v360
  %v362 = vpop.f32.mrb[0].mxu0
  %v363 = vpop.f32.mrb[0].mxu0
  %v364 = vadd.f32 %v129, %v363
  %v365 = vpop.f32.mrb[0].mxu0
  %366 = vmatprep.mubr.bf16.mxu0 0
  %367 = vmatmul.mubr.bf16.gmra.mrb[0].mxu0 %v177
  %v368 = vpop.f32.mrb[0].mxu0
  %v369 = vadd.f32 %v129, %v368
  %v370 = vpop.f32.mrb[0].mxu0
  %v371 = vpop.f32.mrb[0].mxu0
  %v372 = vadd.f32 %v129, %v371
  %v373 = vpop.f32.mrb[0].mxu0
  %374 = vmatprep.mubr.bf16.mxu0 0
  %375 = vmatmul.mubr.bf16.gmra.mrb[0].mxu0 %v180
  %v376 = vpop.f32.mrb[0].mxu0
  %v377 = vadd.f32 %v129, %v376
  %v378 = vpop.f32.mrb[0].mxu0
  %v379 = vpop.f32.mrb[0].mxu0
  %v380 = vadd.f32 %v129, %v379
  %v381 = vpop.f32.mrb[0].mxu0
  %382 = vmatprep.mubr.bf16.mxu0 0
  %383 = vmatmul.mubr.bf16.gmra.mrb[0].mxu0 %v183
  %v384 = vpop.f32.mrb[0].mxu0
  %v385 = vadd.f32 %v129, %v384
  %v386 = vpop.f32.mrb[0].mxu0
  %v387 = vpop.f32.mrb[0].mxu0
  %v388 = vadd.f32 %v129, %v387
  %v389 = vpop.f32.mrb[0].mxu0
  %390 = vmatprep.mubr.bf16.mxu0 0
  %391 = vmatmul.mubr.bf16.gmra.mrb[0].mxu0 %v186
  %v392 = vpop.f32.mrb[0].mxu0
  %v393 = vadd.f32 %v129, %v392
  %v394 = vpop.f32.mrb[0].mxu0
  %v395 = vpop.f32.mrb[0].mxu0
  %v396 = vadd.f32 %v129, %v395
  %v397 = vpop.f32.mrb[0].mxu0
  %398 = vmatprep.mubr.bf16.mxu0 0
  %399 = vmatmul.mubr.bf16.gmra.mrb[0].mxu0 %v189
  %v400 = vpop.f32.mrb[0].mxu0
  %v401 = vadd.f32 %v129, %v400
  %v402 = vpop.f32.mrb[0].mxu0
  %v403 = vpop.f32.mrb[0].mxu0
  %v404 = vadd.f32 %v129, %v403
  %v405 = vpop.f32.mrb[0].mxu0
  %406 = vmatprep.mubr.bf16.mxu0 0
  %407 = vmatmul.mubr.bf16.gmra.mrb[0].mxu0 %v192
  %v408 = vpop.f32.mrb[0].mxu0
  %v409 = vadd.f32 %v129, %v408
  %v410 = vpop.f32.mrb[0].mxu0
  %v411 = vpop.f32.mrb[0].mxu0
  %v412 = vadd.f32 %v129, %v411
  %v413 = vpop.f32.mrb[0].mxu0
  %414 = vmatprep.mubr.bf16.mxu0 0
  %415 = vmatmul.mubr.bf16.gmra.mrb[0].mxu0 %v195
  %v416 = vpop.f32.mrb[0].mxu0
  %v417 = vadd.f32 %v129, %v416
  %v418 = vpop.f32.mrb[0].mxu0
  %v419 = vpop.f32.mrb[0].mxu0
  %v420 = vadd.f32 %v129, %v419
  %v421 = vpop.f32.mrb[0].mxu0
  %422 = vmatprep.mubr.bf16.mxu0 0
  %423 = vmatmul.mubr.bf16.gmra.mrb[0].mxu0 %v198
  %v424 = vpop.f32.mrb[0].mxu0
  %v425 = vadd.f32 %v129, %v424
  %v426 = vpop.f32.mrb[0].mxu0
  %v427 = vpop.f32.mrb[0].mxu0
  %v428 = vadd.f32 %v129, %v427
  %v429 = vpop.f32.mrb[0].mxu0
  %430 = vmatprep.mubr.bf16.mxu0 0
  %431 = vmatmul.mubr.bf16.gmra.mrb[0].mxu0 %v201
  %v432 = vpop.f32.mrb[0].mxu0
  %v433 = vadd.f32 %v129, %v432
  %v434 = vpop.f32.mrb[0].mxu0
  %v435 = vpop.f32.mrb[0].mxu0
  %v436 = vadd.f32 %v129, %v435
  %v437 = vpop.f32.mrb[0].mxu0
  %438 = vmatprep.mubr.bf16.mxu0 0
  %439 = vmatmul.mubr.bf16.gmra.mrb[0].mxu0 %v204
  %v440 = vpop.f32.mrb[0].mxu0
  %v441 = vadd.f32 %v129, %v440
  %v442 = vpop.f32.mrb[0].mxu0
  %v443 = vpop.f32.mrb[0].mxu0
  %v444 = vadd.f32 %v129, %v443
  %v445 = vpop.f32.mrb[0].mxu0
  %446 = vmatprep.mubr.bf16.mxu0 0
  %447 = vmatmul.mubr.bf16.gmra.mrb[0].mxu0 %v207
  %v448 = vpop.f32.mrb[0].mxu0
  %v449 = vadd.f32 %v129, %v448
  %v450 = vpop.f32.mrb[0].mxu0
  %v451 = vpop.f32.mrb[0].mxu0
  %v452 = vadd.f32 %v129, %v451
  %v453 = vpop.f32.mrb[0].mxu0
  %454 = vmatprep.mubr.bf16.mxu0 0
  %455 = vmatmul.mubr.bf16.gmra.mrb[0].mxu0 %v210
  %v456 = vpop.f32.mrb[0].mxu0
  %v457 = vadd.f32 %v129, %v456
  %v458 = vpop.f32.mrb[0].mxu0
  %v459 = vpop.f32.mrb[0].mxu0
  %v460 = vadd.f32 %v129, %v459
  %v461 = vpop.f32.mrb[0].mxu0
  %462 = vmatprep.mubr.bf16.mxu0 0
  %463 = vmatmul.mubr.bf16.gmra.mrb[0].mxu0 %v213
  %v464 = vpop.f32.mrb[0].mxu0
  %v465 = vadd.f32 %v129, %v464
  %v466 = vpop.f32.mrb[0].mxu0
  %v467 = vpop.f32.mrb[0].mxu0
  %v468 = vadd.f32 %v129, %v467
  %v469 = vpop.f32.mrb[0].mxu0
  %470 = vmatprep.mubr.bf16.mxu0 0
  %471 = vmatmul.mubr.bf16.gmra.mrb[0].mxu0 %v216
  %v472 = vpop.f32.mrb[0].mxu0
  %v473 = vadd.f32 %v129, %v472
  %v474 = vpop.f32.mrb[0].mxu0
  %v475 = vpop.f32.mrb[0].mxu0
  %v476 = vadd.f32 %v129, %v475
  %v477 = vpop.f32.mrb[0].mxu0
  %478 = vmatprep.mubr.bf16.mxu0 0
  %479 = vmatmul.mubr.bf16.gmra.mrb[0].mxu0 %v219
  %v480 = vpop.f32.mrb[0].mxu0
  %v481 = vadd.f32 %v129, %v480
  %v482 = vpop.f32.mrb[0].mxu0
  %v483 = vpop.f32.mrb[0].mxu0
  %v484 = vadd.f32 %v129, %v483
  %v485 = vpop.f32.mrb[0].mxu0
  %486 = vmatprep.mubr.bf16.mxu0 0
  %487 = vmatmul.mubr.bf16.gmra.mrb[0].mxu0 %v222
  %v488 = vpop.f32.mrb[0].mxu0
  %v489 = vadd.f32 %v129, %v488
  %v490 = vpop.f32.mrb[0].mxu0
  %v491 = vpop.f32.mrb[0].mxu0
  %v492 = vadd.f32 %v129, %v491
  %v493 = vpop.f32.mrb[0].mxu0
  %494 = vmatprep.mubr.bf16.mxu0 0
  %495 = vmatmul.mubr.bf16.gmra.mrb[0].mxu0 %v225
  %v496 = vpop.f32.mrb[0].mxu0
  %v497 = vadd.f32 %v129, %v496
  %v498 = vpop.f32.mrb[0].mxu0
  %v499 = vpop.f32.mrb[0].mxu0
  %v500 = vadd.f32 %v129, %v499
  %v501 = vpop.f32.mrb[0].mxu0
  %502 = vmatprep.mubr.bf16.mxu0 0
  %503 = vmatmul.mubr.bf16.gmra.mrb[0].mxu0 %v228
  %v504 = vpop.f32.mrb[0].mxu0
  %v505 = vadd.f32 %v129, %v504
  %v506 = vpop.f32.mrb[0].mxu0
  %v507 = vpop.f32.mrb[0].mxu0
  %v508 = vadd.f32 %v129, %v507
  %v509 = vpop.f32.mrb[0].mxu0
  %510 = vmatprep.mubr.bf16.mxu0 0
  %511 = vmatmul.mubr.bf16.gmra.mrb[0].mxu0 %v231
  %v512 = vpop.f32.mrb[0].mxu0
  %v513 = vadd.f32 %v129, %v512
  %v514 = vpop.f32.mrb[0].mxu0
  %v515 = vpop.f32.mrb[0].mxu0
  %v516 = vadd.f32 %v129, %v515
  %v517 = vpop.f32.mrb[0].mxu0
  %518 = vmatprep.mubr.bf16.mxu0 0
  %519 = vmatmul.mubr.bf16.gmra.mrb[0].mxu0 %v234
  %v520 = vpop.f32.mrb[0].mxu0
  %v521 = vadd.f32 %v129, %v520
  %v522 = vpop.f32.mrb[0].mxu0
  %v523 = vpop.f32.mrb[0].mxu0
  %v524 = vadd.f32 %v129, %v523
  %v525 = vpop.f32.mrb[0].mxu0
  %526 = vmatprep.mubr.bf16.mxu0 0
  %527 = vmatmul.mubr.bf16.gmra.mrb[0].mxu0 %v237
  %v528 = vpop.f32.mrb[0].mxu0
  %v529 = vadd.f32 %v129, %v528
  %v530 = vpop.f32.mrb[0].mxu0
  %v531 = vpop.f32.mrb[0].mxu0
  %v532 = vadd.f32 %v129, %v531
  %v533 = vpop.f32.mrb[0].mxu0
  %534 = vdwg.mxu0
  %v535 = vmax.f32 %v281, 0.0
  %v536 = vmax.f32 %v284, 0.0
  %v537 = vmax.f32 %v289, 0.0
  %v538 = vmax.f32 %v292, 0.0
  %v539 = vmax.f32 %v297, 0.0
  %v540 = vmax.f32 %v300, 0.0
  %v541 = vmax.f32 %v305, 0.0
  %v542 = vmax.f32 %v308, 0.0
  %v543 = vmax.f32 %v313, 0.0
  %v544 = vmax.f32 %v316, 0.0
  %v545 = vmax.f32 %v321, 0.0
  %v546 = vmax.f32 %v324, 0.0
  %v547 = vmax.f32 %v329, 0.0
  %v548 = vmax.f32 %v332, 0.0
  %v549 = vmax.f32 %v337, 0.0
  %v550 = vmax.f32 %v340, 0.0
  %v551 = vmax.f32 %v345, 0.0
  %v552 = vmax.f32 %v348, 0.0
  %v553 = vmax.f32 %v353, 0.0
  %v554 = vmax.f32 %v356, 0.0
  %v555 = vmax.f32 %v361, 0.0
  %v556 = vmax.f32 %v364, 0.0
  %v557 = vmax.f32 %v369, 0.0
  %v558 = vmax.f32 %v372, 0.0
  %v559 = vmax.f32 %v377, 0.0
  %v560 = vmax.f32 %v380, 0.0
  %v561 = vmax.f32 %v385, 0.0
  %v562 = vmax.f32 %v388, 0.0
  %v563 = vmax.f32 %v393, 0.0
  %v564 = vmax.f32 %v396, 0.0
  %v565 = vmax.f32 %v401, 0.0
  %v566 = vmax.f32 %v404, 0.0
  %v567 = vmax.f32 %v409, 0.0
  %v568 = vmax.f32 %v412, 0.0
  %v569 = vmax.f32 %v417, 0.0
  %v570 = vmax.f32 %v420, 0.0
  %v571 = vmax.f32 %v425, 0.0
  %v572 = vmax.f32 %v428, 0.0
  %v573 = vmax.f32 %v433, 0.0
  %v574 = vmax.f32 %v436, 0.0
  %v575 = vmax.f32 %v441, 0.0
  %v576 = vmax.f32 %v444, 0.0
  %v577 = vmax.f32 %v449, 0.0
  %v578 = vmax.f32 %v452, 0.0
  %v579 = vmax.f32 %v457, 0.0
  %v580 = vmax.f32 %v460, 0.0
  %v581 = vmax.f32 %v465, 0.0
  %v582 = vmax.f32 %v468, 0.0
  %v583 = vmax.f32 %v473, 0.0
  %v584 = vmax.f32 %v476, 0.0
  %v585 = vmax.f32 %v481, 0.0
  %v586 = vmax.f32 %v484, 0.0
  %v587 = vmax.f32 %v489, 0.0
  %v588 = vmax.f32 %v492, 0.0
  %v589 = vmax.f32 %v497, 0.0
  %v590 = vmax.f32 %v500, 0.0
  %v591 = vmax.f32 %v505, 0.0
  %v592 = vmax.f32 %v508, 0.0
  %v593 = vmax.f32 %v513, 0.0
  %v594 = vmax.f32 %v516, 0.0
  %v595 = vmax.f32 %v521, 0.0
  %v596 = vmax.f32 %v524, 0.0
  %v597 = vmax.f32 %v529, 0.0
  %v598 = vmax.f32 %v532, 0.0
  %v599 = vld [vmem:[%s3] sm:$0xff]
  %v601 = vcombine.high %v599, %v599
  %v603 = vunpack.c.l.s4 1983009808
  %v604 = vunpack.c.0.s8 %v603
  %v605 = vlaneseq
  %v606 = vshrl.u32 %v605, 7
  %v607 = vsub.s32 %v604, %v606
  %v608 = vrot.slane %v599, %v607
  %v610 = vunpack.c.l.s4 1983009808
  %v611 = vunpack.c.0.s8 %v610
  %v612 = vlaneseq
  %v613 = vshrl.u32 %v612, 7
  %v614 = vsub.s32 %v611, %v613
  %v615 = vrot.slane %v601, %v614
  %v616 = vcombine.high %v608, %v608
  %v617 = vcombine.high %v615, %v615
  %622 = vmatprep.subr.mxu0 0.0
  %623 = vmatpush1.msra.mxu0 %v535
  %624 = vmatprep.subr.mxu0 0.0
  %625 = vmatpush1.msra.mxu0 %v536
  %626 = vmatprep.subr.mxu0 0.0
  %627 = vmatpush1.msra.mxu0 %v537
  %628 = vmatprep.subr.mxu0 0.0
  %629 = vmatpush1.msra.mxu0 %v538
  %630 = vmatprep.subr.mxu0 0.0
  %631 = vmatpush1.msra.mxu0 %v539
  %632 = vmatprep.subr.mxu0 0.0
  %633 = vmatpush1.msra.mxu0 %v540
  %634 = vmatprep.subr.mxu0 0.0
  %635 = vmatpush1.msra.mxu0 %v541
  %636 = vmatprep.subr.mxu0 0.0
  %637 = vmatpush1.msra.mxu0 %v542
  %638 = vmatprep.subr.mxu0 0.0
  %639 = vmatpush1.msra.mxu0 %v543
  %640 = vmatprep.subr.mxu0 0.0
  %641 = vmatpush1.msra.mxu0 %v544
  %642 = vmatprep.subr.mxu0 0.0
  %643 = vmatpush1.msra.mxu0 %v545
  %644 = vmatprep.subr.mxu0 0.0
  %645 = vmatpush1.msra.mxu0 %v546
  %646 = vmatprep.subr.mxu0 0.0
  %647 = vmatpush1.msra.mxu0 %v547
  %648 = vmatprep.subr.mxu0 0.0
  %649 = vmatpush1.msra.mxu0 %v548
  %650 = vmatprep.subr.mxu0 0.0
  %651 = vmatpush1.msra.mxu0 %v549
  %652 = vmatprep.subr.mxu0 0.0
  %653 = vmatpush1.msra.mxu0 %v550
  %654 = vmatprep.subr.mxu0 0.0
  %655 = vmatpush1.msra.mxu0 %v551
  %656 = vmatprep.subr.mxu0 0.0
  %657 = vmatpush1.msra.mxu0 %v552
  %658 = vmatprep.subr.mxu0 0.0
  %659 = vmatpush1.msra.mxu0 %v553
  %660 = vmatprep.subr.mxu0 0.0
  %661 = vmatpush1.msra.mxu0 %v554
  %662 = vmatprep.subr.mxu0 0.0
  %663 = vmatpush1.msra.mxu0 %v555
  %664 = vmatprep.subr.mxu0 0.0
  %665 = vmatpush1.msra.mxu0 %v556
  %666 = vmatprep.subr.mxu0 0.0
  %667 = vmatpush1.msra.mxu0 %v557
  %668 = vmatprep.subr.mxu0 0.0
  %669 = vmatpush1.msra.mxu0 %v558
  %670 = vmatprep.subr.mxu0 0.0
  %671 = vmatpush1.msra.mxu0 %v559
  %672 = vmatprep.subr.mxu0 0.0
  %673 = vmatpush1.msra.mxu0 %v560
  %674 = vmatprep.subr.mxu0 0.0
  %675 = vmatpush1.msra.mxu0 %v561
  %676 = vmatprep.subr.mxu0 0.0
  %677 = vmatpush1.msra.mxu0 %v562
  %678 = vmatprep.subr.mxu0 0.0
  %679 = vmatpush1.msra.mxu0 %v563
  %680 = vmatprep.subr.mxu0 0.0
  %681 = vmatpush1.msra.mxu0 %v564
  %682 = vmatprep.subr.mxu0 0.0
  %683 = vmatpush1.msra.mxu0 %v565
  %684 = vmatprep.subr.mxu0 0.0
  %685 = vmatpush1.msra.mxu0 %v566
  %686 = vmatprep.mubr.f32.mxu0 %v616
  %687 = vmatmul.mubr.f32.gmra.mrb[0].mxu0 %v608
  %v688 = vpop.f32.mrb[0].mxu0
  %v689 = vadd.f32 0.0, %v688
  %v690 = vpop.f32.mrb[0].mxu0
  %691 = vdwg.mxu0
  %692 = vmatprep.subr.mxu0 0.0
  %693 = vmatpush1.msra.mxu0 %v567
  %694 = vmatprep.subr.mxu0 0.0
  %695 = vmatpush1.msra.mxu0 %v568
  %696 = vmatprep.subr.mxu0 0.0
  %697 = vmatpush1.msra.mxu0 %v569
  %698 = vmatprep.subr.mxu0 0.0
  %699 = vmatpush1.msra.mxu0 %v570
  %700 = vmatprep.subr.mxu0 0.0
  %701 = vmatpush1.msra.mxu0 %v571
  %702 = vmatprep.subr.mxu0 0.0
  %703 = vmatpush1.msra.mxu0 %v572
  %704 = vmatprep.subr.mxu0 0.0
  %705 = vmatpush1.msra.mxu0 %v573
  %706 = vmatprep.subr.mxu0 0.0
  %707 = vmatpush1.msra.mxu0 %v574
  %708 = vmatprep.subr.mxu0 0.0
  %709 = vmatpush1.msra.mxu0 %v575
  %710 = vmatprep.subr.mxu0 0.0
  %711 = vmatpush1.msra.mxu0 %v576
  %712 = vmatprep.subr.mxu0 0.0
  %713 = vmatpush1.msra.mxu0 %v577
  %714 = vmatprep.subr.mxu0 0.0
  %715 = vmatpush1.msra.mxu0 %v578
  %716 = vmatprep.subr.mxu0 0.0
  %717 = vmatpush1.msra.mxu0 %v579
  %718 = vmatprep.subr.mxu0 0.0
  %719 = vmatpush1.msra.mxu0 %v580
  %720 = vmatprep.subr.mxu0 0.0
  %721 = vmatpush1.msra.mxu0 %v581
  %722 = vmatprep.subr.mxu0 0.0
  %723 = vmatpush1.msra.mxu0 %v582
  %724 = vmatprep.subr.mxu0 0.0
  %725 = vmatpush1.msra.mxu0 %v583
  %726 = vmatprep.subr.mxu0 0.0
  %727 = vmatpush1.msra.mxu0 %v584
  %728 = vmatprep.subr.mxu0 0.0
  %729 = vmatpush1.msra.mxu0 %v585
  %730 = vmatprep.subr.mxu0 0.0
  %731 = vmatpush1.msra.mxu0 %v586
  %732 = vmatprep.subr.mxu0 0.0
  %733 = vmatpush1.msra.mxu0 %v587
  %734 = vmatprep.subr.mxu0 0.0
  %735 = vmatpush1.msra.mxu0 %v588
  %736 = vmatprep.subr.mxu0 0.0
  %737 = vmatpush1.msra.mxu0 %v589
  %738 = vmatprep.subr.mxu0 0.0
  %739 = vmatpush1.msra.mxu0 %v590
  %740 = vmatprep.subr.mxu0 0.0
  %741 = vmatpush1.msra.mxu0 %v591
  %742 = vmatprep.subr.mxu0 0.0
  %743 = vmatpush1.msra.mxu0 %v592
  %744 = vmatprep.subr.mxu0 0.0
  %745 = vmatpush1.msra.mxu0 %v593
  %746 = vmatprep.subr.mxu0 0.0
  %747 = vmatpush1.msra.mxu0 %v594
  %748 = vmatprep.subr.mxu0 0.0
  %749 = vmatpush1.msra.mxu0 %v595
  %750 = vmatprep.subr.mxu0 0.0
  %751 = vmatpush1.msra.mxu0 %v596
  %752 = vmatprep.subr.mxu0 0.0
  %753 = vmatpush1.msra.mxu0 %v597
  %754 = vmatprep.subr.mxu0 0.0
  %755 = vmatpush1.msra.mxu0 %v598
  %756 = vmatprep.mubr.f32.mxu0 %v617
  %757 = vmatmul.mubr.f32.gmra.mrb[0].mxu0 %v615
  %v758 = vpop.f32.mrb[0].mxu0
  %v759 = vadd.f32 %v689, %v758
  %v760 = vpop.f32.mrb[0].mxu0
  %761 = vdwg.mxu0
  %v762 = vpack.c.bf16 %v759, %v759
  %v763 = vld [vmem:[%s4] sm:$0xf]
  %v764 = vld [vmem:[%s4 + $0x4] sm:$0xf]
  %v765 = vld [vmem:[%s4 + $0x8] sm:$0xf]
  %v766 = vld [vmem:[%s4 + $0xc] sm:$0xf]
  %v767 = vld [vmem:[%s4 + $0x10] sm:$0xf]
  %v768 = vld [vmem:[%s4 + $0x14] sm:$0xf]
  %v769 = vld [vmem:[%s4 + $0x18] sm:$0xf]
  %v770 = vld [vmem:[%s4 + $0x1c] sm:$0xf]
  %v771 = vld [vmem:[%s4 + $0x20] sm:$0xf]
  %v772 = vld [vmem:[%s4 + $0x24] sm:$0xf]
  %v773 = vld [vmem:[%s4 + $0x28] sm:$0xf]
  %v774 = vld [vmem:[%s4 + $0x2c] sm:$0xf]
  %v775 = vld [vmem:[%s4 + $0x30] sm:$0xf]
  %v776 = vld [vmem:[%s4 + $0x34] sm:$0xf]
  %v777 = vld [vmem:[%s4 + $0x38] sm:$0xf]
  %v778 = vld [vmem:[%s4 + $0x3c] sm:$0xf]
  %v779 = vld [vmem:[%s5] sm:$0x1]
  %v781 = vlaneseq
  %v782 = vshrl.u32 %v781, 7
  %v783 = vsub.s32 0, %v782
  %v784 = vrot.slane %v779, %v783
  %v802 = vunpack.c.l.b16 %v763
  %v803 = vunpack.c.l.b16 %v764
  %v804 = vunpack.c.l.b16 %v765
  %v805 = vunpack.c.l.b16 %v766
  %v806 = vunpack.c.l.b16 %v767
  %v807 = vunpack.c.l.b16 %v768
  %v808 = vunpack.c.l.b16 %v769
  %v809 = vunpack.c.l.b16 %v770
  %v810 = vunpack.c.l.b16 %v771
  %v811 = vunpack.c.l.b16 %v772
  %v812 = vunpack.c.l.b16 %v773
  %v813 = vunpack.c.l.b16 %v774
  %v814 = vunpack.c.l.b16 %v775
  %v815 = vunpack.c.l.b16 %v776
  %v816 = vunpack.c.l.b16 %v777
  %v817 = vunpack.c.l.b16 %v778
  %v818 = vpack.c.b16 %v803, %v802
  %v819 = vpack.c.b16 %v805, %v804
  %v820 = vpack.c.b16 %v807, %v806
  %v821 = vpack.c.b16 %v809, %v808
  %v822 = vpack.c.b16 %v811, %v810
  %v823 = vpack.c.b16 %v813, %v812
  %v824 = vpack.c.b16 %v815, %v814
  %v825 = vpack.c.b16 %v817, %v816
  %834 = vmatprep.subr.bf16.mxu0 0
  %835 = vmatpush1.bf16.msra.mxu0 %v818
  %836 = vmatprep.subr.bf16.mxu0 0
  %837 = vmatpush1.bf16.msra.mxu0 %v819
  %838 = vmatprep.subr.bf16.mxu0 0
  %839 = vmatpush1.bf16.msra.mxu0 %v820
  %840 = vmatprep.subr.bf16.mxu0 0
  %841 = vmatpush1.bf16.msra.mxu0 %v821
  %842 = vmatprep.subr.bf16.mxu0 0
  %843 = vmatpush1.bf16.msra.mxu0 %v822
  %844 = vmatprep.subr.bf16.mxu0 0
  %845 = vmatpush1.bf16.msra.mxu0 %v823
  %846 = vmatprep.subr.bf16.mxu0 0
  %847 = vmatpush1.bf16.msra.mxu0 %v824
  %848 = vmatprep.subr.bf16.mxu0 0
  %849 = vmatpush1.bf16.msra.mxu0 %v825
  %850 = vmatprep.subr.bf16.mxu0 0
  %851 = vmatpush1.bf16.msra.mxu0 0
  %852 = vmatprep.subr.bf16.mxu0 0
  %853 = vmatpush1.bf16.msra.mxu0 0
  %854 = vmatprep.subr.bf16.mxu0 0
  %855 = vmatpush1.bf16.msra.mxu0 0
  %856 = vmatprep.subr.bf16.mxu0 0
  %857 = vmatpush1.bf16.msra.mxu0 0
  %858 = vmatprep.subr.bf16.mxu0 0
  %859 = vmatpush1.bf16.msra.mxu0 0
  %860 = vmatprep.subr.bf16.mxu0 0
  %861 = vmatpush1.bf16.msra.mxu0 0
  %862 = vmatprep.subr.bf16.mxu0 0
  %863 = vmatpush1.bf16.msra.mxu0 0
  %864 = vmatprep.subr.bf16.mxu0 0
  %865 = vmatpush1.bf16.msra.mxu0 0
  %866 = vmatprep.mubr.bf16.mxu0 0
  %867 = vmatmul.mubr.bf16.gmra.mrb[0].mxu0 %v762
  %v868 = vpop.f32.mrb[0].mxu0
  %v869 = vadd.f32 %v784, %v868
  %v870 = vpop.f32.mrb[0].mxu0
  %v871 = vpop.f32.mrb[0].mxu0
  %v872 = vpop.f32.mrb[0].mxu0
  %873 = vdwg.mxu0
  %874 = vst [vmem:[%s6] sm:$0x3] %v869
  // Predicated region
  $region26: #{multimodal_forward.2} parent=0 // pred_check
    _
  $region27: #{multimodal_forward.2} parent=0 // pred_check_branch
    %876 = sbr.rel (0) target = $region29
  $region28: #{multimodal_forward.2} parent=0 // pred_region
    _
  $region29: #{multimodal_forward.2} parent=0 // pred_fallthru
    _
  // Predicated region
  $region30: #{multimodal_forward.2} parent=0 // pred_check
    _
  $region31: #{multimodal_forward.2} parent=0 // pred_check_branch
    %878 = sbr.rel (0) target = $region33
  $region32: #{multimodal_forward.2} parent=0 // pred_region
    _
  $region33: #{multimodal_forward.2} parent=0 // pred_fallthru
    _

// kernel: multimodal_forward.3
$region0: #{multimodal_forward.3}
  #allocation0 [shape = 'u32[]', space=smem, size = 0x4, offset = 0x4, fixed_abs, tag = 'smem constant byte address 0x4 - core index']
  #allocation1 [shape = 'u32[144,128]{1,0:T(1,128)}', space=vmem, size = 0x12000, scoped, tag = 'internal scratch']
  #allocation2 [shape = 'f32[9,128]{1,0:T(8,128)}', space=vmem, size = 0x2000, scoped, tag = 'scratch operand']
  %s0 = inlined_call_operand.vmem [shape: f32[2,9,128], index: 0, kind: input, shape index: {}]
  %s1 = inlined_call_operand.vmem [shape: f32[2,9,9], index: 1, kind: input, shape index: {}]
  %s2 = inlined_call_operand.vmem [shape: f32[9,128], index: 2, kind: input, shape index: {}]
  %s3 = inlined_call_operand.vmem [shape: f32[9,128], index: 3, kind: input, shape index: {}]
  %s4 = inlined_call_operand.vmem [shape: bf16[128,128], index: 4, kind: input, shape index: {}]
  %s5 = inlined_call_operand.vmem [shape: f32[2,1,128], index: 5, kind: input, shape index: {}]
  %s6 = inlined_call_operand.vmem [shape: f32[2,1,128], index: 6, kind: input, shape index: {}]
  %s7 = inlined_call_operand.vmem [shape: bf16[2,128,384], index: 7, kind: input, shape index: {}]
  %s8 = inlined_call_operand.vmem [shape: bf16[2,128,128], index: 8, kind: input, shape index: {}]
  %s9 = inlined_call_operand.vmem [shape: bf16[2,128,512], index: 9, kind: input, shape index: {}]
  %s10 = inlined_call_operand.vmem [shape: bf16[2,256,128], index: 10, kind: input, shape index: {}]
  %s11 = inlined_call_operand.vmem [shape: f32[1,128], index: 11, kind: input, shape index: {}]
  %s12 = inlined_call_operand.vmem [shape: bf16[128,256], index: 12, kind: input, shape index: {}]
  %s13 = inlined_call_operand.vmem [shape: f32[2,9,256], index: 13, kind: output, shape index: {}]
  %s14 = sld [smem:[#allocation0]]
  $region93: #{multimodal_forward.3} parent=0
    _
  %s16 = ssub.s32 1, %s14
  %s17 = scalar_select 0, %s16, %s14
  loop: start=0, step=1, limit=6
  $region2: #{multimodal_forward.3} parent=0 // loop_pre_header
    _
  $region3: #{multimodal_forward.3} parent=0 // loop_header
    %s19 = sphi 0, %s23
    %p20 = scmp.ge.s32.totalorder %s19, 6
    %s26 = sphi 0, %s38
    %s27 = sphi 0, %s34
    %s28 = sphi 0, %s26
    %s29 = sphi 0, %s27
    %s30 = sphi 0, %s28
    %s31 = sphi 0, %s29
    %s41 = sphi 0, %s43
    %s44 = sphi 0, %s41
    %s45 = sphi 0, %s44
    %s61 = sphi 0, %s45
    %s67 = sphi 0, %s69
    %s70 = sphi 0, %s67
    %s71 = sphi 0, %s70
    %s87 = sphi 0, %s71
    %s91 = sphi 0, %s91
    %s93 = sphi 0, %s91
    %s94 = sphi 0, %s93
    %s108 = sphi 0, %s94
    %s112 = sphi 0, %s112
    %s114 = sphi 0, %s112
    %s115 = sphi 0, %s114
    %s129 = sphi 0, %s115
    %s133 = sphi 0, %s133
    %s135 = sphi 0, %s133
    %s136 = sphi 0, %s135
    %s150 = sphi 0, %s136
    %s156 = sphi 0, %s158
    %s159 = sphi 0, %s156
    %s160 = sphi 0, %s159
    %s176 = sphi 0, %s160
    %s182 = sphi 0, %s184
    %s185 = sphi 0, %s182
    %s186 = sphi 0, %s185
    %s202 = sphi 0, %s186
    %s208 = sphi 0, %s210
    %s211 = sphi 0, %s208
    %s212 = sphi 0, %s211
    %s228 = sphi 0, %s212
    %s234 = sphi 0, %s236
    %s237 = sphi 0, %s234
    %s238 = sphi 0, %s237
    %s254 = sphi 0, %s238
    %s260 = sphi 0, %s262
    %s263 = sphi 0, %s260
    %s264 = sphi 0, %s263
    %s280 = sphi 0, %s264
    %s286 = sphi 0, %s288
    %s289 = sphi 0, %s286
    %s290 = sphi 0, %s289
    %s306 = sphi 0, %s290
    %s310 = sphi 0, %s310
    %s312 = sphi 0, %s310
    %s313 = sphi 0, %s312
    %s327 = sphi 0, %s313
    %s331 = sphi 0, %s331
    %s333 = sphi 0, %s331
    %s334 = sphi 0, %s333
    %s348 = sphi 0, %s334
    %s354 = sphi 0, %s356
    %s357 = sphi 0, %s354
    %s358 = sphi 0, %s357
    %s374 = sphi 0, %s358
  $region4: #{multimodal_forward.3} parent=0 // loop_header_branch
    %22 = sbr.rel (%p20) target = $region8
  $region5: #{multimodal_forward.3} parent=0 // loop_body
    %s24 = ssub.s32 %s19, 1
    %s25 = ssub.s32 %s19, 2
    %s32 = sadd.s32 1, %s27
    %p33 = scmp.ge.s32.totalorder %s32, 2
    %s34 = scalar_select %p33, 0, %s32
    %s35 = sadd.s32 1, %s26
    %s36 = scalar_select %p33, %s35, %s26
    %p37 = scmp.ge.s32.totalorder %s36, 2
    %s38 = scalar_select %p37, 0, %s36
    %s39 = ssub.s32 %s26, %s38
    %p40 = scmp.eq.s32.totalorder %s39, 0
    %s42 = sadd.s32 %s41, 1
    %s43 = scalar_select %p40, %s41, %s42
    %p46 = pneg %p40
    %p47 = scmp.eq.s32.totalorder %s19, 3
    %p48 = por %p46, %p47
    %p49 = scmp.ne.s32.totalorder %s41, %s44
    %p50 = scmp.eq.s32.totalorder %s19, 0
    %p51 = por %p49, %p50
    %p52 = scmp.ne.s32.totalorder %s41, %s44
    %p53 = scmp.eq.s32.totalorder %s24, 3
    %p54 = por %p52, %p53
    %p55 = scmp.ne.s32.totalorder %s44, %s45
    %p56 = scmp.eq.s32.totalorder %s24, 0
    %p57 = por %p55, %p56
    %p58 = scmp.ne.s32.totalorder %s44, %s45
    %p59 = scmp.eq.s32.totalorder %s25, 3
    %p60 = por %p58, %p59
    %p62 = scmp.ne.s32.totalorder %s45, %s61
    %p63 = scmp.eq.s32.totalorder %s25, 0
    %p64 = por %p62, %p63
    %s65 = ssub.s32 %s26, %s38
    %p66 = scmp.eq.s32.totalorder %s65, 0
    %s68 = sadd.s32 %s67, 1
    %s69 = scalar_select %p66, %s67, %s68
    %p72 = pneg %p66
    %p73 = scmp.eq.s32.totalorder %s19, 3
    %p74 = por %p72, %p73
    %p75 = scmp.ne.s32.totalorder %s67, %s70
    %p76 = scmp.eq.s32.totalorder %s19, 0
    %p77 = por %p75, %p76
    %p78 = scmp.ne.s32.totalorder %s67, %s70
    %p79 = scmp.eq.s32.totalorder %s24, 3
    %p80 = por %p78, %p79
    %p81 = scmp.ne.s32.totalorder %s70, %s71
    %p82 = scmp.eq.s32.totalorder %s24, 0
    %p83 = por %p81, %p82
    %p84 = scmp.ne.s32.totalorder %s70, %s71
    %p85 = scmp.eq.s32.totalorder %s25, 3
    %p86 = por %p84, %p85
    %p88 = scmp.ne.s32.totalorder %s71, %s87
    %p89 = scmp.eq.s32.totalorder %s25, 0
    %p90 = por %p88, %p89
    %s92 = sadd.s32 %s91, 1
    %p95 = scmp.eq.s32.totalorder %s19, 3
    %p96 = scmp.ne.s32.totalorder %s91, %s93
    %p97 = scmp.eq.s32.totalorder %s19, 0
    %p98 = por %p96, %p97
    %p99 = scmp.ne.s32.totalorder %s91, %s93
    %p100 = scmp.eq.s32.totalorder %s24, 3
    %p101 = por %p99, %p100
    %p102 = scmp.ne.s32.totalorder %s93, %s94
    %p103 = scmp.eq.s32.totalorder %s24, 0
    %p104 = por %p102, %p103
    %p105 = scmp.ne.s32.totalorder %s93, %s94
    %p106 = scmp.eq.s32.totalorder %s25, 3
    %p107 = por %p105, %p106
    %p109 = scmp.ne.s32.totalorder %s94, %s108
    %p110 = scmp.eq.s32.totalorder %s25, 0
    %p111 = por %p109, %p110
    %s113 = sadd.s32 %s112, 1
    %p116 = scmp.eq.s32.totalorder %s19, 3
    %p117 = scmp.ne.s32.totalorder %s112, %s114
    %p118 = scmp.eq.s32.totalorder %s19, 0
    %p119 = por %p117, %p118
    %p120 = scmp.ne.s32.totalorder %s112, %s114
    %p121 = scmp.eq.s32.totalorder %s24, 3
    %p122 = por %p120, %p121
    %p123 = scmp.ne.s32.totalorder %s114, %s115
    %p124 = scmp.eq.s32.totalorder %s24, 0
    %p125 = por %p123, %p124
    %p126 = scmp.ne.s32.totalorder %s114, %s115
    %p127 = scmp.eq.s32.totalorder %s25, 3
    %p128 = por %p126, %p127
    %p130 = scmp.ne.s32.totalorder %s115, %s129
    %p131 = scmp.eq.s32.totalorder %s25, 0
    %p132 = por %p130, %p131
    %s134 = sadd.s32 %s133, 1
    %p137 = scmp.eq.s32.totalorder %s19, 3
    %p138 = scmp.ne.s32.totalorder %s133, %s135
    %p139 = scmp.eq.s32.totalorder %s19, 0
    %p140 = por %p138, %p139
    %p141 = scmp.ne.s32.totalorder %s133, %s135
    %p142 = scmp.eq.s32.totalorder %s24, 3
    %p143 = por %p141, %p142
    %p144 = scmp.ne.s32.totalorder %s135, %s136
    %p145 = scmp.eq.s32.totalorder %s24, 0
    %p146 = por %p144, %p145
    %p147 = scmp.ne.s32.totalorder %s135, %s136
    %p148 = scmp.eq.s32.totalorder %s25, 3
    %p149 = por %p147, %p148
    %p151 = scmp.ne.s32.totalorder %s136, %s150
    %p152 = scmp.eq.s32.totalorder %s25, 0
    %p153 = por %p151, %p152
    %s154 = ssub.s32 %s27, %s34
    %p155 = scmp.eq.s32.totalorder %s154, 0
    %s157 = sadd.s32 %s156, 1
    %s158 = scalar_select %p155, %s156, %s157
    %p161 = pneg %p155
    %p162 = scmp.eq.s32.totalorder %s19, 3
    %p163 = por %p161, %p162
    %p164 = scmp.ne.s32.totalorder %s156, %s159
    %p165 = scmp.eq.s32.totalorder %s19, 0
    %p166 = por %p164, %p165
    %p167 = scmp.ne.s32.totalorder %s156, %s159
    %p168 = scmp.eq.s32.totalorder %s24, 3
    %p169 = por %p167, %p168
    %p170 = scmp.ne.s32.totalorder %s159, %s160
    %p171 = scmp.eq.s32.totalorder %s24, 0
    %p172 = por %p170, %p171
    %p173 = scmp.ne.s32.totalorder %s159, %s160
    %p174 = scmp.eq.s32.totalorder %s25, 3
    %p175 = por %p173, %p174
    %p177 = scmp.ne.s32.totalorder %s160, %s176
    %p178 = scmp.eq.s32.totalorder %s25, 0
    %p179 = por %p177, %p178
    %s180 = ssub.s32 %s27, %s34
    %p181 = scmp.eq.s32.totalorder %s180, 0
    %s183 = sadd.s32 %s182, 1
    %s184 = scalar_select %p181, %s182, %s183
    %p187 = pneg %p181
    %p188 = scmp.eq.s32.totalorder %s19, 3
    %p189 = por %p187, %p188
    %p190 = scmp.ne.s32.totalorder %s182, %s185
    %p191 = scmp.eq.s32.totalorder %s19, 0
    %p192 = por %p190, %p191
    %p193 = scmp.ne.s32.totalorder %s182, %s185
    %p194 = scmp.eq.s32.totalorder %s24, 3
    %p195 = por %p193, %p194
    %p196 = scmp.ne.s32.totalorder %s185, %s186
    %p197 = scmp.eq.s32.totalorder %s24, 0
    %p198 = por %p196, %p197
    %p199 = scmp.ne.s32.totalorder %s185, %s186
    %p200 = scmp.eq.s32.totalorder %s25, 3
    %p201 = por %p199, %p200
    %p203 = scmp.ne.s32.totalorder %s186, %s202
    %p204 = scmp.eq.s32.totalorder %s25, 0
    %p205 = por %p203, %p204
    %s206 = ssub.s32 %s27, %s34
    %p207 = scmp.eq.s32.totalorder %s206, 0
    %s209 = sadd.s32 %s208, 1
    %s210 = scalar_select %p207, %s208, %s209
    %p213 = pneg %p207
    %p214 = scmp.eq.s32.totalorder %s19, 3
    %p215 = por %p213, %p214
    %p216 = scmp.ne.s32.totalorder %s208, %s211
    %p217 = scmp.eq.s32.totalorder %s19, 0
    %p218 = por %p216, %p217
    %p219 = scmp.ne.s32.totalorder %s208, %s211
    %p220 = scmp.eq.s32.totalorder %s24, 3
    %p221 = por %p219, %p220
    %p222 = scmp.ne.s32.totalorder %s211, %s212
    %p223 = scmp.eq.s32.totalorder %s24, 0
    %p224 = por %p222, %p223
    %p225 = scmp.ne.s32.totalorder %s211, %s212
    %p226 = scmp.eq.s32.totalorder %s25, 3
    %p227 = por %p225, %p226
    %p229 = scmp.ne.s32.totalorder %s212, %s228
    %p230 = scmp.eq.s32.totalorder %s25, 0
    %p231 = por %p229, %p230
    %s232 = ssub.s32 %s27, %s34
    %p233 = scmp.eq.s32.totalorder %s232, 0
    %s235 = sadd.s32 %s234, 1
    %s236 = scalar_select %p233, %s234, %s235
    %p239 = pneg %p233
    %p240 = scmp.eq.s32.totalorder %s19, 3
    %p241 = por %p239, %p240
    %p242 = scmp.ne.s32.totalorder %s234, %s237
    %p243 = scmp.eq.s32.totalorder %s19, 0
    %p244 = por %p242, %p243
    %p245 = scmp.ne.s32.totalorder %s234, %s237
    %p246 = scmp.eq.s32.totalorder %s24, 3
    %p247 = por %p245, %p246
    %p248 = scmp.ne.s32.totalorder %s237, %s238
    %p249 = scmp.eq.s32.totalorder %s24, 0
    %p250 = por %p248, %p249
    %p251 = scmp.ne.s32.totalorder %s237, %s238
    %p252 = scmp.eq.s32.totalorder %s25, 3
    %p253 = por %p251, %p252
    %p255 = scmp.ne.s32.totalorder %s238, %s254
    %p256 = scmp.eq.s32.totalorder %s25, 0
    %p257 = por %p255, %p256
    %s258 = ssub.s32 %s27, %s34
    %p259 = scmp.eq.s32.totalorder %s258, 0
    %s261 = sadd.s32 %s260, 1
    %s262 = scalar_select %p259, %s260, %s261
    %p265 = pneg %p259
    %p266 = scmp.eq.s32.totalorder %s19, 3
    %p267 = por %p265, %p266
    %p268 = scmp.ne.s32.totalorder %s260, %s263
    %p269 = scmp.eq.s32.totalorder %s19, 0
    %p270 = por %p268, %p269
    %p271 = scmp.ne.s32.totalorder %s260, %s263
    %p272 = scmp.eq.s32.totalorder %s24, 3
    %p273 = por %p271, %p272
    %p274 = scmp.ne.s32.totalorder %s263, %s264
    %p275 = scmp.eq.s32.totalorder %s24, 0
    %p276 = por %p274, %p275
    %p277 = scmp.ne.s32.totalorder %s263, %s264
    %p278 = scmp.eq.s32.totalorder %s25, 3
    %p279 = por %p277, %p278
    %p281 = scmp.ne.s32.totalorder %s264, %s280
    %p282 = scmp.eq.s32.totalorder %s25, 0
    %p283 = por %p281, %p282
    %s284 = ssub.s32 %s27, %s34
    %p285 = scmp.eq.s32.totalorder %s284, 0
    %s287 = sadd.s32 %s286, 1
    %s288 = scalar_select %p285, %s286, %s287
    %p291 = pneg %p285
    %p292 = scmp.eq.s32.totalorder %s19, 3
    %p293 = por %p291, %p292
    %p294 = scmp.ne.s32.totalorder %s286, %s289
    %p295 = scmp.eq.s32.totalorder %s19, 0
    %p296 = por %p294, %p295
    %p297 = scmp.ne.s32.totalorder %s286, %s289
    %p298 = scmp.eq.s32.totalorder %s24, 3
    %p299 = por %p297, %p298
    %p300 = scmp.ne.s32.totalorder %s289, %s290
    %p301 = scmp.eq.s32.totalorder %s24, 0
    %p302 = por %p300, %p301
    %p303 = scmp.ne.s32.totalorder %s289, %s290
    %p304 = scmp.eq.s32.totalorder %s25, 3
    %p305 = por %p303, %p304
    %p307 = scmp.ne.s32.totalorder %s290, %s306
    %p308 = scmp.eq.s32.totalorder %s25, 0
    %p309 = por %p307, %p308
    %s311 = sadd.s32 %s310, 1
    %p314 = scmp.eq.s32.totalorder %s19, 3
    %p315 = scmp.ne.s32.totalorder %s310, %s312
    %p316 = scmp.eq.s32.totalorder %s19, 0
    %p317 = por %p315, %p316
    %p318 = scmp.ne.s32.totalorder %s310, %s312
    %p319 = scmp.eq.s32.totalorder %s24, 3
    %p320 = por %p318, %p319
    %p321 = scmp.ne.s32.totalorder %s312, %s313
    %p322 = scmp.eq.s32.totalorder %s24, 0
    %p323 = por %p321, %p322
    %p324 = scmp.ne.s32.totalorder %s312, %s313
    %p325 = scmp.eq.s32.totalorder %s25, 3
    %p326 = por %p324, %p325
    %p328 = scmp.ne.s32.totalorder %s313, %s327
    %p329 = scmp.eq.s32.totalorder %s25, 0
    %p330 = por %p328, %p329
    %s332 = sadd.s32 %s331, 1
    %p335 = scmp.eq.s32.totalorder %s19, 3
    %p336 = scmp.ne.s32.totalorder %s331, %s333
    %p337 = scmp.eq.s32.totalorder %s19, 0
    %p338 = por %p336, %p337
    %p339 = scmp.ne.s32.totalorder %s331, %s333
    %p340 = scmp.eq.s32.totalorder %s24, 3
    %p341 = por %p339, %p340
    %p342 = scmp.ne.s32.totalorder %s333, %s334
    %p343 = scmp.eq.s32.totalorder %s24, 0
    %p344 = por %p342, %p343
    %p345 = scmp.ne.s32.totalorder %s333, %s334
    %p346 = scmp.eq.s32.totalorder %s25, 3
    %p347 = por %p345, %p346
    %p349 = scmp.ne.s32.totalorder %s334, %s348
    %p350 = scmp.eq.s32.totalorder %s25, 0
    %p351 = por %p349, %p350
    %s352 = ssub.s32 %s26, %s38
    %p353 = scmp.eq.s32.totalorder %s352, 0
    %s355 = sadd.s32 %s354, 1
    %s356 = scalar_select %p353, %s354, %s355
    %p359 = pneg %p353
    %p360 = scmp.eq.s32.totalorder %s19, 3
    %p361 = por %p359, %p360
    %p362 = scmp.ne.s32.totalorder %s354, %s357
    %p363 = scmp.eq.s32.totalorder %s19, 0
    %p364 = por %p362, %p363
    %p365 = scmp.ne.s32.totalorder %s354, %s357
    %p366 = scmp.eq.s32.totalorder %s24, 3
    %p367 = por %p365, %p366
    %p368 = scmp.ne.s32.totalorder %s357, %s358
    %p369 = scmp.eq.s32.totalorder %s24, 0
    %p370 = por %p368, %p369
    %p371 = scmp.ne.s32.totalorder %s357, %s358
    %p372 = scmp.eq.s32.totalorder %s25, 3
    %p373 = por %p371, %p372
    %p375 = scmp.ne.s32.totalorder %s358, %s374
    %p376 = scmp.eq.s32.totalorder %s25, 0
    %p377 = por %p375, %p376
    %p378 = scmp.le.s32.totalorder 1, %s19
    %p379 = scmp.lt.s32.totalorder %s19, 5
    %p380 = pnand %p378, %p379
    %p381 = pneg %p380
    // Predicated region
    $region9: #{multimodal_forward.3} parent=5 // pred_check
      _
    $region10: #{multimodal_forward.3} parent=5 // pred_check_branch
      %383 = sbr.rel (%p380) target = $region12
    $region11: #{multimodal_forward.3} parent=5 // pred_region
      %s384 = ssub.s32 %s19, 1
      // Predicated region
      $region13: #{multimodal_forward.3} parent=11 // pred_check
        %p385 = pneg %p104
      $region14: #{multimodal_forward.3} parent=11 // pred_check_branch
        %387 = sbr.rel (%p385) target = $region16
      $region15: #{multimodal_forward.3} parent=11 // pred_region
        _
      $region16: #{multimodal_forward.3} parent=11 // pred_fallthru
        _
      // Predicated region
      $region17: #{multimodal_forward.3} parent=11 // pred_check
        %p388 = pneg %p125
      $region18: #{multimodal_forward.3} parent=11 // pred_check_branch
        %390 = sbr.rel (%p388) target = $region20
      $region19: #{multimodal_forward.3} parent=11 // pred_region
        _
      $region20: #{multimodal_forward.3} parent=11 // pred_fallthru
        _
      // Predicated region
      $region21: #{multimodal_forward.3} parent=11 // pred_check
        %p391 = pneg %p146
      $region22: #{multimodal_forward.3} parent=11 // pred_check_branch
        %393 = sbr.rel (%p391) target = $region24
      $region23: #{multimodal_forward.3} parent=11 // pred_region
        _
      $region24: #{multimodal_forward.3} parent=11 // pred_fallthru
        _
      // Predicated region
      $region25: #{multimodal_forward.3} parent=11 // pred_check
        %p394 = pneg %p323
      $region26: #{multimodal_forward.3} parent=11 // pred_check_branch
        %396 = sbr.rel (%p394) target = $region28
      $region27: #{multimodal_forward.3} parent=11 // pred_region
        _
      $region28: #{multimodal_forward.3} parent=11 // pred_fallthru
        _
      // Predicated region
      $region29: #{multimodal_forward.3} parent=11 // pred_check
        %p397 = pneg %p344
      $region30: #{multimodal_forward.3} parent=11 // pred_check_branch
        %399 = sbr.rel (%p397) target = $region32
      $region31: #{multimodal_forward.3} parent=11 // pred_region
        _
      $region32: #{multimodal_forward.3} parent=11 // pred_fallthru
        _
    $region12: #{multimodal_forward.3} parent=5 // pred_fallthru
      _
    %p400 = scmp.lt.s32.totalorder %s19, 4
    // Predicated region
    $region33: #{multimodal_forward.3} parent=5 // pred_check
      %p401 = pneg %p400
    $region34: #{multimodal_forward.3} parent=5 // pred_check_branch
      %403 = sbr.rel (%p401) target = $region36
    $region35: #{multimodal_forward.3} parent=5 // pred_region
      // Predicated region
      $region37: #{multimodal_forward.3} parent=35 // pred_check
        %p404 = pneg %p51
      $region38: #{multimodal_forward.3} parent=35 // pred_check_branch
        %406 = sbr.rel (%p404) target = $region40
      $region39: #{multimodal_forward.3} parent=35 // pred_region
        %p407 = scmp.lt.s32.totalorder %s26, 1
        %s408 = scalar_select %p407, %s26, 1
        %s409 = smul.addr %s408, 2
        %s410 = smul.addr %s409, 8
        %s411 = scalar_lea.vmem %s0, %s410
      $region40: #{multimodal_forward.3} parent=35 // pred_fallthru
        _
      // Predicated region
      $region41: #{multimodal_forward.3} parent=35 // pred_check
        %p412 = pneg %p77
      $region42: #{multimodal_forward.3} parent=35 // pred_check_branch
        %414 = sbr.rel (%p412) target = $region44
      $region43: #{multimodal_forward.3} parent=35 // pred_region
        %p415 = scmp.lt.s32.totalorder %s26, 1
        %s416 = scalar_select %p415, %s26, 1
        %s417 = smul.addr %s416, 2
        %s418 = smul.addr %s417, 8
        %s419 = scalar_lea.vmem %s1, %s418
      $region44: #{multimodal_forward.3} parent=35 // pred_fallthru
        _
      // Predicated region
      $region45: #{multimodal_forward.3} parent=35 // pred_check
        %p420 = pneg %p166
      $region46: #{multimodal_forward.3} parent=35 // pred_check_branch
        %422 = sbr.rel (%p420) target = $region48
      $region47: #{multimodal_forward.3} parent=35 // pred_region
        %p423 = scmp.lt.s32.totalorder %s27, 1
        %s424 = scalar_select %p423, %s27, 1
        %s425 = scalar_lea.vmem %s5, %s424
      $region48: #{multimodal_forward.3} parent=35 // pred_fallthru
        _
      // Predicated region
      $region49: #{multimodal_forward.3} parent=35 // pred_check
        %p426 = pneg %p192
      $region50: #{multimodal_forward.3} parent=35 // pred_check_branch
        %428 = sbr.rel (%p426) target = $region52
      $region51: #{multimodal_forward.3} parent=35 // pred_region
        %p429 = scmp.lt.s32.totalorder %s27, 1
        %s430 = scalar_select %p429, %s27, 1
        %s431 = scalar_lea.vmem %s6, %s430
      $region52: #{multimodal_forward.3} parent=35 // pred_fallthru
        _
      // Predicated region
      $region53: #{multimodal_forward.3} parent=35 // pred_check
        %p432 = pneg %p218
      $region54: #{multimodal_forward.3} parent=35 // pred_check_branch
        %434 = sbr.rel (%p432) target = $region56
      $region55: #{multimodal_forward.3} parent=35 // pred_region
        %p435 = scmp.lt.s32.totalorder %s27, 1
        %s436 = scalar_select %p435, %s27, 1
        %s437 = smul.addr %s436, 48
        %s438 = smul.addr %s437, 4
        %s439 = scalar_lea.vmem %s7, %s438
      $region56: #{multimodal_forward.3} parent=35 // pred_fallthru
        _
      // Predicated region
      $region57: #{multimodal_forward.3} parent=35 // pred_check
        %p440 = pneg %p244
      $region58: #{multimodal_forward.3} parent=35 // pred_check_branch
        %442 = sbr.rel (%p440) target = $region60
      $region59: #{multimodal_forward.3} parent=35 // pred_region
        %p443 = scmp.lt.s32.totalorder %s27, 1
        %s444 = scalar_select %p443, %s27, 1
        %s445 = smul.addr %s444, 16
        %s446 = smul.addr %s445, 4
        %s447 = scalar_lea.vmem %s8, %s446
      $region60: #{multimodal_forward.3} parent=35 // pred_fallthru
        _
      // Predicated region
      $region61: #{multimodal_forward.3} parent=35 // pred_check
        %p448 = pneg %p270
      $region62: #{multimodal_forward.3} parent=35 // pred_check_branch
        %450 = sbr.rel (%p448) target = $region64
      $region63: #{multimodal_forward.3} parent=35 // pred_region
        %p451 = scmp.lt.s32.totalorder %s27, 1
        %s452 = scalar_select %p451, %s27, 1
        %s453 = smul.addr %s452, 64
        %s454 = smul.addr %s453, 4
        %s455 = scalar_lea.vmem %s9, %s454
      $region64: #{multimodal_forward.3} parent=35 // pred_fallthru
        _
      // Predicated region
      $region65: #{multimodal_forward.3} parent=35 // pred_check
        %p456 = pneg %p296
      $region66: #{multimodal_forward.3} parent=35 // pred_check_branch
        %458 = sbr.rel (%p456) target = $region68
      $region67: #{multimodal_forward.3} parent=35 // pred_region
        %p459 = scmp.lt.s32.totalorder %s27, 1
        %s460 = scalar_select %p459, %s27, 1
        %s461 = smul.addr %s460, 32
        %s462 = smul.addr %s461, 4
        %s463 = scalar_lea.vmem %s10, %s462
      $region68: #{multimodal_forward.3} parent=35 // pred_fallthru
        _
    $region36: #{multimodal_forward.3} parent=5 // pred_fallthru
      _
    %p464 = scmp.le.s32.totalorder 1, %s19
    %p465 = scmp.lt.s32.totalorder %s19, 5
    %p466 = pnand %p464, %p465
    %p467 = pneg %p466
    // Predicated region
    $region69: #{multimodal_forward.3} parent=5 // pred_check
      _
    $region70: #{multimodal_forward.3} parent=5 // pred_check_branch
      %469 = sbr.rel (%p466) target = $region72
    $region71: #{multimodal_forward.3} parent=5 // pred_region
      %s470 = ssub.s32 %s19, 1
      %p471 = scmp.lt.s32.totalorder %s28, 1
      %s472 = scalar_select %p471, %s28, 1
      %s473 = smul.addr %s472, 2
      %s474 = smul.addr %s473, 8
      %s475 = scalar_lea.vmem %s0, %s474
      %p476 = pneg %p57
      %p477 = pneg %p54
      %p478 = scmp.lt.s32.totalorder %s28, 1
      %s479 = scalar_select %p478, %s28, 1
      %s480 = smul.addr %s479, 2
      %s481 = smul.addr %s480, 8
      %s482 = scalar_lea.vmem %s1, %s481
      %p483 = pneg %p83
      %p484 = pneg %p80
      %p485 = pneg %p104
      %p486 = pneg %p101
      %p487 = pneg %p125
      %p488 = pneg %p122
      %p489 = pneg %p146
      %p490 = pneg %p143
      %p491 = scmp.lt.s32.totalorder %s29, 1
      %s492 = scalar_select %p491, %s29, 1
      %s493 = scalar_lea.vmem %s5, %s492
      %p494 = pneg %p172
      %p495 = pneg %p169
      %p496 = scmp.lt.s32.totalorder %s29, 1
      %s497 = scalar_select %p496, %s29, 1
      %s498 = scalar_lea.vmem %s6, %s497
      %p499 = pneg %p198
      %p500 = pneg %p195
      %p501 = scmp.lt.s32.totalorder %s29, 1
      %s502 = scalar_select %p501, %s29, 1
      %s503 = smul.addr %s502, 48
      %s504 = smul.addr %s503, 4
      %s505 = scalar_lea.vmem %s7, %s504
      %p506 = pneg %p224
      %p507 = pneg %p221
      %p508 = scmp.lt.s32.totalorder %s29, 1
      %s509 = scalar_select %p508, %s29, 1
      %s510 = smul.addr %s509, 16
      %s511 = smul.addr %s510, 4
      %s512 = scalar_lea.vmem %s8, %s511
      %p513 = pneg %p250
      %p514 = pneg %p247
      %p515 = scmp.lt.s32.totalorder %s29, 1
      %s516 = scalar_select %p515, %s29, 1
      %s517 = smul.addr %s516, 64
      %s518 = smul.addr %s517, 4
      %s519 = scalar_lea.vmem %s9, %s518
      %p520 = pneg %p276
      %p521 = pneg %p273
      %p522 = scmp.lt.s32.totalorder %s29, 1
      %s523 = scalar_select %p522, %s29, 1
      %s524 = smul.addr %s523, 32
      %s525 = smul.addr %s524, 4
      %s526 = scalar_lea.vmem %s10, %s525
      %p527 = pneg %p302
      %p528 = pneg %p299
      %p529 = pneg %p323
      %p530 = pneg %p320
      %p531 = pneg %p344
      %p532 = pneg %p341
      %p533 = pneg %p370
      %p534 = pneg %p367
      %p535 = scmp.lt.s32.totalorder %s28, 1
      %s536 = scalar_select %p535, %s28, 1
      %s537 = smul.addr %s536, 4
      %s538 = smul.addr %s537, 8
      %s539 = scalar_lea.vmem %s13, %s538
      %p540 = scmp.lt.s32.totalorder %s28, 1
      %s541 = scalar_select %p540, %s28, 1
      %s542 = smul.addr %s541, 2
      %s543 = smul.addr %s542, 8
      %s544 = scalar_lea.vmem %s0, %s543
      %p545 = scmp.lt.s32.totalorder %s28, 1
      %s546 = scalar_select %p545, %s28, 1
      %s547 = smul.addr %s546, 2
      %s548 = smul.addr %s547, 8
      %s549 = scalar_lea.vmem %s1, %s548
      %p550 = scmp.lt.s32.totalorder %s29, 1
      %s551 = scalar_select %p550, %s29, 1
      %s552 = scalar_lea.vmem %s5, %s551
      %p553 = scmp.lt.s32.totalorder %s29, 1
      %s554 = scalar_select %p553, %s29, 1
      %s555 = scalar_lea.vmem %s6, %s554
      %p556 = scmp.lt.s32.totalorder %s29, 1
      %s557 = scalar_select %p556, %s29, 1
      %s558 = smul.addr %s557, 48
      %s559 = smul.addr %s558, 4
      %s560 = scalar_lea.vmem %s7, %s559
      %p561 = scmp.lt.s32.totalorder %s29, 1
      %s562 = scalar_select %p561, %s29, 1
      %s563 = smul.addr %s562, 16
      %s564 = smul.addr %s563, 4
      %s565 = scalar_lea.vmem %s8, %s564
      %p566 = scmp.lt.s32.totalorder %s29, 1
      %s567 = scalar_select %p566, %s29, 1
      %s568 = smul.addr %s567, 64
      %s569 = smul.addr %s568, 4
      %s570 = scalar_lea.vmem %s9, %s569
      %p571 = scmp.lt.s32.totalorder %s29, 1
      %s572 = scalar_select %p571, %s29, 1
      %s573 = smul.addr %s572, 32
      %s574 = smul.addr %s573, 4
      %s575 = scalar_lea.vmem %s10, %s574
      %p576 = scmp.lt.s32.totalorder %s28, 1
      %s577 = scalar_select %p576, %s28, 1
      %s578 = smul.addr %s577, 4
      %s579 = smul.addr %s578, 8
      %s580 = scalar_lea.vmem %s13, %s579
      %p582 = scmp.eq.s32.totalorder %s29, 0
      // Predicated region
      $region73: #{multimodal_forward.3} parent=71 // pred_check
        %p583 = pneg %p582
      $region74: #{multimodal_forward.3} parent=71 // pred_check_branch
        %585 = sbr.rel (%p583) target = $region76
      $region75: #{multimodal_forward.3} parent=71 // pred_region
        %v586 = vld [vmem:[%s544] sm:$0xff]
        %v587 = vld [vmem:[%s544 + $0x8] sm:$0x1]
        %588 = vst [vmem:[#allocation2] sm:$0xff] %v586
        %589 = vst [vmem:[#allocation2 + $0x8] sm:$0x1] %v587
      $region76: #{multimodal_forward.3} parent=71 // pred_fallthru
        _
      %v590 = vld [vmem:[#allocation2] sm:$0xff]
      %v591 = vld [vmem:[#allocation2 + $0x8] sm:$0x1]
      %v592 = vld [vmem:[%s552] sm:$0x1]
      %v593 = vmul.f32 %v590, %v590
      %v594 = vmul.f32 %v591, %v591
      %595 = vadd.xlane.f32.xlu0 %v593
      %v596 = vpop.xlane.xlu0 %595
      %vm597 = vcmask 1040384
      %v598 = vsel %vm597, %v594, 0.0
      %599 = vadd.xlane.f32.xlu0 %v598
      %v600 = vpop.xlane.xlu0 %599
      %v601 = vrcp.pop 128.0
      %v602 = vmul.f32 %v596, %v601
      %v603 = vmul.f32 %v600, %v601
      %v604 = vadd.f32 %v602, 1e-06
      %v605 = vadd.f32 %v603, 1e-06
      %v606 = vrsqrt.pop %v604
      %v607 = vrsqrt.pop %v605
      %v608 = vmul.f32 %v590, %v606
      %v609 = vmul.f32 %v591, %v607
      %v611 = vlaneseq
      %v612 = vshrl.u32 %v611, 7
      %v613 = vsub.s32 0, %v612
      %v614 = vrot.slane %v592, %v613
      %v616 = vmul.f32 %v608, %v614
      %v617 = vmul.f32 %v609, %v614
      %v618 = vpack.c.bf16 %v617, %v616
      %v619 = vld [vmem:[%s560] sm:$0xff]
      %v620 = vld [vmem:[%s560 + $0x8] sm:$0xf]
      %v621 = vld [vmem:[%s560 + $0xc] sm:$0xff]
      %v622 = vld [vmem:[%s560 + $0x14] sm:$0xf]
      %v623 = vld [vmem:[%s560 + $0x18] sm:$0xff]
      %v624 = vld [vmem:[%s560 + $0x20] sm:$0xf]
      %v625 = vld [vmem:[%s560 + $0x24] sm:$0xff]
      %v626 = vld [vmem:[%s560 + $0x2c] sm:$0xf]
      %v627 = vld [vmem:[%s560 + $0x30] sm:$0xff]
      %v628 = vld [vmem:[%s560 + $0x38] sm:$0xf]
      %v629 = vld [vmem:[%s560 + $0x3c] sm:$0xff]
      %v630 = vld [vmem:[%s560 + $0x44] sm:$0xf]
      %v631 = vld [vmem:[%s560 + $0x48] sm:$0xff]
      %v632 = vld [vmem:[%s560 + $0x50] sm:$0xf]
      %v633 = vld [vmem:[%s560 + $0x54] sm:$0xff]
      %v634 = vld [vmem:[%s560 + $0x5c] sm:$0xf]
      %v635 = vld [vmem:[%s560 + $0x60] sm:$0xff]
      %v636 = vld [vmem:[%s560 + $0x68] sm:$0xf]
      %v637 = vld [vmem:[%s560 + $0x6c] sm:$0xff]
      %v638 = vld [vmem:[%s560 + $0x74] sm:$0xf]
      %v639 = vld [vmem:[%s560 + $0x78] sm:$0xff]
      %v640 = vld [vmem:[%s560 + $0x80] sm:$0xf]
      %v641 = vld [vmem:[%s560 + $0x84] sm:$0xff]
      %v642 = vld [vmem:[%s560 + $0x8c] sm:$0xf]
      %v643 = vld [vmem:[%s560 + $0x90] sm:$0xff]
      %v644 = vld [vmem:[%s560 + $0x98] sm:$0xf]
      %v645 = vld [vmem:[%s560 + $0x9c] sm:$0xff]
      %v646 = vld [vmem:[%s560 + $0xa4] sm:$0xf]
      %v647 = vld [vmem:[%s560 + $0xa8] sm:$0xff]
      %v648 = vld [vmem:[%s560 + $0xb0] sm:$0xf]
      %v649 = vld [vmem:[%s560 + $0xb4] sm:$0xff]
      %v650 = vld [vmem:[%s560 + $0xbc] sm:$0xf]
      %v683 = vunpack.c.l.b16 %v619
      %v684 = vunpack.c.h.b16 %v619
      %v685 = vunpack.c.l.b16 %v620
      %v686 = vunpack.c.l.b16 %v621
      %v687 = vunpack.c.h.b16 %v621
      %v688 = vunpack.c.l.b16 %v622
      %v689 = vunpack.c.l.b16 %v623
      %v690 = vunpack.c.h.b16 %v623
      %v691 = vunpack.c.l.b16 %v624
      %v692 = vunpack.c.l.b16 %v625
      %v693 = vunpack.c.h.b16 %v625
      %v694 = vunpack.c.l.b16 %v626
      %v695 = vunpack.c.l.b16 %v627
      %v696 = vunpack.c.h.b16 %v627
      %v697 = vunpack.c.l.b16 %v628
      %v698 = vunpack.c.l.b16 %v629
      %v699 = vunpack.c.h.b16 %v629
      %v700 = vunpack.c.l.b16 %v630
      %v701 = vunpack.c.l.b16 %v631
      %v702 = vunpack.c.h.b16 %v631
      %v703 = vunpack.c.l.b16 %v632
      %v704 = vunpack.c.l.b16 %v633
      %v705 = vunpack.c.h.b16 %v633
      %v706 = vunpack.c.l.b16 %v634
      %v707 = vunpack.c.l.b16 %v635
      %v708 = vunpack.c.h.b16 %v635
      %v709 = vunpack.c.l.b16 %v636
      %v710 = vunpack.c.l.b16 %v637
      %v711 = vunpack.c.h.b16 %v637
      %v712 = vunpack.c.l.b16 %v638
      %v713 = vunpack.c.l.b16 %v639
      %v714 = vunpack.c.h.b16 %v639
      %v715 = vunpack.c.l.b16 %v640
      %v716 = vunpack.c.l.b16 %v641
      %v717 = vunpack.c.h.b16 %v641
      %v718 = vunpack.c.l.b16 %v642
      %v719 = vunpack.c.l.b16 %v643
      %v720 = vunpack.c.h.b16 %v643
      %v721 = vunpack.c.l.b16 %v644
      %v722 = vunpack.c.l.b16 %v645
      %v723 = vunpack.c.h.b16 %v645
      %v724 = vunpack.c.l.b16 %v646
      %v725 = vunpack.c.l.b16 %v647
      %v726 = vunpack.c.h.b16 %v647
      %v727 = vunpack.c.l.b16 %v648
      %v728 = vunpack.c.l.b16 %v649
      %v729 = vunpack.c.h.b16 %v649
      %v730 = vunpack.c.l.b16 %v650
      %v731 = vpack.c.b16 %v686, %v683
      %v732 = vpack.c.b16 %v687, %v684
      %v733 = vpack.c.b16 %v688, %v685
      %v734 = vpack.c.b16 %v692, %v689
      %v735 = vpack.c.b16 %v693, %v690
      %v736 = vpack.c.b16 %v694, %v691
      %v737 = vpack.c.b16 %v698, %v695
      %v738 = vpack.c.b16 %v699, %v696
      %v739 = vpack.c.b16 %v700, %v697
      %v740 = vpack.c.b16 %v704, %v701
      %v741 = vpack.c.b16 %v705, %v702
      %v742 = vpack.c.b16 %v706, %v703
      %v743 = vpack.c.b16 %v710, %v707
      %v744 = vpack.c.b16 %v711, %v708
      %v745 = vpack.c.b16 %v712, %v709
      %v746 = vpack.c.b16 %v716, %v713
      %v747 = vpack.c.b16 %v717, %v714
      %v748 = vpack.c.b16 %v718, %v715
      %v749 = vpack.c.b16 %v722, %v719
      %v750 = vpack.c.b16 %v723, %v720
      %v751 = vpack.c.b16 %v724, %v721
      %v752 = vpack.c.b16 %v728, %v725
      %v753 = vpack.c.b16 %v729, %v726
      %v754 = vpack.c.b16 %v730, %v727
      %779 = vmatprep.subr.bf16.mxu0 %v732
      %780 = vmatpush1.bf16.msra.mxu0 %v731
      %781 = vmatprep.subr.bf16.mxu0 %v735
      %782 = vmatpush1.bf16.msra.mxu0 %v734
      %783 = vmatprep.subr.bf16.mxu0 %v738
      %784 = vmatpush1.bf16.msra.mxu0 %v737
      %785 = vmatprep.subr.bf16.mxu0 %v741
      %786 = vmatpush1.bf16.msra.mxu0 %v740
      %787 = vmatprep.subr.bf16.mxu0 %v744
      %788 = vmatpush1.bf16.msra.mxu0 %v743
      %789 = vmatprep.subr.bf16.mxu0 %v747
      %790 = vmatpush1.bf16.msra.mxu0 %v746
      %791 = vmatprep.subr.bf16.mxu0 %v750
      %792 = vmatpush1.bf16.msra.mxu0 %v749
      %793 = vmatprep.subr.bf16.mxu0 %v753
      %794 = vmatpush1.bf16.msra.mxu0 %v752
      %795 = vmatprep.subr.bf16.mxu0 0
      %796 = vmatpush1.bf16.msra.mxu0 0
      %797 = vmatprep.subr.bf16.mxu0 0
      %798 = vmatpush1.bf16.msra.mxu0 0
      %799 = vmatprep.subr.bf16.mxu0 0
      %800 = vmatpush1.bf16.msra.mxu0 0
      %801 = vmatprep.subr.bf16.mxu0 0
      %802 = vmatpush1.bf16.msra.mxu0 0
      %803 = vmatprep.subr.bf16.mxu0 0
      %804 = vmatpush1.bf16.msra.mxu0 0
      %805 = vmatprep.subr.bf16.mxu0 0
      %806 = vmatpush1.bf16.msra.mxu0 0
      %807 = vmatprep.subr.bf16.mxu0 0
      %808 = vmatpush1.bf16.msra.mxu0 0
      %809 = vmatprep.subr.bf16.mxu0 0
      %810 = vmatpush1.bf16.msra.mxu0 0
      %811 = vmatprep.mubr.bf16.mxu0 0
      %812 = vmatmul.mubr.bf16.gmra.mrb[0].mxu0 %v618
      %v813 = vpop.f32.mrb[0].mxu0
      %v814 = vadd.f32 0.0, %v813
      %v815 = vpop.f32.mrb[0].mxu0
      %v816 = vadd.f32 0.0, %v815
      %v817 = vpop.f32.mrb[0].mxu0
      %v818 = vadd.f32 0.0, %v817
      %v819 = vpop.f32.mrb[0].mxu0
      %v820 = vadd.f32 0.0, %v819
      %821 = vdwg.mxu0
      %822 = vmatprep.subr.bf16.mxu0 0
      %823 = vmatpush1.bf16.msra.mxu0 %v733
      %824 = vmatprep.subr.bf16.mxu0 0
      %825 = vmatpush1.bf16.msra.mxu0 %v736
      %826 = vmatprep.subr.bf16.mxu0 0
      %827 = vmatpush1.bf16.msra.mxu0 %v739
      %828 = vmatprep.subr.bf16.mxu0 0
      %829 = vmatpush1.bf16.msra.mxu0 %v742
      %830 = vmatprep.subr.bf16.mxu0 0
      %831 = vmatpush1.bf16.msra.mxu0 %v745
      %832 = vmatprep.subr.bf16.mxu0 0
      %833 = vmatpush1.bf16.msra.mxu0 %v748
      %834 = vmatprep.subr.bf16.mxu0 0
      %835 = vmatpush1.bf16.msra.mxu0 %v751
      %836 = vmatprep.subr.bf16.mxu0 0
      %837 = vmatpush1.bf16.msra.mxu0 %v754
      %838 = vmatprep.subr.bf16.mxu0 0
      %839 = vmatpush1.bf16.msra.mxu0 0
      %840 = vmatprep.subr.bf16.mxu0 0
      %841 = vmatpush1.bf16.msra.mxu0 0
      %842 = vmatprep.subr.bf16.mxu0 0
      %843 = vmatpush1.bf16.msra.mxu0 0
      %844 = vmatprep.subr.bf16.mxu0 0
      %845 = vmatpush1.bf16.msra.mxu0 0
      %846 = vmatprep.subr.bf16.mxu0 0
      %847 = vmatpush1.bf16.msra.mxu0 0
      %848 = vmatprep.subr.bf16.mxu0 0
      %849 = vmatpush1.bf16.msra.mxu0 0
      %850 = vmatprep.subr.bf16.mxu0 0
      %851 = vmatpush1.bf16.msra.mxu0 0
      %852 = vmatprep.subr.bf16.mxu0 0
      %853 = vmatpush1.bf16.msra.mxu0 0
      %854 = vmatprep.mubr.bf16.mxu0 0
      %855 = vmatmul.mubr.bf16.gmra.mrb[0].mxu0 %v618
      %v856 = vpop.f32.mrb[0].mxu0
      %v857 = vadd.f32 0.0, %v856
      %v858 = vpop.f32.mrb[0].mxu0
      %v859 = vpop.f32.mrb[0].mxu0
      %v860 = vadd.f32 0.0, %v859
      %v861 = vpop.f32.mrb[0].mxu0
      %862 = vdwg.mxu0
      %v863 = vld [vmem:[%s2] sm:$0xff]
      %v864 = vld [vmem:[%s2 + $0x8] sm:$0x1]
      %v865 = vld [vmem:[%s3] sm:$0xff]
      %v866 = vld [vmem:[%s3 + $0x8] sm:$0x1]
      %v867 = vld [vmem:[%s4] sm:$0xf]
      %v868 = vld [vmem:[%s4 + $0x4] sm:$0xf]
      %v869 = vld [vmem:[%s4 + $0x8] sm:$0xf]
      %v870 = vld [vmem:[%s4 + $0xc] sm:$0xf]
      %v871 = vld [vmem:[%s4 + $0x10] sm:$0xf]
      %v872 = vld [vmem:[%s4 + $0x14] sm:$0xf]
      %v873 = vld [vmem:[%s4 + $0x18] sm:$0xf]
      %v874 = vld [vmem:[%s4 + $0x1c] sm:$0xf]
      %v875 = vld [vmem:[%s4 + $0x20] sm:$0xf]
      %v876 = vld [vmem:[%s4 + $0x24] sm:$0xf]
      %v877 = vld [vmem:[%s4 + $0x28] sm:$0xf]
      %v878 = vld [vmem:[%s4 + $0x2c] sm:$0xf]
      %v879 = vld [vmem:[%s4 + $0x30] sm:$0xf]
      %v880 = vld [vmem:[%s4 + $0x34] sm:$0xf]
      %v881 = vld [vmem:[%s4 + $0x38] sm:$0xf]
      %v882 = vld [vmem:[%s4 + $0x3c] sm:$0xf]
      %v883 = vpack.c.bf16 %v818, %v814
      %v900 = vunpack.c.l.b16 %v867
      %v901 = vunpack.c.l.b16 %v868
      %v902 = vunpack.c.l.b16 %v869
      %v903 = vunpack.c.l.b16 %v870
      %v904 = vunpack.c.l.b16 %v871
      %v905 = vunpack.c.l.b16 %v872
      %v906 = vunpack.c.l.b16 %v873
      %v907 = vunpack.c.l.b16 %v874
      %v908 = vunpack.c.l.b16 %v875
      %v909 = vunpack.c.l.b16 %v876
      %v910 = vunpack.c.l.b16 %v877
      %v911 = vunpack.c.l.b16 %v878
      %v912 = vunpack.c.l.b16 %v879
      %v913 = vunpack.c.l.b16 %v880
      %v914 = vunpack.c.l.b16 %v881
      %v915 = vunpack.c.l.b16 %v882
      %v916 = vpack.c.b16 %v901, %v900
      %v917 = vpack.c.b16 %v903, %v902
      %v918 = vpack.c.b16 %v905, %v904
      %v919 = vpack.c.b16 %v907, %v906
      %v920 = vpack.c.b16 %v909, %v908
      %v921 = vpack.c.b16 %v911, %v910
      %v922 = vpack.c.b16 %v913, %v912
      %v923 = vpack.c.b16 %v915, %v914
      %932 = vmatprep.subr.bf16.mxu0 0
      %933 = vmatpush1.bf16.msra.mxu0 %v916
      %934 = vmatprep.subr.bf16.mxu0 0
      %935 = vmatpush1.bf16.msra.mxu0 %v917
      %936 = vmatprep.subr.bf16.mxu0 0
      %937 = vmatpush1.bf16.msra.mxu0 %v918
      %938 = vmatprep.subr.bf16.mxu0 0
      %939 = vmatpush1.bf16.msra.mxu0 %v919
      %940 = vmatprep.subr.bf16.mxu0 0
      %941 = vmatpush1.bf16.msra.mxu0 %v920
      %942 = vmatprep.subr.bf16.mxu0 0
      %943 = vmatpush1.bf16.msra.mxu0 %v921
      %944 = vmatprep.subr.bf16.mxu0 0
      %945 = vmatpush1.bf16.msra.mxu0 %v922
      %946 = vmatprep.subr.bf16.mxu0 0
      %947 = vmatpush1.bf16.msra.mxu0 %v923
      %948 = vmatprep.subr.bf16.mxu0 0
      %949 = vmatpush1.bf16.msra.mxu0 0
      %950 = vmatprep.subr.bf16.mxu0 0
      %951 = vmatpush1.bf16.msra.mxu0 0
      %952 = vmatprep.subr.bf16.mxu0 0
      %953 = vmatpush1.bf16.msra.mxu0 0
      %954 = vmatprep.subr.bf16.mxu0 0
      %955 = vmatpush1.bf16.msra.mxu0 0
      %956 = vmatprep.subr.bf16.mxu0 0
      %957 = vmatpush1.bf16.msra.mxu0 0
      %958 = vmatprep.subr.bf16.mxu0 0
      %959 = vmatpush1.bf16.msra.mxu0 0
      %960 = vmatprep.subr.bf16.mxu0 0
      %961 = vmatpush1.bf16.msra.mxu0 0
      %962 = vmatprep.subr.bf16.mxu0 0
      %963 = vmatpush1.bf16.msra.mxu0 0
      %964 = vmatprep.mubr.bf16.mxu0 0
      %965 = vmatmul.mubr.bf16.gmra.mrb[0].mxu0 %v883
      %v966 = vpop.f32.mrb[0].mxu0
      %v967 = vadd.f32 0.0, %v966
      %v968 = vpop.f32.mrb[0].mxu0
      %v969 = vpop.f32.mrb[0].mxu0
      %v970 = vadd.f32 0.0, %v969
      %v971 = vpop.f32.mrb[0].mxu0
      %972 = vdwg.mxu0
      %v973 = vmul.f32 %v814, %v863
      %v974 = vmul.f32 %v818, %v864
      %v975 = vmul.f32 %v967, %v865
      %v976 = vmul.f32 %v970, %v866
      %v977 = vadd.f32 %v973, %v975
      %v978 = vadd.f32 %v974, %v976
      %v979 = vpack.c.bf16 %v820, %v816
      %980 = vmatprep.subr.bf16.mxu0 0
      %981 = vmatpush1.bf16.msra.mxu0 %v916
      %982 = vmatprep.subr.bf16.mxu0 0
      %983 = vmatpush1.bf16.msra.mxu0 %v917
      %984 = vmatprep.subr.bf16.mxu0 0
      %985 = vmatpush1.bf16.msra.mxu0 %v918
      %986 = vmatprep.subr.bf16.mxu0 0
      %987 = vmatpush1.bf16.msra.mxu0 %v919
      %988 = vmatprep.subr.bf16.mxu0 0
      %989 = vmatpush1.bf16.msra.mxu0 %v920
      %990 = vmatprep.subr.bf16.mxu0 0
      %991 = vmatpush1.bf16.msra.mxu0 %v921
      %992 = vmatprep.subr.bf16.mxu0 0
      %993 = vmatpush1.bf16.msra.mxu0 %v922
      %994 = vmatprep.subr.bf16.mxu0 0
      %995 = vmatpush1.bf16.msra.mxu0 %v923
      %996 = vmatprep.subr.bf16.mxu0 0
      %997 = vmatpush1.bf16.msra.mxu0 0
      %998 = vmatprep.subr.bf16.mxu0 0
      %999 = vmatpush1.bf16.msra.mxu0 0
      %1000 = vmatprep.subr.bf16.mxu0 0
      %1001 = vmatpush1.bf16.msra.mxu0 0
      %1002 = vmatprep.subr.bf16.mxu0 0
      %1003 = vmatpush1.bf16.msra.mxu0 0
      %1004 = vmatprep.subr.bf16.mxu0 0
      %1005 = vmatpush1.bf16.msra.mxu0 0
      %1006 = vmatprep.subr.bf16.mxu0 0
      %1007 = vmatpush1.bf16.msra.mxu0 0
      %1008 = vmatprep.subr.bf16.mxu0 0
      %1009 = vmatpush1.bf16.msra.mxu0 0
      %1010 = vmatprep.subr.bf16.mxu0 0
      %1011 = vmatpush1.bf16.msra.mxu0 0
      %1012 = vmatprep.mubr.bf16.mxu0 0
      %1013 = vmatmul.mubr.bf16.gmra.mrb[0].mxu0 %v979
      %v1014 = vpop.f32.mrb[0].mxu0
      %v1015 = vadd.f32 0.0, %v1014
      %v1016 = vpop.f32.mrb[0].mxu0
      %v1017 = vpop.f32.mrb[0].mxu0
      %v1018 = vadd.f32 0.0, %v1017
      %v1019 = vpop.f32.mrb[0].mxu0
      %1020 = vdwg.mxu0
      %v1021 = vmul.f32 %v816, %v863
      %v1022 = vmul.f32 %v820, %v864
      %v1023 = vmul.f32 %v1015, %v865
      %v1024 = vmul.f32 %v1018, %v866
      %v1025 = vadd.f32 %v1021, %v1023
      %v1026 = vadd.f32 %v1022, %v1024
      %v1027 = vld [vmem:[%s549] sm:$0xff]
      %v1028 = vld [vmem:[%s549 + $0x8] sm:$0x1]
      %v1029 = vld [vmem:[%s565] sm:$0xf]
      %v1030 = vld [vmem:[%s565 + $0x4] sm:$0xf]
      %v1031 = vld [vmem:[%s565 + $0x8] sm:$0xf]
      %v1032 = vld [vmem:[%s565 + $0xc] sm:$0xf]
      %v1033 = vld [vmem:[%s565 + $0x10] sm:$0xf]
      %v1034 = vld [vmem:[%s565 + $0x14] sm:$0xf]
      %v1035 = vld [vmem:[%s565 + $0x18] sm:$0xf]
      %v1036 = vld [vmem:[%s565 + $0x1c] sm:$0xf]
      %v1037 = vld [vmem:[%s565 + $0x20] sm:$0xf]
      %v1038 = vld [vmem:[%s565 + $0x24] sm:$0xf]
      %v1039 = vld [vmem:[%s565 + $0x28] sm:$0xf]
      %v1040 = vld [vmem:[%s565 + $0x2c] sm:$0xf]
      %v1041 = vld [vmem:[%s565 + $0x30] sm:$0xf]
      %v1042 = vld [vmem:[%s565 + $0x34] sm:$0xf]
      %v1043 = vld [vmem:[%s565 + $0x38] sm:$0xf]
      %v1044 = vld [vmem:[%s565 + $0x3c] sm:$0xf]
      %v1045 = vpack.c.bf16 %v978, %v977
      %v1046 = vpack.c.bf16 %v1026, %v1025
      %vm1047 = vcmask 261120
      %v1049 = vsel %vm1047, %v1045, 0
      %v1052 = vsel %vm1047, %v1046, 0
      %1054 = vmatprep.subr.bf16.mxu0 0
      %1055 = vmatpush1.bf16.xpose.msra.mxu0 %v1052
      %1056 = vmatprep.subr.bf16.mxu0 0
      %1057 = vmatpush1.bf16.xpose.msra.mxu0 0
      %1058 = vmatprep.subr.bf16.mxu0 0
      %1059 = vmatpush1.bf16.xpose.msra.mxu0 0
      %1060 = vmatprep.subr.bf16.mxu0 0
      %1061 = vmatpush1.bf16.xpose.msra.mxu0 0
      %1062 = vmatprep.subr.bf16.mxu0 0
      %1063 = vmatpush1.bf16.xpose.msra.mxu0 0
      %1064 = vmatprep.subr.bf16.mxu0 0
      %1065 = vmatpush1.bf16.xpose.msra.mxu0 0
      %1066 = vmatprep.subr.bf16.mxu0 0
      %1067 = vmatpush1.bf16.xpose.msra.mxu0 0
      %1068 = vmatprep.subr.bf16.mxu0 0
      %1069 = vmatpush1.bf16.xpose.msra.mxu0 0
      %1070 = vmatprep.subr.bf16.mxu0 0
      %1071 = vmatpush1.bf16.xpose.msra.mxu0 0
      %1072 = vmatprep.subr.bf16.mxu0 0
      %1073 = vmatpush1.bf16.xpose.msra.mxu0 0
      %1074 = vmatprep.subr.bf16.mxu0 0
      %1075 = vmatpush1.bf16.xpose.msra.mxu0 0
      %1076 = vmatprep.subr.bf16.mxu0 0
      %1077 = vmatpush1.bf16.xpose.msra.mxu0 0
      %1078 = vmatprep.subr.bf16.mxu0 0
      %1079 = vmatpush1.bf16.xpose.msra.mxu0 0
      %1080 = vmatprep.subr.bf16.mxu0 0
      %1081 = vmatpush1.bf16.xpose.msra.mxu0 0
      %1082 = vmatprep.subr.bf16.mxu0 0
      %1083 = vmatpush1.bf16.xpose.msra.mxu0 0
      %1084 = vmatprep.subr.bf16.mxu0 0
      %1085 = vmatpush1.bf16.xpose.msra.mxu0 0
      %1086 = vmatprep.mubr.bf16.mxu0 0
      %1087 = vmatmul.mubr.bf16.gmra.mrb[0].mxu0 %v1049
      %v1088 = vpop.f32.mrb[0].mxu0
      %v1089 = vadd.f32 0.0, %v1088
      %v1090 = vpop.f32.mrb[0].mxu0
      %v1091 = vpop.f32.mrb[0].mxu0
      %v1092 = vadd.f32 0.0, %v1091
      %v1093 = vpop.f32.mrb[0].mxu0
      %1094 = vdwg.mxu0
      %v1095 = vmul.f32 %v1089, 0.17677669
      %v1096 = vmul.f32 %v1092, 0.17677669
      %v1097 = vadd.f32 %v1095, %v1027
      %v1098 = vadd.f32 %v1096, %v1028
      %vm1099 = vcmask 72704
      %v1100 = vsel %vm1099, %v1097, -inf
      %1101 = vmax.xlane.f32.xlu0 %v1100
      %v1102 = vpop.xlane.xlu0 %1101
      %vm1103 = vcmask 65536
      %v1104 = vsel %vm1103, %v1098, -inf
      %1105 = vmax.xlane.f32.xlu0 %v1104
      %v1106 = vpop.xlane.xlu0 %1105
      %v1107 = vsub.f32 %v1097, %v1102
      %v1108 = vsub.f32 %v1098, %v1106
      %v1109 = vmul.f32 %v1107, 1.442695
      %v1110 = vpow.pop %v1109
      %v1111 = vmul.f32 %v1108, 1.442695
      %v1112 = vpow.pop %v1111
      %v1113 = vsel %vm1099, %v1110, 0.0
      %1114 = vadd.xlane.f32.xlu0 %v1113
      %v1115 = vpop.xlane.xlu0 %1114
      %v1116 = vsel %vm1103, %v1112, 0.0
      %1117 = vadd.xlane.f32.xlu0 %v1116
      %v1118 = vpop.xlane.xlu0 %1117
      %v1119 = vrcp.pop %v1115
      %v1120 = vrcp.pop %v1118
      %v1121 = vmul.f32 %v1110, %v1119
      %v1122 = vmul.f32 %v1112, %v1120
      %v1123 = vpack.c.bf16 %v1122, %v1121
      %v1124 = vpack.c.bf16 %v860, %v857
      %v1126 = vsel %vm1099, %v1123, 0
      %vm1128 = vcmask 1043456
      %vm1129 = vcmask 1044480
      %v1130 = vsel %vm1128, 4294967295, 65535
      %v1131 = vsel %vm1129, %v1130, 0
      %v1133 = vand.u32 %v1124, %v1131
      %1135 = vmatprep.subr.bf16.mxu0 0
      %1136 = vmatpush1.bf16.msra.mxu0 %v1133
      %1137 = vmatprep.subr.bf16.mxu0 0
      %1138 = vmatpush1.bf16.msra.mxu0 0
      %1139 = vmatprep.subr.bf16.mxu0 0
      %1140 = vmatpush1.bf16.msra.mxu0 0
      %1141 = vmatprep.subr.bf16.mxu0 0
      %1142 = vmatpush1.bf16.msra.mxu0 0
      %1143 = vmatprep.subr.bf16.mxu0 0
      %1144 = vmatpush1.bf16.msra.mxu0 0
      %1145 = vmatprep.subr.bf16.mxu0 0
      %1146 = vmatpush1.bf16.msra.mxu0 0
      %1147 = vmatprep.subr.bf16.mxu0 0
      %1148 = vmatpush1.bf16.msra.mxu0 0
      %1149 = vmatprep.subr.bf16.mxu0 0
      %1150 = vmatpush1.bf16.msra.mxu0 0
      %1151 = vmatprep.subr.bf16.mxu0 0
      %1152 = vmatpush1.bf16.msra.mxu0 0
      %1153 = vmatprep.subr.bf16.mxu0 0
      %1154 = vmatpush1.bf16.msra.mxu0 0
      %1155 = vmatprep.subr.bf16.mxu0 0
      %1156 = vmatpush1.bf16.msra.mxu0 0
      %1157 = vmatprep.subr.bf16.mxu0 0
      %1158 = vmatpush1.bf16.msra.mxu0 0
      %1159 = vmatprep.subr.bf16.mxu0 0
      %1160 = vmatpush1.bf16.msra.mxu0 0
      %1161 = vmatprep.subr.bf16.mxu0 0
      %1162 = vmatpush1.bf16.msra.mxu0 0
      %1163 = vmatprep.subr.bf16.mxu0 0
      %1164 = vmatpush1.bf16.msra.mxu0 0
      %1165 = vmatprep.subr.bf16.mxu0 0
      %1166 = vmatpush1.bf16.msra.mxu0 0
      %1167 = vmatprep.mubr.bf16.mxu0 0
      %1168 = vmatmul.mubr.bf16.gmra.mrb[0].mxu0 %v1126
      %v1169 = vpop.f32.mrb[0].mxu0
      %v1170 = vadd.f32 0.0, %v1169
      %v1171 = vpop.f32.mrb[0].mxu0
      %v1172 = vpop.f32.mrb[0].mxu0
      %v1173 = vadd.f32 0.0, %v1172
      %v1174 = vpop.f32.mrb[0].mxu0
      %1175 = vdwg.mxu0
      %v1176 = vpack.c.bf16 %v1173, %v1170
      %1178 = vrot.lane.b32.xlu0 %v1045, 96
      %v1179 = vpop.permute.xlu0 %1178
      %1181 = vrot.lane.b32.xlu0 %v1046, 96
      %v1182 = vpop.permute.xlu0 %1181
      %v1184 = vsel %vm1047, %v1179, 0
      %v1187 = vsel %vm1047, %v1182, 0
      %1189 = vmatprep.subr.bf16.mxu0 0
      %1190 = vmatpush1.bf16.xpose.msra.mxu0 %v1187
      %1191 = vmatprep.subr.bf16.mxu0 0
      %1192 = vmatpush1.bf16.xpose.msra.mxu0 0
      %1193 = vmatprep.subr.bf16.mxu0 0
      %1194 = vmatpush1.bf16.xpose.msra.mxu0 0
      %1195 = vmatprep.subr.bf16.mxu0 0
      %1196 = vmatpush1.bf16.xpose.msra.mxu0 0
      %1197 = vmatprep.subr.bf16.mxu0 0
      %1198 = vmatpush1.bf16.xpose.msra.mxu0 0
      %1199 = vmatprep.subr.bf16.mxu0 0
      %1200 = vmatpush1.bf16.xpose.msra.mxu0 0
      %1201 = vmatprep.subr.bf16.mxu0 0
      %1202 = vmatpush1.bf16.xpose.msra.mxu0 0
      %1203 = vmatprep.subr.bf16.mxu0 0
      %1204 = vmatpush1.bf16.xpose.msra.mxu0 0
      %1205 = vmatprep.subr.bf16.mxu0 0
      %1206 = vmatpush1.bf16.xpose.msra.mxu0 0
      %1207 = vmatprep.subr.bf16.mxu0 0
      %1208 = vmatpush1.bf16.xpose.msra.mxu0 0
      %1209 = vmatprep.subr.bf16.mxu0 0
      %1210 = vmatpush1.bf16.xpose.msra.mxu0 0
      %1211 = vmatprep.subr.bf16.mxu0 0
      %1212 = vmatpush1.bf16.xpose.msra.mxu0 0
      %1213 = vmatprep.subr.bf16.mxu0 0
      %1214 = vmatpush1.bf16.xpose.msra.mxu0 0
      %1215 = vmatprep.subr.bf16.mxu0 0
      %1216 = vmatpush1.bf16.xpose.msra.mxu0 0
      %1217 = vmatprep.subr.bf16.mxu0 0
      %1218 = vmatpush1.bf16.xpose.msra.mxu0 0
      %1219 = vmatprep.subr.bf16.mxu0 0
      %1220 = vmatpush1.bf16.xpose.msra.mxu0 0
      %1221 = vmatprep.mubr.bf16.mxu0 0
      %1222 = vmatmul.mubr.bf16.gmra.mrb[0].mxu0 %v1184
      %v1223 = vpop.f32.mrb[0].mxu0
      %v1224 = vadd.f32 0.0, %v1223
      %v1225 = vpop.f32.mrb[0].mxu0
      %v1226 = vpop.f32.mrb[0].mxu0
      %v1227 = vadd.f32 0.0, %v1226
      %v1228 = vpop.f32.mrb[0].mxu0
      %1229 = vdwg.mxu0
      %v1230 = vmul.f32 %v1224, 0.17677669
      %v1231 = vmul.f32 %v1227, 0.17677669
      %v1232 = vadd.f32 %v1230, %v1027
      %v1233 = vadd.f32 %v1231, %v1028
      %v1234 = vsel %vm1099, %v1232, -inf
      %1235 = vmax.xlane.f32.xlu0 %v1234
      %v1236 = vpop.xlane.xlu0 %1235
      %v1237 = vsel %vm1103, %v1233, -inf
      %1238 = vmax.xlane.f32.xlu0 %v1237
      %v1239 = vpop.xlane.xlu0 %1238
      %v1240 = vsub.f32 %v1232, %v1236
      %v1241 = vsub.f32 %v1233, %v1239
      %v1242 = vmul.f32 %v1240, 1.442695
      %v1243 = vpow.pop %v1242
      %v1244 = vmul.f32 %v1241, 1.442695
      %v1245 = vpow.pop %v1244
      %v1246 = vsel %vm1099, %v1243, 0.0
      %1247 = vadd.xlane.f32.xlu0 %v1246
      %v1248 = vpop.xlane.xlu0 %1247
      %v1249 = vsel %vm1103, %v1245, 0.0
      %1250 = vadd.xlane.f32.xlu0 %v1249
      %v1251 = vpop.xlane.xlu0 %1250
      %v1252 = vrcp.pop %v1248
      %v1253 = vrcp.pop %v1251
      %v1254 = vmul.f32 %v1243, %v1252
      %v1255 = vmul.f32 %v1245, %v1253
      %v1256 = vpack.c.bf16 %v1255, %v1254
      %1258 = vrot.lane.b32.xlu0 %v1124, 96
      %v1259 = vpop.permute.xlu0 %1258
      %v1261 = vsel %vm1099, %v1256, 0
      %v1264 = vand.u32 %v1259, %v1131
      %1266 = vmatprep.subr.bf16.mxu0 0
      %1267 = vmatpush1.bf16.msra.mxu0 %v1264
      %1268 = vmatprep.subr.bf16.mxu0 0
      %1269 = vmatpush1.bf16.msra.mxu0 0
      %1270 = vmatprep.subr.bf16.mxu0 0
      %1271 = vmatpush1.bf16.msra.mxu0 0
      %1272 = vmatprep.subr.bf16.mxu0 0
      %1273 = vmatpush1.bf16.msra.mxu0 0
      %1274 = vmatprep.subr.bf16.mxu0 0
      %1275 = vmatpush1.bf16.msra.mxu0 0
      %1276 = vmatprep.subr.bf16.mxu0 0
      %1277 = vmatpush1.bf16.msra.mxu0 0
      %1278 = vmatprep.subr.bf16.mxu0 0
      %1279 = vmatpush1.bf16.msra.mxu0 0
      %1280 = vmatprep.subr.bf16.mxu0 0
      %1281 = vmatpush1.bf16.msra.mxu0 0
      %1282 = vmatprep.subr.bf16.mxu0 0
      %1283 = vmatpush1.bf16.msra.mxu0 0
      %1284 = vmatprep.subr.bf16.mxu0 0
      %1285 = vmatpush1.bf16.msra.mxu0 0
      %1286 = vmatprep.subr.bf16.mxu0 0
      %1287 = vmatpush1.bf16.msra.mxu0 0
      %1288 = vmatprep.subr.bf16.mxu0 0
      %1289 = vmatpush1.bf16.msra.mxu0 0
      %1290 = vmatprep.subr.bf16.mxu0 0
      %1291 = vmatpush1.bf16.msra.mxu0 0
      %1292 = vmatprep.subr.bf16.mxu0 0
      %1293 = vmatpush1.bf16.msra.mxu0 0
      %1294 = vmatprep.subr.bf16.mxu0 0
      %1295 = vmatpush1.bf16.msra.mxu0 0
      %1296 = vmatprep.subr.bf16.mxu0 0
      %1297 = vmatpush1.bf16.msra.mxu0 0
      %1298 = vmatprep.mubr.bf16.mxu0 0
      %1299 = vmatmul.mubr.bf16.gmra.mrb[0].mxu0 %v1261
      %v1300 = vpop.f32.mrb[0].mxu0
      %v1301 = vadd.f32 0.0, %v1300
      %v1302 = vpop.f32.mrb[0].mxu0
      %v1303 = vpop.f32.mrb[0].mxu0
      %v1304 = vadd.f32 0.0, %v1303
      %v1305 = vpop.f32.mrb[0].mxu0
      %1306 = vdwg.mxu0
      %v1307 = vpack.c.bf16 %v1304, %v1301
      %v1312 = vunpack.c.l.b16 %v1033
      %v1313 = vunpack.c.l.b16 %v1034
      %v1314 = vunpack.c.l.b16 %v1035
      %v1315 = vunpack.c.l.b16 %v1036
      %v1316 = vpack.c.b16 %v1313, %v1312
      %v1317 = vpack.c.b16 %v1315, %v1314
      %v1321 = vsel %vm1047, %v1307, 0
      %1323 = vmatprep.subr.bf16.mxu0 0
      %1324 = vmatpush1.bf16.msra.mxu0 %v1316
      %1325 = vmatprep.subr.bf16.mxu0 0
      %1326 = vmatpush1.bf16.msra.mxu0 %v1317
      %1327 = vmatprep.subr.bf16.mxu0 0
      %1328 = vmatpush1.bf16.msra.mxu0 0
      %1329 = vmatprep.subr.bf16.mxu0 0
      %1330 = vmatpush1.bf16.msra.mxu0 0
      %1331 = vmatprep.subr.bf16.mxu0 0
      %1332 = vmatpush1.bf16.msra.mxu0 0
      %1333 = vmatprep.subr.bf16.mxu0 0
      %1334 = vmatpush1.bf16.msra.mxu0 0
      %1335 = vmatprep.subr.bf16.mxu0 0
      %1336 = vmatpush1.bf16.msra.mxu0 0
      %1337 = vmatprep.subr.bf16.mxu0 0
      %1338 = vmatpush1.bf16.msra.mxu0 0
      %1339 = vmatprep.subr.bf16.mxu0 0
      %1340 = vmatpush1.bf16.msra.mxu0 0
      %1341 = vmatprep.subr.bf16.mxu0 0
      %1342 = vmatpush1.bf16.msra.mxu0 0
      %1343 = vmatprep.subr.bf16.mxu0 0
      %1344 = vmatpush1.bf16.msra.mxu0 0
      %1345 = vmatprep.subr.bf16.mxu0 0
      %1346 = vmatpush1.bf16.msra.mxu0 0
      %1347 = vmatprep.subr.bf16.mxu0 0
      %1348 = vmatpush1.bf16.msra.mxu0 0
      %1349 = vmatprep.subr.bf16.mxu0 0
      %1350 = vmatpush1.bf16.msra.mxu0 0
      %1351 = vmatprep.subr.bf16.mxu0 0
      %1352 = vmatpush1.bf16.msra.mxu0 0
      %1353 = vmatprep.subr.bf16.mxu0 0
      %1354 = vmatpush1.bf16.msra.mxu0 0
      %1355 = vmatprep.mubr.bf16.mxu0 0
      %1356 = vmatmul.mubr.bf16.gmra.mrb[0].mxu0 %v1321
      %v1357 = vpop.f32.mrb[0].mxu0
      %v1358 = vadd.f32 0.0, %v1357
      %v1359 = vpop.f32.mrb[0].mxu0
      %v1360 = vpop.f32.mrb[0].mxu0
      %v1361 = vadd.f32 0.0, %v1360
      %v1362 = vpop.f32.mrb[0].mxu0
      %1363 = vdwg.mxu0
      %v1368 = vunpack.c.l.b16 %v1029
      %v1369 = vunpack.c.l.b16 %v1030
      %v1370 = vunpack.c.l.b16 %v1031
      %v1371 = vunpack.c.l.b16 %v1032
      %v1372 = vpack.c.b16 %v1369, %v1368
      %v1373 = vpack.c.b16 %v1371, %v1370
      %v1377 = vsel %vm1047, %v1176, 0
      %1379 = vmatprep.subr.bf16.mxu0 0
      %1380 = vmatpush1.bf16.msra.mxu0 %v1372
      %1381 = vmatprep.subr.bf16.mxu0 0
      %1382 = vmatpush1.bf16.msra.mxu0 %v1373
      %1383 = vmatprep.subr.bf16.mxu0 0
      %1384 = vmatpush1.bf16.msra.mxu0 0
      %1385 = vmatprep.subr.bf16.mxu0 0
      %1386 = vmatpush1.bf16.msra.mxu0 0
      %1387 = vmatprep.subr.bf16.mxu0 0
      %1388 = vmatpush1.bf16.msra.mxu0 0
      %1389 = vmatprep.subr.bf16.mxu0 0
      %1390 = vmatpush1.bf16.msra.mxu0 0
      %1391 = vmatprep.subr.bf16.mxu0 0
      %1392 = vmatpush1.bf16.msra.mxu0 0
      %1393 = vmatprep.subr.bf16.mxu0 0
      %1394 = vmatpush1.bf16.msra.mxu0 0
      %1395 = vmatprep.subr.bf16.mxu0 0
      %1396 = vmatpush1.bf16.msra.mxu0 0
      %1397 = vmatprep.subr.bf16.mxu0 0
      %1398 = vmatpush1.bf16.msra.mxu0 0
      %1399 = vmatprep.subr.bf16.mxu0 0
      %1400 = vmatpush1.bf16.msra.mxu0 0
      %1401 = vmatprep.subr.bf16.mxu0 0
      %1402 = vmatpush1.bf16.msra.mxu0 0
      %1403 = vmatprep.subr.bf16.mxu0 0
      %1404 = vmatpush1.bf16.msra.mxu0 0
      %1405 = vmatprep.subr.bf16.mxu0 0
      %1406 = vmatpush1.bf16.msra.mxu0 0
      %1407 = vmatprep.subr.bf16.mxu0 0
      %1408 = vmatpush1.bf16.msra.mxu0 0
      %1409 = vmatprep.subr.bf16.mxu0 0
      %1410 = vmatpush1.bf16.msra.mxu0 0
      %1411 = vmatprep.mubr.bf16.mxu0 0
      %1412 = vmatmul.mubr.bf16.gmra.mrb[0].mxu0 %v1377
      %v1413 = vpop.f32.mrb[0].mxu0
      %v1414 = vadd.f32 %v1358, %v1413
      %v1415 = vpop.f32.mrb[0].mxu0
      %v1416 = vpop.f32.mrb[0].mxu0
      %v1417 = vadd.f32 %v1361, %v1416
      %v1418 = vpop.f32.mrb[0].mxu0
      %1419 = vdwg.mxu0
      %1420 = vrot.lane.b32.xlu0 %v1045, 64
      %v1421 = vpop.permute.xlu0 %1420
      %1422 = vrot.lane.b32.xlu0 %v1046, 64
      %v1423 = vpop.permute.xlu0 %1422
      %v1425 = vsel %vm1047, %v1421, 0
      %v1428 = vsel %vm1047, %v1423, 0
      %1430 = vmatprep.subr.bf16.mxu0 0
      %1431 = vmatpush1.bf16.xpose.msra.mxu0 %v1428
      %1432 = vmatprep.subr.bf16.mxu0 0
      %1433 = vmatpush1.bf16.xpose.msra.mxu0 0
      %1434 = vmatprep.subr.bf16.mxu0 0
      %1435 = vmatpush1.bf16.xpose.msra.mxu0 0
      %1436 = vmatprep.subr.bf16.mxu0 0
      %1437 = vmatpush1.bf16.xpose.msra.mxu0 0
      %1438 = vmatprep.subr.bf16.mxu0 0
      %1439 = vmatpush1.bf16.xpose.msra.mxu0 0
      %1440 = vmatprep.subr.bf16.mxu0 0
      %1441 = vmatpush1.bf16.xpose.msra.mxu0 0
      %1442 = vmatprep.subr.bf16.mxu0 0
      %1443 = vmatpush1.bf16.xpose.msra.mxu0 0
      %1444 = vmatprep.subr.bf16.mxu0 0
      %1445 = vmatpush1.bf16.xpose.msra.mxu0 0
      %1446 = vmatprep.subr.bf16.mxu0 0
      %1447 = vmatpush1.bf16.xpose.msra.mxu0 0
      %1448 = vmatprep.subr.bf16.mxu0 0
      %1449 = vmatpush1.bf16.xpose.msra.mxu0 0
      %1450 = vmatprep.subr.bf16.mxu0 0
      %1451 = vmatpush1.bf16.xpose.msra.mxu0 0
      %1452 = vmatprep.subr.bf16.mxu0 0
      %1453 = vmatpush1.bf16.xpose.msra.mxu0 0
      %1454 = vmatprep.subr.bf16.mxu0 0
      %1455 = vmatpush1.bf16.xpose.msra.mxu0 0
      %1456 = vmatprep.subr.bf16.mxu0 0
      %1457 = vmatpush1.bf16.xpose.msra.mxu0 0
      %1458 = vmatprep.subr.bf16.mxu0 0
      %1459 = vmatpush1.bf16.xpose.msra.mxu0 0
      %1460 = vmatprep.subr.bf16.mxu0 0
      %1461 = vmatpush1.bf16.xpose.msra.mxu0 0
      %1462 = vmatprep.mubr.bf16.mxu0 0
      %1463 = vmatmul.mubr.bf16.gmra.mrb[0].mxu0 %v1425
      %v1464 = vpop.f32.mrb[0].mxu0
      %v1465 = vadd.f32 0.0, %v1464
      %v1466 = vpop.f32.mrb[0].mxu0
      %v1467 = vpop.f32.mrb[0].mxu0
      %v1468 = vadd.f32 0.0, %v1467
      %v1469 = vpop.f32.mrb[0].mxu0
      %1470 = vdwg.mxu0
      %v1471 = vmul.f32 %v1465, 0.17677669
      %v1472 = vmul.f32 %v1468, 0.17677669
      %v1473 = vadd.f32 %v1471, %v1027
      %v1474 = vadd.f32 %v1472, %v1028
      %v1475 = vsel %vm1099, %v1473, -inf
      %1476 = vmax.xlane.f32.xlu0 %v1475
      %v1477 = vpop.xlane.xlu0 %1476
      %v1478 = vsel %vm1103, %v1474, -inf
      %1479 = vmax.xlane.f32.xlu0 %v1478
      %v1480 = vpop.xlane.xlu0 %1479
      %v1481 = vsub.f32 %v1473, %v1477
      %v1482 = vsub.f32 %v1474, %v1480
      %v1483 = vmul.f32 %v1481, 1.442695
      %v1484 = vpow.pop %v1483
      %v1485 = vmul.f32 %v1482, 1.442695
      %v1486 = vpow.pop %v1485
      %v1487 = vsel %vm1099, %v1484, 0.0
      %1488 = vadd.xlane.f32.xlu0 %v1487
      %v1489 = vpop.xlane.xlu0 %1488
      %v1490 = vsel %vm1103, %v1486, 0.0
      %1491 = vadd.xlane.f32.xlu0 %v1490
      %v1492 = vpop.xlane.xlu0 %1491
      %v1493 = vrcp.pop %v1489
      %v1494 = vrcp.pop %v1492
      %v1495 = vmul.f32 %v1484, %v1493
      %v1496 = vmul.f32 %v1486, %v1494
      %v1497 = vpack.c.bf16 %v1496, %v1495
      %1498 = vrot.lane.b32.xlu0 %v1124, 64
      %v1499 = vpop.permute.xlu0 %1498
      %v1501 = vsel %vm1099, %v1497, 0
      %v1504 = vand.u32 %v1499, %v1131
      %1506 = vmatprep.subr.bf16.mxu0 0
      %1507 = vmatpush1.bf16.msra.mxu0 %v1504
      %1508 = vmatprep.subr.bf16.mxu0 0
      %1509 = vmatpush1.bf16.msra.mxu0 0
      %1510 = vmatprep.subr.bf16.mxu0 0
      %1511 = vmatpush1.bf16.msra.mxu0 0
      %1512 = vmatprep.subr.bf16.mxu0 0
      %1513 = vmatpush1.bf16.msra.mxu0 0
      %1514 = vmatprep.subr.bf16.mxu0 0
      %1515 = vmatpush1.bf16.msra.mxu0 0
      %1516 = vmatprep.subr.bf16.mxu0 0
      %1517 = vmatpush1.bf16.msra.mxu0 0
      %1518 = vmatprep.subr.bf16.mxu0 0
      %1519 = vmatpush1.bf16.msra.mxu0 0
      %1520 = vmatprep.subr.bf16.mxu0 0
      %1521 = vmatpush1.bf16.msra.mxu0 0
      %1522 = vmatprep.subr.bf16.mxu0 0
      %1523 = vmatpush1.bf16.msra.mxu0 0
      %1524 = vmatprep.subr.bf16.mxu0 0
      %1525 = vmatpush1.bf16.msra.mxu0 0
      %1526 = vmatprep.subr.bf16.mxu0 0
      %1527 = vmatpush1.bf16.msra.mxu0 0
      %1528 = vmatprep.subr.bf16.mxu0 0
      %1529 = vmatpush1.bf16.msra.mxu0 0
      %1530 = vmatprep.subr.bf16.mxu0 0
      %1531 = vmatpush1.bf16.msra.mxu0 0
      %1532 = vmatprep.subr.bf16.mxu0 0
      %1533 = vmatpush1.bf16.msra.mxu0 0
      %1534 = vmatprep.subr.bf16.mxu0 0
      %1535 = vmatpush1.bf16.msra.mxu0 0
      %1536 = vmatprep.subr.bf16.mxu0 0
      %1537 = vmatpush1.bf16.msra.mxu0 0
      %1538 = vmatprep.mubr.bf16.mxu0 0
      %1539 = vmatmul.mubr.bf16.gmra.mrb[0].mxu0 %v1501
      %v1540 = vpop.f32.mrb[0].mxu0
      %v1541 = vadd.f32 0.0, %v1540
      %v1542 = vpop.f32.mrb[0].mxu0
      %v1543 = vpop.f32.mrb[0].mxu0
      %v1544 = vadd.f32 0.0, %v1543
      %v1545 = vpop.f32.mrb[0].mxu0
      %1546 = vdwg.mxu0
      %v1547 = vpack.c.bf16 %v1544, %v1541
      %v1552 = vunpack.c.l.b16 %v1037
      %v1553 = vunpack.c.l.b16 %v1038
      %v1554 = vunpack.c.l.b16 %v1039
      %v1555 = vunpack.c.l.b16 %v1040
      %v1556 = vpack.c.b16 %v1553, %v1552
      %v1557 = vpack.c.b16 %v1555, %v1554
      %v1561 = vsel %vm1047, %v1547, 0
      %1563 = vmatprep.subr.bf16.mxu0 0
      %1564 = vmatpush1.bf16.msra.mxu0 %v1556
      %1565 = vmatprep.subr.bf16.mxu0 0
      %1566 = vmatpush1.bf16.msra.mxu0 %v1557
      %1567 = vmatprep.subr.bf16.mxu0 0
      %1568 = vmatpush1.bf16.msra.mxu0 0
      %1569 = vmatprep.subr.bf16.mxu0 0
      %1570 = vmatpush1.bf16.msra.mxu0 0
      %1571 = vmatprep.subr.bf16.mxu0 0
      %1572 = vmatpush1.bf16.msra.mxu0 0
      %1573 = vmatprep.subr.bf16.mxu0 0
      %1574 = vmatpush1.bf16.msra.mxu0 0
      %1575 = vmatprep.subr.bf16.mxu0 0
      %1576 = vmatpush1.bf16.msra.mxu0 0
      %1577 = vmatprep.subr.bf16.mxu0 0
      %1578 = vmatpush1.bf16.msra.mxu0 0
      %1579 = vmatprep.subr.bf16.mxu0 0
      %1580 = vmatpush1.bf16.msra.mxu0 0
      %1581 = vmatprep.subr.bf16.mxu0 0
      %1582 = vmatpush1.bf16.msra.mxu0 0
      %1583 = vmatprep.subr.bf16.mxu0 0
      %1584 = vmatpush1.bf16.msra.mxu0 0
      %1585 = vmatprep.subr.bf16.mxu0 0
      %1586 = vmatpush1.bf16.msra.mxu0 0
      %1587 = vmatprep.subr.bf16.mxu0 0
      %1588 = vmatpush1.bf16.msra.mxu0 0
      %1589 = vmatprep.subr.bf16.mxu0 0
      %1590 = vmatpush1.bf16.msra.mxu0 0
      %1591 = vmatprep.subr.bf16.mxu0 0
      %1592 = vmatpush1.bf16.msra.mxu0 0
      %1593 = vmatprep.subr.bf16.mxu0 0
      %1594 = vmatpush1.bf16.msra.mxu0 0
      %1595 = vmatprep.mubr.bf16.mxu0 0
      %1596 = vmatmul.mubr.bf16.gmra.mrb[0].mxu0 %v1561
      %v1597 = vpop.f32.mrb[0].mxu0
      %v1598 = vadd.f32 0.0, %v1597
      %v1599 = vpop.f32.mrb[0].mxu0
      %v1600 = vpop.f32.mrb[0].mxu0
      %v1601 = vadd.f32 0.0, %v1600
      %v1602 = vpop.f32.mrb[0].mxu0
      %1603 = vdwg.mxu0
      %v1604 = vadd.f32 %v1414, %v1598
      %v1605 = vadd.f32 %v1417, %v1601
      %1606 = vrot.lane.b32.xlu0 %v1045, 32
      %v1607 = vpop.permute.xlu0 %1606
      %1608 = vrot.lane.b32.xlu0 %v1046, 32
      %v1609 = vpop.permute.xlu0 %1608
      %v1611 = vsel %vm1047, %v1607, 0
      %v1614 = vsel %vm1047, %v1609, 0
      %1616 = vmatprep.subr.bf16.mxu0 0
      %1617 = vmatpush1.bf16.xpose.msra.mxu0 %v1614
      %1618 = vmatprep.subr.bf16.mxu0 0
      %1619 = vmatpush1.bf16.xpose.msra.mxu0 0
      %1620 = vmatprep.subr.bf16.mxu0 0
      %1621 = vmatpush1.bf16.xpose.msra.mxu0 0
      %1622 = vmatprep.subr.bf16.mxu0 0
      %1623 = vmatpush1.bf16.xpose.msra.mxu0 0
      %1624 = vmatprep.subr.bf16.mxu0 0
      %1625 = vmatpush1.bf16.xpose.msra.mxu0 0
      %1626 = vmatprep.subr.bf16.mxu0 0
      %1627 = vmatpush1.bf16.xpose.msra.mxu0 0
      %1628 = vmatprep.subr.bf16.mxu0 0
      %1629 = vmatpush1.bf16.xpose.msra.mxu0 0
      %1630 = vmatprep.subr.bf16.mxu0 0
      %1631 = vmatpush1.bf16.xpose.msra.mxu0 0
      %1632 = vmatprep.subr.bf16.mxu0 0
      %1633 = vmatpush1.bf16.xpose.msra.mxu0 0
      %1634 = vmatprep.subr.bf16.mxu0 0
      %1635 = vmatpush1.bf16.xpose.msra.mxu0 0
      %1636 = vmatprep.subr.bf16.mxu0 0
      %1637 = vmatpush1.bf16.xpose.msra.mxu0 0
      %1638 = vmatprep.subr.bf16.mxu0 0
      %1639 = vmatpush1.bf16.xpose.msra.mxu0 0
      %1640 = vmatprep.subr.bf16.mxu0 0
      %1641 = vmatpush1.bf16.xpose.msra.mxu0 0
      %1642 = vmatprep.subr.bf16.mxu0 0
      %1643 = vmatpush1.bf16.xpose.msra.mxu0 0
      %1644 = vmatprep.subr.bf16.mxu0 0
      %1645 = vmatpush1.bf16.xpose.msra.mxu0 0
      %1646 = vmatprep.subr.bf16.mxu0 0
      %1647 = vmatpush1.bf16.xpose.msra.mxu0 0
      %1648 = vmatprep.mubr.bf16.mxu0 0
      %1649 = vmatmul.mubr.bf16.gmra.mrb[0].mxu0 %v1611
      %v1650 = vpop.f32.mrb[0].mxu0
      %v1651 = vadd.f32 0.0, %v1650
      %v1652 = vpop.f32.mrb[0].mxu0
      %v1653 = vpop.f32.mrb[0].mxu0
      %v1654 = vadd.f32 0.0, %v1653
      %v1655 = vpop.f32.mrb[0].mxu0
      %1656 = vdwg.mxu0
      %v1657 = vmul.f32 %v1651, 0.17677669
      %v1658 = vmul.f32 %v1654, 0.17677669
      %v1659 = vadd.f32 %v1657, %v1027
      %v1660 = vadd.f32 %v1658, %v1028
      %v1661 = vsel %vm1099, %v1659, -inf
      %1662 = vmax.xlane.f32.xlu0 %v1661
      %v1663 = vpop.xlane.xlu0 %1662
      %v1664 = vsel %vm1103, %v1660, -inf
      %1665 = vmax.xlane.f32.xlu0 %v1664
      %v1666 = vpop.xlane.xlu0 %1665
      %v1667 = vsub.f32 %v1659, %v1663
      %v1668 = vsub.f32 %v1660, %v1666
      %v1669 = vmul.f32 %v1667, 1.442695
      %v1670 = vpow.pop %v1669
      %v1671 = vmul.f32 %v1668, 1.442695
      %v1672 = vpow.pop %v1671
      %v1673 = vsel %vm1099, %v1670, 0.0
      %1674 = vadd.xlane.f32.xlu0 %v1673
      %v1675 = vpop.xlane.xlu0 %1674
      %v1676 = vsel %vm1103, %v1672, 0.0
      %1677 = vadd.xlane.f32.xlu0 %v1676
      %v1678 = vpop.xlane.xlu0 %1677
      %v1679 = vrcp.pop %v1675
      %v1680 = vrcp.pop %v1678
      %v1681 = vmul.f32 %v1670, %v1679
      %v1682 = vmul.f32 %v1672, %v1680
      %v1683 = vpack.c.bf16 %v1682, %v1681
      %1684 = vrot.lane.b32.xlu0 %v1124, 32
      %v1685 = vpop.permute.xlu0 %1684
      %v1687 = vsel %vm1099, %v1683, 0
      %v1690 = vand.u32 %v1685, %v1131
      %1692 = vmatprep.subr.bf16.mxu0 0
      %1693 = vmatpush1.bf16.msra.mxu0 %v1690
      %1694 = vmatprep.subr.bf16.mxu0 0
      %1695 = vmatpush1.bf16.msra.mxu0 0
      %1696 = vmatprep.subr.bf16.mxu0 0
      %1697 = vmatpush1.bf16.msra.mxu0 0
      %1698 = vmatprep.subr.bf16.mxu0 0
      %1699 = vmatpush1.bf16.msra.mxu0 0
      %1700 = vmatprep.subr.bf16.mxu0 0
      %1701 = vmatpush1.bf16.msra.mxu0 0
      %1702 = vmatprep.subr.bf16.mxu0 0
      %1703 = vmatpush1.bf16.msra.mxu0 0
      %1704 = vmatprep.subr.bf16.mxu0 0
      %1705 = vmatpush1.bf16.msra.mxu0 0
      %1706 = vmatprep.subr.bf16.mxu0 0
      %1707 = vmatpush1.bf16.msra.mxu0 0
      %1708 = vmatprep.subr.bf16.mxu0 0
      %1709 = vmatpush1.bf16.msra.mxu0 0
      %1710 = vmatprep.subr.bf16.mxu0 0
      %1711 = vmatpush1.bf16.msra.mxu0 0
      %1712 = vmatprep.subr.bf16.mxu0 0
      %1713 = vmatpush1.bf16.msra.mxu0 0
      %1714 = vmatprep.subr.bf16.mxu0 0
      %1715 = vmatpush1.bf16.msra.mxu0 0
      %1716 = vmatprep.subr.bf16.mxu0 0
      %1717 = vmatpush1.bf16.msra.mxu0 0
      %1718 = vmatprep.subr.bf16.mxu0 0
      %1719 = vmatpush1.bf16.msra.mxu0 0
      %1720 = vmatprep.subr.bf16.mxu0 0
      %1721 = vmatpush1.bf16.msra.mxu0 0
      %1722 = vmatprep.subr.bf16.mxu0 0
      %1723 = vmatpush1.bf16.msra.mxu0 0
      %1724 = vmatprep.mubr.bf16.mxu0 0
      %1725 = vmatmul.mubr.bf16.gmra.mrb[0].mxu0 %v1687
      %v1726 = vpop.f32.mrb[0].mxu0
      %v1727 = vadd.f32 0.0, %v1726
      %v1728 = vpop.f32.mrb[0].mxu0
      %v1729 = vpop.f32.mrb[0].mxu0
      %v1730 = vadd.f32 0.0, %v1729
      %v1731 = vpop.f32.mrb[0].mxu0
      %1732 = vdwg.mxu0
      %v1733 = vpack.c.bf16 %v1730, %v1727
      %v1738 = vunpack.c.l.b16 %v1041
      %v1739 = vunpack.c.l.b16 %v1042
      %v1740 = vunpack.c.l.b16 %v1043
      %v1741 = vunpack.c.l.b16 %v1044
      %v1742 = vpack.c.b16 %v1739, %v1738
      %v1743 = vpack.c.b16 %v1741, %v1740
      %v1747 = vsel %vm1047, %v1733, 0
      %1749 = vmatprep.subr.bf16.mxu0 0
      %1750 = vmatpush1.bf16.msra.mxu0 %v1742
      %1751 = vmatprep.subr.bf16.mxu0 0
      %1752 = vmatpush1.bf16.msra.mxu0 %v1743
      %1753 = vmatprep.subr.bf16.mxu0 0
      %1754 = vmatpush1.bf16.msra.mxu0 0
      %1755 = vmatprep.subr.bf16.mxu0 0
      %1756 = vmatpush1.bf16.msra.mxu0 0
      %1757 = vmatprep.subr.bf16.mxu0 0
      %1758 = vmatpush1.bf16.msra.mxu0 0
      %1759 = vmatprep.subr.bf16.mxu0 0
      %1760 = vmatpush1.bf16.msra.mxu0 0
      %1761 = vmatprep.subr.bf16.mxu0 0
      %1762 = vmatpush1.bf16.msra.mxu0 0
      %1763 = vmatprep.subr.bf16.mxu0 0
      %1764 = vmatpush1.bf16.msra.mxu0 0
      %1765 = vmatprep.subr.bf16.mxu0 0
      %1766 = vmatpush1.bf16.msra.mxu0 0
      %1767 = vmatprep.subr.bf16.mxu0 0
      %1768 = vmatpush1.bf16.msra.mxu0 0
      %1769 = vmatprep.subr.bf16.mxu0 0
      %1770 = vmatpush1.bf16.msra.mxu0 0
      %1771 = vmatprep.subr.bf16.mxu0 0
      %1772 = vmatpush1.bf16.msra.mxu0 0
      %1773 = vmatprep.subr.bf16.mxu0 0
      %1774 = vmatpush1.bf16.msra.mxu0 0
      %1775 = vmatprep.subr.bf16.mxu0 0
      %1776 = vmatpush1.bf16.msra.mxu0 0
      %1777 = vmatprep.subr.bf16.mxu0 0
      %1778 = vmatpush1.bf16.msra.mxu0 0
      %1779 = vmatprep.subr.bf16.mxu0 0
      %1780 = vmatpush1.bf16.msra.mxu0 0
      %1781 = vmatprep.mubr.bf16.mxu0 0
      %1782 = vmatmul.mubr.bf16.gmra.mrb[0].mxu0 %v1747
      %v1783 = vpop.f32.mrb[0].mxu0
      %v1784 = vadd.f32 0.0, %v1783
      %v1785 = vpop.f32.mrb[0].mxu0
      %v1786 = vpop.f32.mrb[0].mxu0
      %v1787 = vadd.f32 0.0, %v1786
      %v1788 = vpop.f32.mrb[0].mxu0
      %1789 = vdwg.mxu0
      %v1790 = vadd.f32 %v1604, %v1784
      %v1791 = vadd.f32 %v1605, %v1787
      %v1792 = vadd.f32 %v590, %v1790
      %v1793 = vadd.f32 %v591, %v1791
      %v1794 = vld [vmem:[%s555] sm:$0x1]
      %v1795 = vmul.f32 %v1792, %v1792
      %v1796 = vmul.f32 %v1793, %v1793
      %1797 = vadd.xlane.f32.xlu0 %v1795
      %v1798 = vpop.xlane.xlu0 %1797
      %v1799 = vsel %vm597, %v1796, 0.0
      %1800 = vadd.xlane.f32.xlu0 %v1799
      %v1801 = vpop.xlane.xlu0 %1800
      %v1802 = vmul.f32 %v1798, %v601
      %v1803 = vmul.f32 %v1801, %v601
      %v1804 = vadd.f32 %v1802, 1e-06
      %v1805 = vadd.f32 %v1803, 1e-06
      %v1806 = vrsqrt.pop %v1804
      %v1807 = vrsqrt.pop %v1805
      %v1808 = vmul.f32 %v1792, %v1806
      %v1809 = vmul.f32 %v1793, %v1807
      %v1811 = vlaneseq
      %v1812 = vshrl.u32 %v1811, 7
      %v1813 = vsub.s32 0, %v1812
      %v1814 = vrot.slane %v1794, %v1813
      %v1816 = vmul.f32 %v1808, %v1814
      %v1817 = vmul.f32 %v1809, %v1814
      %v1818 = vpack.c.bf16 %v1817, %v1816
      %v1819 = vld [vmem:[%s570] sm:$0xff]
      %v1820 = vld [vmem:[%s570 + $0x8] sm:$0xff]
      %v1821 = vld [vmem:[%s570 + $0x10] sm:$0xff]
      %v1822 = vld [vmem:[%s570 + $0x18] sm:$0xff]
      %v1823 = vld [vmem:[%s570 + $0x20] sm:$0xff]
      %v1824 = vld [vmem:[%s570 + $0x28] sm:$0xff]
      %v1825 = vld [vmem:[%s570 + $0x30] sm:$0xff]
      %v1826 = vld [vmem:[%s570 + $0x38] sm:$0xff]
      %v1827 = vld [vmem:[%s570 + $0x40] sm:$0xff]
      %v1828 = vld [vmem:[%s570 + $0x48] sm:$0xff]
      %v1829 = vld [vmem:[%s570 + $0x50] sm:$0xff]
      %v1830 = vld [vmem:[%s570 + $0x58] sm:$0xff]
      %v1831 = vld [vmem:[%s570 + $0x60] sm:$0xff]
      %v1832 = vld [vmem:[%s570 + $0x68] sm:$0xff]
      %v1833 = vld [vmem:[%s570 + $0x70] sm:$0xff]
      %v1834 = vld [vmem:[%s570 + $0x78] sm:$0xff]
      %v1835 = vld [vmem:[%s570 + $0x80] sm:$0xff]
      %v1836 = vld [vmem:[%s570 + $0x88] sm:$0xff]
      %v1837 = vld [vmem:[%s570 + $0x90] sm:$0xff]
      %v1838 = vld [vmem:[%s570 + $0x98] sm:$0xff]
      %v1839 = vld [vmem:[%s570 + $0xa0] sm:$0xff]
      %v1840 = vld [vmem:[%s570 + $0xa8] sm:$0xff]
      %v1841 = vld [vmem:[%s570 + $0xb0] sm:$0xff]
      %v1842 = vld [vmem:[%s570 + $0xb8] sm:$0xff]
      %v1843 = vld [vmem:[%s570 + $0xc0] sm:$0xff]
      %v1844 = vld [vmem:[%s570 + $0xc8] sm:$0xff]
      %v1845 = vld [vmem:[%s570 + $0xd0] sm:$0xff]
      %v1846 = vld [vmem:[%s570 + $0xd8] sm:$0xff]
      %v1847 = vld [vmem:[%s570 + $0xe0] sm:$0xff]
      %v1848 = vld [vmem:[%s570 + $0xe8] sm:$0xff]
      %v1849 = vld [vmem:[%s570 + $0xf0] sm:$0xff]
      %v1850 = vld [vmem:[%s570 + $0xf8] sm:$0xff]
      %v1883 = vunpack.c.l.b16 %v1819
      %v1884 = vunpack.c.h.b16 %v1819
      %v1885 = vunpack.c.l.b16 %v1820
      %v1886 = vunpack.c.h.b16 %v1820
      %v1887 = vunpack.c.l.b16 %v1821
      %v1888 = vunpack.c.h.b16 %v1821
      %v1889 = vunpack.c.l.b16 %v1822
      %v1890 = vunpack.c.h.b16 %v1822
      %v1891 = vunpack.c.l.b16 %v1823
      %v1892 = vunpack.c.h.b16 %v1823
      %v1893 = vunpack.c.l.b16 %v1824
      %v1894 = vunpack.c.h.b16 %v1824
      %v1895 = vunpack.c.l.b16 %v1825
      %v1896 = vunpack.c.h.b16 %v1825
      %v1897 = vunpack.c.l.b16 %v1826
      %v1898 = vunpack.c.h.b16 %v1826
      %v1899 = vunpack.c.l.b16 %v1827
      %v1900 = vunpack.c.h.b16 %v1827
      %v1901 = vunpack.c.l.b16 %v1828
      %v1902 = vunpack.c.h.b16 %v1828
      %v1903 = vunpack.c.l.b16 %v1829
      %v1904 = vunpack.c.h.b16 %v1829
      %v1905 = vunpack.c.l.b16 %v1830
      %v1906 = vunpack.c.h.b16 %v1830
      %v1907 = vunpack.c.l.b16 %v1831
      %v1908 = vunpack.c.h.b16 %v1831
      %v1909 = vunpack.c.l.b16 %v1832
      %v1910 = vunpack.c.h.b16 %v1832
      %v1911 = vunpack.c.l.b16 %v1833
      %v1912 = vunpack.c.h.b16 %v1833
      %v1913 = vunpack.c.l.b16 %v1834
      %v1914 = vunpack.c.h.b16 %v1834
      %v1915 = vunpack.c.l.b16 %v1835
      %v1916 = vunpack.c.h.b16 %v1835
      %v1917 = vunpack.c.l.b16 %v1836
      %v1918 = vunpack.c.h.b16 %v1836
      %v1919 = vunpack.c.l.b16 %v1837
      %v1920 = vunpack.c.h.b16 %v1837
      %v1921 = vunpack.c.l.b16 %v1838
      %v1922 = vunpack.c.h.b16 %v1838
      %v1923 = vunpack.c.l.b16 %v1839
      %v1924 = vunpack.c.h.b16 %v1839
      %v1925 = vunpack.c.l.b16 %v1840
      %v1926 = vunpack.c.h.b16 %v1840
      %v1927 = vunpack.c.l.b16 %v1841
      %v1928 = vunpack.c.h.b16 %v1841
      %v1929 = vunpack.c.l.b16 %v1842
      %v1930 = vunpack.c.h.b16 %v1842
      %v1931 = vunpack.c.l.b16 %v1843
      %v1932 = vunpack.c.h.b16 %v1843
      %v1933 = vunpack.c.l.b16 %v1844
      %v1934 = vunpack.c.h.b16 %v1844
      %v1935 = vunpack.c.l.b16 %v1845
      %v1936 = vunpack.c.h.b16 %v1845
      %v1937 = vunpack.c.l.b16 %v1846
      %v1938 = vunpack.c.h.b16 %v1846
      %v1939 = vunpack.c.l.b16 %v1847
      %v1940 = vunpack.c.h.b16 %v1847
      %v1941 = vunpack.c.l.b16 %v1848
      %v1942 = vunpack.c.h.b16 %v1848
      %v1943 = vunpack.c.l.b16 %v1849
      %v1944 = vunpack.c.h.b16 %v1849
      %v1945 = vunpack.c.l.b16 %v1850
      %v1946 = vunpack.c.h.b16 %v1850
      %v1947 = vpack.c.b16 %v1887, %v1883
      %v1948 = vpack.c.b16 %v1888, %v1884
      %v1949 = vpack.c.b16 %v1889, %v1885
      %v1950 = vpack.c.b16 %v1890, %v1886
      %v1951 = vpack.c.b16 %v1895, %v1891
      %v1952 = vpack.c.b16 %v1896, %v1892
      %v1953 = vpack.c.b16 %v1897, %v1893
      %v1954 = vpack.c.b16 %v1898, %v1894
      %v1955 = vpack.c.b16 %v1903, %v1899
      %v1956 = vpack.c.b16 %v1904, %v1900
      %v1957 = vpack.c.b16 %v1905, %v1901
      %v1958 = vpack.c.b16 %v1906, %v1902
      %v1959 = vpack.c.b16 %v1911, %v1907
      %v1960 = vpack.c.b16 %v1912, %v1908
      %v1961 = vpack.c.b16 %v1913, %v1909
      %v1962 = vpack.c.b16 %v1914, %v1910
      %v1963 = vpack.c.b16 %v1919, %v1915
      %v1964 = vpack.c.b16 %v1920, %v1916
      %v1965 = vpack.c.b16 %v1921, %v1917
      %v1966 = vpack.c.b16 %v1922, %v1918
      %v1967 = vpack.c.b16 %v1927, %v1923
      %v1968 = vpack.c.b16 %v1928, %v1924
      %v1969 = vpack.c.b16 %v1929, %v1925
      %v1970 = vpack.c.b16 %v1930, %v1926
      %v1971 = vpack.c.b16 %v1935, %v1931
      %v1972 = vpack.c.b16 %v1936, %v1932
      %v1973 = vpack.c.b16 %v1937, %v1933
      %v1974 = vpack.c.b16 %v1938, %v1934
      %v1975 = vpack.c.b16 %v1943, %v1939
      %v1976 = vpack.c.b16 %v1944, %v1940
      %v1977 = vpack.c.b16 %v1945, %v1941
      %v1978 = vpack.c.b16 %v1946, %v1942
      %2011 = vmatprep.subr.bf16.mxu0 %v1948
      %2012 = vmatpush1.bf16.msra.mxu0 %v1947
      %2013 = vmatprep.subr.bf16.mxu0 %v1952
      %2014 = vmatpush1.bf16.msra.mxu0 %v1951
      %2015 = vmatprep.subr.bf16.mxu0 %v1956
      %2016 = vmatpush1.bf16.msra.mxu0 %v1955
      %2017 = vmatprep.subr.bf16.mxu0 %v1960
      %2018 = vmatpush1.bf16.msra.mxu0 %v1959
      %2019 = vmatprep.subr.bf16.mxu0 %v1964
      %2020 = vmatpush1.bf16.msra.mxu0 %v1963
      %2021 = vmatprep.subr.bf16.mxu0 %v1968
      %2022 = vmatpush1.bf16.msra.mxu0 %v1967
      %2023 = vmatprep.subr.bf16.mxu0 %v1972
      %2024 = vmatpush1.bf16.msra.mxu0 %v1971
      %2025 = vmatprep.subr.bf16.mxu0 %v1976
      %2026 = vmatpush1.bf16.msra.mxu0 %v1975
      %2027 = vmatprep.subr.bf16.mxu0 0
      %2028 = vmatpush1.bf16.msra.mxu0 0
      %2029 = vmatprep.subr.bf16.mxu0 0
      %2030 = vmatpush1.bf16.msra.mxu0 0
      %2031 = vmatprep.subr.bf16.mxu0 0
      %2032 = vmatpush1.bf16.msra.mxu0 0
      %2033 = vmatprep.subr.bf16.mxu0 0
      %2034 = vmatpush1.bf16.msra.mxu0 0
      %2035 = vmatprep.subr.bf16.mxu0 0
      %2036 = vmatpush1.bf16.msra.mxu0 0
      %2037 = vmatprep.subr.bf16.mxu0 0
      %2038 = vmatpush1.bf16.msra.mxu0 0
      %2039 = vmatprep.subr.bf16.mxu0 0
      %2040 = vmatpush1.bf16.msra.mxu0 0
      %2041 = vmatprep.subr.bf16.mxu0 0
      %2042 = vmatpush1.bf16.msra.mxu0 0
      %2043 = vmatprep.mubr.bf16.mxu0 0
      %2044 = vmatmul.mubr.bf16.gmra.mrb[0].mxu0 %v1818
      %v2045 = vpop.f32.mrb[0].mxu0
      %v2046 = vadd.f32 0.0, %v2045
      %v2047 = vpop.f32.mrb[0].mxu0
      %v2048 = vadd.f32 0.0, %v2047
      %v2049 = vpop.f32.mrb[0].mxu0
      %v2050 = vadd.f32 0.0, %v2049
      %v2051 = vpop.f32.mrb[0].mxu0
      %v2052 = vadd.f32 0.0, %v2051
      %2053 = vdwg.mxu0
      %2054 = vmatprep.subr.bf16.mxu0 %v1950
      %2055 = vmatpush1.bf16.msra.mxu0 %v1949
      %2056 = vmatprep.subr.bf16.mxu0 %v1954
      %2057 = vmatpush1.bf16.msra.mxu0 %v1953
      %2058 = vmatprep.subr.bf16.mxu0 %v1958
      %2059 = vmatpush1.bf16.msra.mxu0 %v1957
      %2060 = vmatprep.subr.bf16.mxu0 %v1962
      %2061 = vmatpush1.bf16.msra.mxu0 %v1961
      %2062 = vmatprep.subr.bf16.mxu0 %v1966
      %2063 = vmatpush1.bf16.msra.mxu0 %v1965
      %2064 = vmatprep.subr.bf16.mxu0 %v1970
      %2065 = vmatpush1.bf16.msra.mxu0 %v1969
      %2066 = vmatprep.subr.bf16.mxu0 %v1974
      %2067 = vmatpush1.bf16.msra.mxu0 %v1973
      %2068 = vmatprep.subr.bf16.mxu0 %v1978
      %2069 = vmatpush1.bf16.msra.mxu0 %v1977
      %2070 = vmatprep.subr.bf16.mxu0 0
      %2071 = vmatpush1.bf16.msra.mxu0 0
      %2072 = vmatprep.subr.bf16.mxu0 0
      %2073 = vmatpush1.bf16.msra.mxu0 0
      %2074 = vmatprep.subr.bf16.mxu0 0
      %2075 = vmatpush1.bf16.msra.mxu0 0
      %2076 = vmatprep.subr.bf16.mxu0 0
      %2077 = vmatpush1.bf16.msra.mxu0 0
      %2078 = vmatprep.subr.bf16.mxu0 0
      %2079 = vmatpush1.bf16.msra.mxu0 0
      %2080 = vmatprep.subr.bf16.mxu0 0
      %2081 = vmatpush1.bf16.msra.mxu0 0
      %2082 = vmatprep.subr.bf16.mxu0 0
      %2083 = vmatpush1.bf16.msra.mxu0 0
      %2084 = vmatprep.subr.bf16.mxu0 0
      %2085 = vmatpush1.bf16.msra.mxu0 0
      %2086 = vmatprep.mubr.bf16.mxu0 0
      %2087 = vmatmul.mubr.bf16.gmra.mrb[0].mxu0 %v1818
      %v2088 = vpop.f32.mrb[0].mxu0
      %v2089 = vadd.f32 0.0, %v2088
      %v2090 = vpop.f32.mrb[0].mxu0
      %v2091 = vadd.f32 0.0, %v2090
      %v2092 = vpop.f32.mrb[0].mxu0
      %v2093 = vadd.f32 0.0, %v2092
      %v2094 = vpop.f32.mrb[0].mxu0
      %v2095 = vadd.f32 0.0, %v2094
      %2096 = vdwg.mxu0
      %v2097 = vsub.f32 0.0, %v2046
      %v2098 = vsub.f32 0.0, %v2048
      %v2099 = vsub.f32 0.0, %v2050
      %v2100 = vsub.f32 0.0, %v2052
      %v2101 = vmul.f32 %v2097, 1.442695
      %v2102 = vpow.pop %v2101
      %v2103 = vmul.f32 %v2098, 1.442695
      %v2104 = vpow.pop %v2103
      %v2105 = vmul.f32 %v2099, 1.442695
      %v2106 = vpow.pop %v2105
      %v2107 = vmul.f32 %v2100, 1.442695
      %v2108 = vpow.pop %v2107
      %v2109 = vadd.f32 %v2102, 1.0
      %v2110 = vadd.f32 %v2104, 1.0
      %v2111 = vadd.f32 %v2106, 1.0
      %v2112 = vadd.f32 %v2108, 1.0
      %v2113 = vrcp.pop %v2109
      %v2114 = vrcp.pop %v2110
      %v2115 = vrcp.pop %v2111
      %v2116 = vrcp.pop %v2112
      %v2117 = vmul.f32 %v2046, %v2113
      %v2118 = vmul.f32 %v2048, %v2114
      %v2119 = vmul.f32 %v2050, %v2115
      %v2120 = vmul.f32 %v2052, %v2116
      %v2121 = vmul.f32 %v2117, %v2089
      %v2122 = vmul.f32 %v2118, %v2091
      %v2123 = vmul.f32 %v2119, %v2093
      %v2124 = vmul.f32 %v2120, %v2095
      %v2125 = vpack.c.bf16 %v2123, %v2121
      %v2126 = vpack.c.bf16 %v2124, %v2122
      %v2127 = vld [vmem:[%s575] sm:$0xf]
      %v2128 = vld [vmem:[%s575 + $0x4] sm:$0xf]
      %v2129 = vld [vmem:[%s575 + $0x8] sm:$0xf]
      %v2130 = vld [vmem:[%s575 + $0xc] sm:$0xf]
      %v2131 = vld [vmem:[%s575 + $0x10] sm:$0xf]
      %v2132 = vld [vmem:[%s575 + $0x14] sm:$0xf]
      %v2133 = vld [vmem:[%s575 + $0x18] sm:$0xf]
      %v2134 = vld [vmem:[%s575 + $0x1c] sm:$0xf]
      %v2135 = vld [vmem:[%s575 + $0x20] sm:$0xf]
      %v2136 = vld [vmem:[%s575 + $0x24] sm:$0xf]
      %v2137 = vld [vmem:[%s575 + $0x28] sm:$0xf]
      %v2138 = vld [vmem:[%s575 + $0x2c] sm:$0xf]
      %v2139 = vld [vmem:[%s575 + $0x30] sm:$0xf]
      %v2140 = vld [vmem:[%s575 + $0x34] sm:$0xf]
      %v2141 = vld [vmem:[%s575 + $0x38] sm:$0xf]
      %v2142 = vld [vmem:[%s575 + $0x3c] sm:$0xf]
      %v2143 = vld [vmem:[%s575 + $0x40] sm:$0xf]
      %v2144 = vld [vmem:[%s575 + $0x44] sm:$0xf]
      %v2145 = vld [vmem:[%s575 + $0x48] sm:$0xf]
      %v2146 = vld [vmem:[%s575 + $0x4c] sm:$0xf]
      %v2147 = vld [vmem:[%s575 + $0x50] sm:$0xf]
      %v2148 = vld [vmem:[%s575 + $0x54] sm:$0xf]
      %v2149 = vld [vmem:[%s575 + $0x58] sm:$0xf]
      %v2150 = vld [vmem:[%s575 + $0x5c] sm:$0xf]
      %v2151 = vld [vmem:[%s575 + $0x60] sm:$0xf]
      %v2152 = vld [vmem:[%s575 + $0x64] sm:$0xf]
      %v2153 = vld [vmem:[%s575 + $0x68] sm:$0xf]
      %v2154 = vld [vmem:[%s575 + $0x6c] sm:$0xf]
      %v2155 = vld [vmem:[%s575 + $0x70] sm:$0xf]
      %v2156 = vld [vmem:[%s575 + $0x74] sm:$0xf]
      %v2157 = vld [vmem:[%s575 + $0x78] sm:$0xf]
      %v2158 = vld [vmem:[%s575 + $0x7c] sm:$0xf]
      %v2191 = vunpack.c.l.b16 %v2127
      %v2192 = vunpack.c.l.b16 %v2128
      %v2193 = vunpack.c.l.b16 %v2129
      %v2194 = vunpack.c.l.b16 %v2130
      %v2195 = vunpack.c.l.b16 %v2131
      %v2196 = vunpack.c.l.b16 %v2132
      %v2197 = vunpack.c.l.b16 %v2133
      %v2198 = vunpack.c.l.b16 %v2134
      %v2199 = vunpack.c.l.b16 %v2135
      %v2200 = vunpack.c.l.b16 %v2136
      %v2201 = vunpack.c.l.b16 %v2137
      %v2202 = vunpack.c.l.b16 %v2138
      %v2203 = vunpack.c.l.b16 %v2139
      %v2204 = vunpack.c.l.b16 %v2140
      %v2205 = vunpack.c.l.b16 %v2141
      %v2206 = vunpack.c.l.b16 %v2142
      %v2207 = vunpack.c.l.b16 %v2143
      %v2208 = vunpack.c.l.b16 %v2144
      %v2209 = vunpack.c.l.b16 %v2145
      %v2210 = vunpack.c.l.b16 %v2146
      %v2211 = vunpack.c.l.b16 %v2147
      %v2212 = vunpack.c.l.b16 %v2148
      %v2213 = vunpack.c.l.b16 %v2149
      %v2214 = vunpack.c.l.b16 %v2150
      %v2215 = vunpack.c.l.b16 %v2151
      %v2216 = vunpack.c.l.b16 %v2152
      %v2217 = vunpack.c.l.b16 %v2153
      %v2218 = vunpack.c.l.b16 %v2154
      %v2219 = vunpack.c.l.b16 %v2155
      %v2220 = vunpack.c.l.b16 %v2156
      %v2221 = vunpack.c.l.b16 %v2157
      %v2222 = vunpack.c.l.b16 %v2158
      %v2223 = vpack.c.b16 %v2192, %v2191
      %v2224 = vpack.c.b16 %v2194, %v2193
      %v2225 = vpack.c.b16 %v2196, %v2195
      %v2226 = vpack.c.b16 %v2198, %v2197
      %v2227 = vpack.c.b16 %v2200, %v2199
      %v2228 = vpack.c.b16 %v2202, %v2201
      %v2229 = vpack.c.b16 %v2204, %v2203
      %v2230 = vpack.c.b16 %v2206, %v2205
      %v2231 = vpack.c.b16 %v2208, %v2207
      %v2232 = vpack.c.b16 %v2210, %v2209
      %v2233 = vpack.c.b16 %v2212, %v2211
      %v2234 = vpack.c.b16 %v2214, %v2213
      %v2235 = vpack.c.b16 %v2216, %v2215
      %v2236 = vpack.c.b16 %v2218, %v2217
      %v2237 = vpack.c.b16 %v2220, %v2219
      %v2238 = vpack.c.b16 %v2222, %v2221
      %2255 = vmatprep.subr.bf16.mxu0 0
      %2256 = vmatpush1.bf16.msra.mxu0 %v2223
      %2257 = vmatprep.subr.bf16.mxu0 0
      %2258 = vmatpush1.bf16.msra.mxu0 %v2224
      %2259 = vmatprep.subr.bf16.mxu0 0
      %2260 = vmatpush1.bf16.msra.mxu0 %v2225
      %2261 = vmatprep.subr.bf16.mxu0 0
      %2262 = vmatpush1.bf16.msra.mxu0 %v2226
      %2263 = vmatprep.subr.bf16.mxu0 0
      %2264 = vmatpush1.bf16.msra.mxu0 %v2227
      %2265 = vmatprep.subr.bf16.mxu0 0
      %2266 = vmatpush1.bf16.msra.mxu0 %v2228
      %2267 = vmatprep.subr.bf16.mxu0 0
      %2268 = vmatpush1.bf16.msra.mxu0 %v2229
      %2269 = vmatprep.subr.bf16.mxu0 0
      %2270 = vmatpush1.bf16.msra.mxu0 %v2230
      %2271 = vmatprep.subr.bf16.mxu0 0
      %2272 = vmatpush1.bf16.msra.mxu0 %v2231
      %2273 = vmatprep.subr.bf16.mxu0 0
      %2274 = vmatpush1.bf16.msra.mxu0 %v2232
      %2275 = vmatprep.subr.bf16.mxu0 0
      %2276 = vmatpush1.bf16.msra.mxu0 %v2233
      %2277 = vmatprep.subr.bf16.mxu0 0
      %2278 = vmatpush1.bf16.msra.mxu0 %v2234
      %2279 = vmatprep.subr.bf16.mxu0 0
      %2280 = vmatpush1.bf16.msra.mxu0 %v2235
      %2281 = vmatprep.subr.bf16.mxu0 0
      %2282 = vmatpush1.bf16.msra.mxu0 %v2236
      %2283 = vmatprep.subr.bf16.mxu0 0
      %2284 = vmatpush1.bf16.msra.mxu0 %v2237
      %2285 = vmatprep.subr.bf16.mxu0 0
      %2286 = vmatpush1.bf16.msra.mxu0 %v2238
      %2287 = vmatprep.mubr.bf16.mxu0 %v2126
      %2288 = vmatmul.mubr.bf16.gmra.mrb[0].mxu0 %v2125
      %v2289 = vpop.f32.mrb[0].mxu0
      %v2290 = vadd.f32 0.0, %v2289
      %v2291 = vpop.f32.mrb[0].mxu0
      %v2292 = vpop.f32.mrb[0].mxu0
      %v2293 = vadd.f32 0.0, %v2292
      %v2294 = vpop.f32.mrb[0].mxu0
      %2295 = vdwg.mxu0
      %v2296 = vadd.f32 %v1792, %v2290
      %v2297 = vadd.f32 %v1793, %v2293
      %2298 = vst [vmem:[#allocation2] sm:$0xff] %v2296
      %2299 = vst [vmem:[#allocation2 + $0x8] sm:$0x1] %v2297
      %p2300 = scmp.eq.s32.totalorder %s29, 1
      // Predicated region
      $region77: #{multimodal_forward.3} parent=71 // pred_check
        %p2301 = pneg %p2300
      $region78: #{multimodal_forward.3} parent=71 // pred_check_branch
        %2303 = sbr.rel (%p2301) target = $region80
      $region79: #{multimodal_forward.3} parent=71 // pred_region
        %v2304 = vld [vmem:[%s11] sm:$0x1]
        %v2305 = vmul.f32 %v2296, %v2296
        %v2306 = vmul.f32 %v2297, %v2297
        %2307 = vadd.xlane.f32.xlu0 %v2305
        %v2308 = vpop.xlane.xlu0 %2307
        %v2309 = vsel %vm597, %v2306, 0.0
        %2310 = vadd.xlane.f32.xlu0 %v2309
        %v2311 = vpop.xlane.xlu0 %2310
        %v2312 = vmul.f32 %v2308, %v601
        %v2313 = vmul.f32 %v2311, %v601
        %v2314 = vadd.f32 %v2312, 1e-06
        %v2315 = vadd.f32 %v2313, 1e-06
        %v2316 = vrsqrt.pop %v2314
        %v2317 = vrsqrt.pop %v2315
        %v2318 = vmul.f32 %v2296, %v2316
        %v2319 = vmul.f32 %v2297, %v2317
        %v2321 = vlaneseq
        %v2322 = vshrl.u32 %v2321, 7
        %v2323 = vsub.s32 0, %v2322
        %v2324 = vrot.slane %v2304, %v2323
        %v2326 = vmul.f32 %v2318, %v2324
        %v2327 = vmul.f32 %v2319, %v2324
        %v2328 = vpack.c.bf16 %v2327, %v2326
        %v2329 = vld [vmem:[%s12] sm:$0xff]
        %v2330 = vld [vmem:[%s12 + $0x8] sm:$0xff]
        %v2331 = vld [vmem:[%s12 + $0x10] sm:$0xff]
        %v2332 = vld [vmem:[%s12 + $0x18] sm:$0xff]
        %v2333 = vld [vmem:[%s12 + $0x20] sm:$0xff]
        %v2334 = vld [vmem:[%s12 + $0x28] sm:$0xff]
        %v2335 = vld [vmem:[%s12 + $0x30] sm:$0xff]
        %v2336 = vld [vmem:[%s12 + $0x38] sm:$0xff]
        %v2337 = vld [vmem:[%s12 + $0x40] sm:$0xff]
        %v2338 = vld [vmem:[%s12 + $0x48] sm:$0xff]
        %v2339 = vld [vmem:[%s12 + $0x50] sm:$0xff]
        %v2340 = vld [vmem:[%s12 + $0x58] sm:$0xff]
        %v2341 = vld [vmem:[%s12 + $0x60] sm:$0xff]
        %v2342 = vld [vmem:[%s12 + $0x68] sm:$0xff]
        %v2343 = vld [vmem:[%s12 + $0x70] sm:$0xff]
        %v2344 = vld [vmem:[%s12 + $0x78] sm:$0xff]
        %v2361 = vunpack.c.l.b16 %v2329
        %v2362 = vunpack.c.h.b16 %v2329
        %v2363 = vunpack.c.l.b16 %v2330
        %v2364 = vunpack.c.h.b16 %v2330
        %v2365 = vunpack.c.l.b16 %v2331
        %v2366 = vunpack.c.h.b16 %v2331
        %v2367 = vunpack.c.l.b16 %v2332
        %v2368 = vunpack.c.h.b16 %v2332
        %v2369 = vunpack.c.l.b16 %v2333
        %v2370 = vunpack.c.h.b16 %v2333
        %v2371 = vunpack.c.l.b16 %v2334
        %v2372 = vunpack.c.h.b16 %v2334
        %v2373 = vunpack.c.l.b16 %v2335
        %v2374 = vunpack.c.h.b16 %v2335
        %v2375 = vunpack.c.l.b16 %v2336
        %v2376 = vunpack.c.h.b16 %v2336
        %v2377 = vunpack.c.l.b16 %v2337
        %v2378 = vunpack.c.h.b16 %v2337
        %v2379 = vunpack.c.l.b16 %v2338
        %v2380 = vunpack.c.h.b16 %v2338
        %v2381 = vunpack.c.l.b16 %v2339
        %v2382 = vunpack.c.h.b16 %v2339
        %v2383 = vunpack.c.l.b16 %v2340
        %v2384 = vunpack.c.h.b16 %v2340
        %v2385 = vunpack.c.l.b16 %v2341
        %v2386 = vunpack.c.h.b16 %v2341
        %v2387 = vunpack.c.l.b16 %v2342
        %v2388 = vunpack.c.h.b16 %v2342
        %v2389 = vunpack.c.l.b16 %v2343
        %v2390 = vunpack.c.h.b16 %v2343
        %v2391 = vunpack.c.l.b16 %v2344
        %v2392 = vunpack.c.h.b16 %v2344
        %v2393 = vpack.c.b16 %v2363, %v2361
        %v2394 = vpack.c.b16 %v2364, %v2362
        %v2395 = vpack.c.b16 %v2367, %v2365
        %v2396 = vpack.c.b16 %v2368, %v2366
        %v2397 = vpack.c.b16 %v2371, %v2369
        %v2398 = vpack.c.b16 %v2372, %v2370
        %v2399 = vpack.c.b16 %v2375, %v2373
        %v2400 = vpack.c.b16 %v2376, %v2374
        %v2401 = vpack.c.b16 %v2379, %v2377
        %v2402 = vpack.c.b16 %v2380, %v2378
        %v2403 = vpack.c.b16 %v2383, %v2381
        %v2404 = vpack.c.b16 %v2384, %v2382
        %v2405 = vpack.c.b16 %v2387, %v2385
        %v2406 = vpack.c.b16 %v2388, %v2386
        %v2407 = vpack.c.b16 %v2391, %v2389
        %v2408 = vpack.c.b16 %v2392, %v2390
        %2425 = vmatprep.subr.bf16.mxu0 %v2394
        %2426 = vmatpush1.bf16.msra.mxu0 %v2393
        %2427 = vmatprep.subr.bf16.mxu0 %v2396
        %2428 = vmatpush1.bf16.msra.mxu0 %v2395
        %2429 = vmatprep.subr.bf16.mxu0 %v2398
        %2430 = vmatpush1.bf16.msra.mxu0 %v2397
        %2431 = vmatprep.subr.bf16.mxu0 %v2400
        %2432 = vmatpush1.bf16.msra.mxu0 %v2399
        %2433 = vmatprep.subr.bf16.mxu0 %v2402
        %2434 = vmatpush1.bf16.msra.mxu0 %v2401
        %2435 = vmatprep.subr.bf16.mxu0 %v2404
        %2436 = vmatpush1.bf16.msra.mxu0 %v2403
        %2437 = vmatprep.subr.bf16.mxu0 %v2406
        %2438 = vmatpush1.bf16.msra.mxu0 %v2405
        %2439 = vmatprep.subr.bf16.mxu0 %v2408
        %2440 = vmatpush1.bf16.msra.mxu0 %v2407
        %2441 = vmatprep.subr.bf16.mxu0 0
        %2442 = vmatpush1.bf16.msra.mxu0 0
        %2443 = vmatprep.subr.bf16.mxu0 0
        %2444 = vmatpush1.bf16.msra.mxu0 0
        %2445 = vmatprep.subr.bf16.mxu0 0
        %2446 = vmatpush1.bf16.msra.mxu0 0
        %2447 = vmatprep.subr.bf16.mxu0 0
        %2448 = vmatpush1.bf16.msra.mxu0 0
        %2449 = vmatprep.subr.bf16.mxu0 0
        %2450 = vmatpush1.bf16.msra.mxu0 0
        %2451 = vmatprep.subr.bf16.mxu0 0
        %2452 = vmatpush1.bf16.msra.mxu0 0
        %2453 = vmatprep.subr.bf16.mxu0 0
        %2454 = vmatpush1.bf16.msra.mxu0 0
        %2455 = vmatprep.subr.bf16.mxu0 0
        %2456 = vmatpush1.bf16.msra.mxu0 0
        %2457 = vmatprep.mubr.bf16.mxu0 0
        %2458 = vmatmul.mubr.bf16.gmra.mrb[0].mxu0 %v2328
        %v2459 = vpop.f32.mrb[0].mxu0
        %v2460 = vadd.f32 0.0, %v2459
        %v2461 = vpop.f32.mrb[0].mxu0
        %v2462 = vadd.f32 0.0, %v2461
        %v2463 = vpop.f32.mrb[0].mxu0
        %v2464 = vadd.f32 0.0, %v2463
        %v2465 = vpop.f32.mrb[0].mxu0
        %v2466 = vadd.f32 0.0, %v2465
        %2467 = vdwg.mxu0
        %2468 = vst [vmem:[%s580] sm:$0xff] %v2460
        %2469 = vst [vmem:[%s580 + $0x8] sm:$0xff] %v2462
        %2470 = vst [vmem:[%s580 + $0x10] sm:$0x1] %v2464
        %2471 = vst [vmem:[%s580 + $0x18] sm:$0x1] %v2466
      $region80: #{multimodal_forward.3} parent=71 // pred_fallthru
        _
      %p2472 = scmp.lt.s32.totalorder %s28, 1
      %s2473 = scalar_select %p2472, %s28, 1
      %s2474 = smul.addr %s2473, 4
      %s2475 = smul.addr %s2474, 8
      %s2476 = scalar_lea.vmem %s13, %s2475
      // Predicated region
      $region81: #{multimodal_forward.3} parent=71 // pred_check
        %p2477 = pneg %p367
      $region82: #{multimodal_forward.3} parent=71 // pred_check_branch
        %2479 = sbr.rel (%p2477) target = $region84
      $region83: #{multimodal_forward.3} parent=71 // pred_region
        _
      $region84: #{multimodal_forward.3} parent=71 // pred_fallthru
        _
    $region72: #{multimodal_forward.3} parent=5 // pred_fallthru
      _
    %p2480 = scmp.le.s32.totalorder 2, %s19
    // Predicated region
    $region85: #{multimodal_forward.3} parent=5 // pred_check
      %p2481 = pneg %p2480
    $region86: #{multimodal_forward.3} parent=5 // pred_check_branch
      %2483 = sbr.rel (%p2481) target = $region88
    $region87: #{multimodal_forward.3} parent=5 // pred_region
      %s2484 = ssub.s32 %s19, 2
      // Predicated region
      $region89: #{multimodal_forward.3} parent=87 // pred_check
        %p2485 = pneg %p373
      $region90: #{multimodal_forward.3} parent=87 // pred_check_branch
        %2487 = sbr.rel (%p2485) target = $region92
      $region91: #{multimodal_forward.3} parent=87 // pred_region
        %p2488 = scmp.lt.s32.totalorder %s30, 1
        %s2489 = scalar_select %p2488, %s30, 1
        %s2490 = smul.addr %s2489, 4
        %s2491 = smul.addr %s2490, 8
        %s2492 = scalar_lea.vmem %s13, %s2491
      $region92: #{multimodal_forward.3} parent=87 // pred_fallthru
        _
    $region88: #{multimodal_forward.3} parent=5 // pred_fallthru
      _
  $region6: #{multimodal_forward.3} parent=0 // loop_footer
    %s23 = sadd.s32 1, %s19
  $region7: #{multimodal_forward.3} parent=0 // loop_footer_branch
    %18 = sbr.rel target = $region3
  $region8: #{multimodal_forward.3} parent=0 // loop_exit
    _

</llo_original>
